<compile_context>
chip_gen: v5e
topology: v5e:2x2
jax: 0.10.0
libtpu: 0.0.40
codegen_flags: <defaults>
</compile_context>

<pallas_src>
import functools
import math

import jax
import jax.numpy as jnp
from jax import lax
from jax.experimental import pallas as pl
from jax.experimental.pallas import tpu as pltpu


def _mha_kernel(q_ref, qh_ref, k_ref, v_ref, wk_ref, wv_ref, wp_ref, b_ref,
                o_ref, att_scr, *,
                n_head, d_k_hat, d_v_hat, inv_temper, compute_dtype,
                exp_dtype, approx_recip):
    kt = pl.program_id(1)
    num_kt = pl.num_programs(1)
    is_first = kt == 0
    not_first = kt != 0

    # Fused all-head K/V projections for this key tile (lane-dense N = H*d).
    k = k_ref[0].astype(compute_dtype)                           # (tk, d_model)
    v = v_ref[0].astype(compute_dtype)
    kh_all = jnp.dot(k, wk_ref[...],
                     preferred_element_type=jnp.float32).astype(compute_dtype)
    vh_all = jnp.dot(v, wv_ref[...],
                     preferred_element_type=jnp.float32).astype(compute_dtype)

    qh_all = qh_ref[0]                                           # (len_q, H*d_k), precomputed

    # Per-head score/softmax/PV.  The module's semantics force a per-head
    # contraction, so each MXU pass has K=d_k_hat / N=d_v_hat; use head dims
    # >= 128 in production configs for full MXU utilization.
    for h in range(n_head):
        qh = qh_all[:, h * d_k_hat:(h + 1) * d_k_hat]            # (len_q, d_k)
        kh = kh_all[:, h * d_k_hat:(h + 1) * d_k_hat]            # (tk, d_k)
        # Contract on d_k of both operands directly (no explicit transpose).
        s = lax.dot_general(qh, kh, (((1,), (1,)), ((), ())),
                            preferred_element_type=jnp.float32) * inv_temper
        # F.softmax(dim=1) on (B*, n, m) == softmax over the QUERY axis (axis 0).
        # Each key column normalizes independently -> safe under key-axis tiling.
        s_max = jnp.max(s, axis=0, keepdims=True)
        e = jnp.exp((s - s_max).astype(exp_dtype))               # bf16 EUP path on v6e/v7x
        denom = jnp.sum(e.astype(jnp.float32), axis=0, keepdims=True)
        w = e.astype(jnp.float32) * pl.reciprocal(denom, approx=approx_recip)
        vh = vh_all[:, h * d_v_hat:(h + 1) * d_v_hat]            # (tk, d_v)
        pv = jnp.dot(w.astype(compute_dtype), vh,
                     preferred_element_type=jnp.float32)         # (len_q, d_v) f32
        lo = h * d_v_hat

        # Accumulate this head's result directly into its column slice of the
        # scratch: '=' on the first k-tile (also re-initializes across batches),
        # '+=' afterwards.  No per-tile concatenate, no zero-fill.
        @pl.when(is_first)
        def _(pv=pv, lo=lo):
            att_scr[:, lo:lo + d_v_hat] = pv

        @pl.when(not_first)
        def _(pv=pv, lo=lo):
            att_scr[:, lo:lo + d_v_hat] += pv

    # Last key tile: single fused output projection + bias + residual.
    @pl.when(kt == num_kt - 1)
    def _():
        att = att_scr[...].astype(compute_dtype)                 # (len_q, H*d_v)
        proj = jnp.dot(att, wp_ref[...], preferred_element_type=jnp.float32)
        out = proj + b_ref[...] + q_ref[0].astype(jnp.float32)
        o_ref[...] = out[None].astype(o_ref.dtype)


def _vmem_capacity_bytes():
    try:
        info = pltpu.get_tpu_info()
        cap = getattr(info, "vmem_capacity_bytes", None)
        if cap:
            return int(cap)
    except Exception:
        pass
    return 128 * 1024 * 1024


def _choose_key_tile(len_k, block_k, fits):
    """Largest divisor of len_k that is <= block_k, sublane-legal, and fits VMEM."""
    cands = [d for d in range(1, min(block_k, len_k) + 1)
             if len_k % d == 0 and (d % 8 == 0 or d == len_k)]
    if not cands:
        return len_k
    for d in reversed(cands):
        if fits(d):
            return d
    return cands[0]


def multi_head_attention(Q, K, V, w_qs, w_ks, w_vs, w_proj, b_proj,
                         *, block_k=None, compute_dtype=jnp.bfloat16,
                         kv_buffers=2):
    batch, len_q, d_model = Q.shape
    _, len_k, _ = K.shape
    n_head, _, d_k_hat = w_qs.shape
    d_v_hat = w_vs.shape[-1]
    HdK = n_head * d_k_hat
    HdV = n_head * d_v_hat

    inv_temper = 1.0 / math.sqrt(float(d_model))
    io_bytes = jnp.dtype(Q.dtype).itemsize
    w_bytes = jnp.dtype(compute_dtype).itemsize
    is_bf16 = jnp.dtype(compute_dtype) == jnp.dtype(jnp.bfloat16)

    # ---- Generation-aware VMEM budget & key-tile selection -------------------
    capacity = _vmem_capacity_bytes()
    if capacity <= 64 * 1024 * 1024:
        # v7x-class TensorCore: 64 MiB physical -> leave headroom for compiler scratch.
        vmem_limit = min(52 * 1024 * 1024, capacity - 8 * 1024 * 1024)
        default_block_k = 256
    else:
        # v5e / v6e: 128 MiB physical; larger k-tiles amortize per-step overhead
        # and cut read-modify-writes of the f32 accumulator.
        vmem_limit = min(100 * 1024 * 1024, capacity - 24 * 1024 * 1024)
        default_block_k = 1024
    vmem_limit = max(vmem_limit, 16 * 1024 * 1024)
    block_k = default_block_k if block_k is None else block_k

    def footprint(tk):
        return (2 * len_q * d_model * io_bytes                    # Q (residual), 2 bufs over batch
                + 2 * len_q * HdK * w_bytes                       # precomputed Q-projection
                + 2 * kv_buffers * tk * d_model * io_bytes        # K + V key tiles
                + (d_model * HdK + d_model * HdV + HdV * d_model) * w_bytes  # single-buffered weights
                + d_model * 4                                     # bias
                + 2 * len_q * d_model * io_bytes                  # output
                + len_q * HdV * 4)                                # f32 attention accumulator

    budget = int(vmem_limit * 0.85)
    tk = _choose_key_tile(len_k, block_k, lambda d: footprint(d) <= budget)
    num_kt = len_k // tk
    # If even the chosen tile overshoots the generation budget, request exactly
    # what is needed (capped just under physical capacity).
    vmem_limit = max(vmem_limit,
                     min(footprint(tk) + 8 * 1024 * 1024, int(capacity * 0.95)))

    # ---- Weight preparation (head-major fusion) ------------------------------
    wq_all = jnp.transpose(w_qs, (1, 0, 2)).reshape(d_model, HdK).astype(compute_dtype)
    wk_all = jnp.transpose(w_ks, (1, 0, 2)).reshape(d_model, HdK).astype(compute_dtype)
    wv_all = jnp.transpose(w_vs, (1, 0, 2)).reshape(d_model, HdV).astype(compute_dtype)
    wp = jnp.transpose(w_proj).astype(compute_dtype)              # (H*d_v, d_model)
    bias2d = b_proj.reshape(1, d_model).astype(jnp.float32)

    # Hoisted fused query projection: a plain XLA GEMM that overlaps with other
    # work and removes the first-k-tile stall + the (len_q, H*d_k) VMEM scratch.
    qh_all = jnp.einsum('bnd,dk->bnk', Q.astype(compute_dtype), wq_all,
                        preferred_element_type=jnp.float32).astype(compute_dtype)

    # bf16 exp hits the EUP bf16 path on v6e/v7x; on v5e it lowers via f32 (same result).
    exp_dtype = compute_dtype if is_bf16 else jnp.float32

    kernel = functools.partial(
        _mha_kernel,
        n_head=n_head, d_k_hat=d_k_hat, d_v_hat=d_v_hat,
        inv_temper=inv_temper, compute_dtype=compute_dtype,
        exp_dtype=exp_dtype, approx_recip=is_bf16)

    flops = 2 * batch * (
        len_k * d_model * (HdK + HdV)                     # K/V projections
        + n_head * len_q * len_k * (d_k_hat + d_v_hat)    # scores + PV
        + len_q * HdV * d_model)                          # output projection
    bytes_accessed = (
        io_bytes * batch * (len_q * d_model + 2 * len_k * d_model)   # Q, K, V
        + w_bytes * batch * len_q * HdK                              # Q-projection input
        + w_bytes * (d_model * HdK + d_model * HdV + HdV * d_model)  # weights
        + 4 * d_model                                                # bias
        + io_bytes * batch * len_q * d_model)                        # output
    cost = pl.CostEstimate(flops=int(flops),
                           transcendentals=int(batch * n_head * len_q * len_k),
                           bytes_accessed=int(bytes_accessed))

    def _run(single_buffer_weights):
        w_pm = dict(pipeline_mode=pl.Buffered(1)) if single_buffer_weights else {}
        kv_pm = dict(pipeline_mode=pl.Buffered(kv_buffers)) if kv_buffers != 2 else {}
        in_specs = [
            pl.BlockSpec((1, len_q, d_model), lambda b, kt: (b, 0, 0)),         # Q (residual)
            pl.BlockSpec((1, len_q, HdK), lambda b, kt: (b, 0, 0)),             # fused Q-projection
            pl.BlockSpec((1, tk, d_model), lambda b, kt: (b, kt, 0), **kv_pm),  # K tile
            pl.BlockSpec((1, tk, d_model), lambda b, kt: (b, kt, 0), **kv_pm),  # V tile
            pl.BlockSpec((d_model, HdK), lambda b, kt: (0, 0), **w_pm),         # Wk fused (resident)
            pl.BlockSpec((d_model, HdV), lambda b, kt: (0, 0), **w_pm),         # Wv fused (resident)
            pl.BlockSpec((HdV, d_model), lambda b, kt: (0, 0), **w_pm),         # W_proj.T (resident)
            pl.BlockSpec((1, d_model), lambda b, kt: (0, 0), **w_pm),           # bias (resident)
        ]
        out_specs = pl.BlockSpec((1, len_q, d_model), lambda b, kt: (b, 0, 0))
        grid_spec = pltpu.PrefetchScalarGridSpec(
            num_scalar_prefetch=0,
            grid=(batch, num_kt),
            in_specs=in_specs,
            out_specs=out_specs,
            scratch_shapes=[pltpu.VMEM((len_q, HdV), jnp.float32)])
        return pl.pallas_call(
            kernel,
            out_shape=jax.ShapeDtypeStruct((batch, len_q, d_model), Q.dtype),
            grid_spec=grid_spec,
            compiler_params=pltpu.CompilerParams(
                # NOTE: on v7x (2 TCs/chip) the parallel batch axis feeds both
                # cores -- use batch >= 2 to avoid idling a TensorCore.
                dimension_semantics=("parallel", "arbitrary"),
                vmem_limit_bytes=int(vmem_limit)),
            cost_estimate=cost,
        )(Q, qh_all, K, V, wk_all, wv_all, wp, bias2d)

    try:
        return _run(single_buffer_weights=True)
    except Exception:
        # Fallback if this Pallas build rejects pl.Buffered(1) for invariant blocks.
        return _run(single_buffer_weights=False)


def _reference(Q, K, V, w_qs, w_ks, w_vs, w_proj, b_proj):
    """Pure-JAX replica of the PyTorch forward (for correctness check)."""
    d_model = Q.shape[-1]
    qh = jnp.einsum('bnd,hdk->hbnk', Q, w_qs)
    kh = jnp.einsum('bmd,hdk->hbmk', K, w_ks)
    vh = jnp.einsum('bmd,hdv->hbmv', V, w_vs)
    s = jnp.einsum('hbnk,hbmk->hbnm', qh, kh) / math.sqrt(float(d_model))
    w = jax.nn.softmax(s, axis=2)                      # torch softmax dim=1 == query axis
    att = jnp.einsum('hbnm,hbmv->hbnv', w, vh)         # (h, b, n, d_v)
    concat = jnp.concatenate(list(att), axis=-1)       # (b, n, h*d_v), head-major
    out = concat @ w_proj.T + b_proj
    return out + Q


if __name__ == "__main__":
    batch, seq, d_model = 2, 8, 32
    n_head, d_k_hat, d_v_hat = 8, 16, 16

    key = jax.random.PRNGKey(0)
    ks = jax.random.split(key, 8)
    Q = jax.random.normal(ks[0], (batch, seq, d_model), jnp.float32)
    K = jax.random.normal(ks[1], (batch, seq, d_model), jnp.float32)
    V = jax.random.normal(ks[2], (batch, seq, d_model), jnp.float32)
    w_qs = 0.1 * jax.random.normal(ks[3], (n_head, d_model, d_k_hat), jnp.float32)
    w_ks = 0.1 * jax.random.normal(ks[4], (n_head, d_model, d_k_hat), jnp.float32)
    w_vs = 0.1 * jax.random.normal(ks[5], (n_head, d_model, d_v_hat), jnp.float32)
    w_proj = 0.1 * jax.random.normal(ks[6], (d_model, n_head * d_v_hat), jnp.float32)
    b_proj = 0.1 * jax.random.normal(ks[7], (d_model,), jnp.float32)

    ref = _reference(Q, K, V, w_qs, w_ks, w_vs, w_proj, b_proj)

    # 1) Exact-semantics validation path: f32 MXU operands, exact reciprocal, f32 exp.
    out_f32 = jax.block_until_ready(multi_head_attention(
        Q, K, V, w_qs, w_ks, w_vs, w_proj, b_proj, compute_dtype=jnp.float32))
    assert out_f32.shape == (batch, seq, d_model)
    assert jnp.allclose(out_f32, ref, atol=1e-4, rtol=1e-4), "f32 path mismatch vs reference"

    # 2) Performance path: bf16 MXU operands / bf16 exp / approx reciprocal,
    #    f32 accumulation (looser tolerance; approx reciprocal adds a tiny
    #    multiplicative bias per key column -- documented, within tolerance).
    out_bf16 = jax.block_until_ready(multi_head_attention(
        Q, K, V, w_qs, w_ks, w_vs, w_proj, b_proj))
    assert out_bf16.shape == (batch, seq, d_model)
    assert jnp.allclose(out_bf16, ref, atol=5e-2, rtol=5e-2), "bf16 path mismatch vs reference"

    print("KERNEL_OK")
</pallas_src>

<mosaic_0001>
module attributes {stable_mosaic.version = 11 : i64} {
  func.func @_mha_kernel(%arg0: i32, %arg1: i32, %arg2: memref<1x8x32xf32, #tpu.memory_space<vmem>>, %arg3: memref<1x8x128xf32, #tpu.memory_space<vmem>>, %arg4: memref<1x8x32xf32, #tpu.memory_space<vmem>>, %arg5: memref<1x8x32xf32, #tpu.memory_space<vmem>>, %arg6: memref<32x128xf32, #tpu.memory_space<vmem>>, %arg7: memref<32x128xf32, #tpu.memory_space<vmem>>, %arg8: memref<128x32xf32, #tpu.memory_space<vmem>>, %arg9: memref<1x32xf32, #tpu.memory_space<vmem>>, %arg10: memref<1x8x32xf32, #tpu.memory_space<vmem>>, %arg11: memref<8x128xf32, #tpu.memory_space<vmem>>) attributes {dimension_semantics = [#tpu.dimension_semantics<parallel>, #tpu.dimension_semantics<arbitrary>], iteration_bounds = array<i64: 2, 1>, scalar_prefetch = 0 : i64, scratch_operands = 1 : i64, tpu.core_type = #tpu.core_type<tc>, window_params = [{transform_indices = @transform_0, window_bounds = array<i64: 1, 8, 32>}, {transform_indices = @transform_1, window_bounds = array<i64: 1, 8, 128>}, {transform_indices = @transform_2, window_bounds = array<i64: 1, 8, 32>}, {transform_indices = @transform_3, window_bounds = array<i64: 1, 8, 32>}, {pipeline_mode = #tpu.pipeline_mode<synchronous>, transform_indices = @transform_4, window_bounds = array<i64: 32, 128>}, {pipeline_mode = #tpu.pipeline_mode<synchronous>, transform_indices = @transform_5, window_bounds = array<i64: 32, 128>}, {pipeline_mode = #tpu.pipeline_mode<synchronous>, transform_indices = @transform_6, window_bounds = array<i64: 128, 32>}, {pipeline_mode = #tpu.pipeline_mode<synchronous>, transform_indices = @transform_7, window_bounds = array<i64: 1, 32>}, {transform_indices = @transform_8, window_bounds = array<i64: 1, 8, 32>}]} {
    %c0_i32 = arith.constant 0 : i32
    %0 = arith.cmpi eq, %arg1, %c0_i32 : i32
    %c0_i32_0 = arith.constant 0 : i32
    %1 = arith.cmpi ne, %arg1, %c0_i32_0 : i32
    %c0 = arith.constant 0 : index
    %c0_1 = arith.constant 0 : index
    %c0_2 = arith.constant 0 : index
    %2 = vector.load %arg4[%c0, %c0_1, %c0_2] : memref<1x8x32xf32, #tpu.memory_space<vmem>>, vector<1x8x32xf32>
    %3 = vector.shape_cast %2 : vector<1x8x32xf32> to vector<8x32xf32>
    %c0_3 = arith.constant 0 : index
    %c0_4 = arith.constant 0 : index
    %c0_5 = arith.constant 0 : index
    %4 = vector.load %arg5[%c0_3, %c0_4, %c0_5] : memref<1x8x32xf32, #tpu.memory_space<vmem>>, vector<1x8x32xf32>
    %5 = vector.shape_cast %4 : vector<1x8x32xf32> to vector<8x32xf32>
    %c0_6 = arith.constant 0 : index
    %c0_7 = arith.constant 0 : index
    %6 = vector.load %arg6[%c0_6, %c0_7] : memref<32x128xf32, #tpu.memory_space<vmem>>, vector<32x128xf32>
    %cst = arith.constant dense<0.000000e+00> : vector<8x128xf32>
    %7 = tpu.matmul %3, %6, %cst {dimension_numbers = #tpu.dot_dimension_numbers<[1], [0], [0], [1], [0, 0, 1, 1], [], []>} : vector<8x32xf32>, vector<32x128xf32>, vector<8x128xf32> -> vector<8x128xf32>
    %c0_8 = arith.constant 0 : index
    %c0_9 = arith.constant 0 : index
    %8 = vector.load %arg7[%c0_8, %c0_9] : memref<32x128xf32, #tpu.memory_space<vmem>>, vector<32x128xf32>
    %cst_10 = arith.constant dense<0.000000e+00> : vector<8x128xf32>
    %9 = tpu.matmul %5, %8, %cst_10 {dimension_numbers = #tpu.dot_dimension_numbers<[1], [0], [0], [1], [0, 0, 1, 1], [], []>} : vector<8x32xf32>, vector<32x128xf32>, vector<8x128xf32> -> vector<8x128xf32>
    %c0_11 = arith.constant 0 : index
    %c0_12 = arith.constant 0 : index
    %c0_13 = arith.constant 0 : index
    %10 = vector.load %arg3[%c0_11, %c0_12, %c0_13] : memref<1x8x128xf32, #tpu.memory_space<vmem>>, vector<1x8x128xf32>
    %11 = vector.shape_cast %10 : vector<1x8x128xf32> to vector<8x128xf32>
    %12 = vector.extract_strided_slice %11 {offsets = [0, 0], sizes = [8, 16], strides = [1, 1]} : vector<8x128xf32> to vector<8x16xf32>
    %13 = vector.extract_strided_slice %7 {offsets = [0, 0], sizes = [8, 16], strides = [1, 1]} : vector<8x128xf32> to vector<8x16xf32>
    %cst_14 = arith.constant dense<0.000000e+00> : vector<8x8xf32>
    %14 = tpu.matmul %12, %13, %cst_14 {dimension_numbers = #tpu.dot_dimension_numbers<[1], [1], [0], [0], [0, 0, 1, 0], [], []>} : vector<8x16xf32>, vector<8x16xf32>, vector<8x8xf32> -> vector<8x8xf32>
    %cst_15 = arith.constant 0.176776692 : f32
    %15 = vector.broadcast %cst_15 : f32 to vector<8x8xf32>
    %16 = arith.mulf %14, %15 : vector<8x8xf32>
    %cst_16 = arith.constant dense<0xFF800000> : vector<8xf32>
    %17 = vector.multi_reduction <maximumf>, %16, %cst_16 [0] : vector<8x8xf32> to vector<8xf32>
    %18 = vector.shape_cast %17 : vector<8xf32> to vector<1x8xf32>
    %19 = vector.broadcast %18 : vector<1x8xf32> to vector<8x8xf32>
    %20 = arith.subf %16, %19 : vector<8x8xf32>
    %21 = math.exp %20 : vector<8x8xf32>
    %cst_17 = arith.constant dense<0.000000e+00> : vector<8xf32>
    %22 = vector.multi_reduction <add>, %21, %cst_17 [0] : vector<8x8xf32> to vector<8xf32>
    %23 = vector.shape_cast %22 : vector<8xf32> to vector<1x8xf32>
    %24 = tpu.reciprocal %23 : vector<1x8xf32> -> vector<1x8xf32>
    %25 = vector.broadcast %24 : vector<1x8xf32> to vector<8x8xf32>
    %26 = arith.mulf %21, %25 : vector<8x8xf32>
    %27 = vector.extract_strided_slice %9 {offsets = [0, 0], sizes = [8, 16], strides = [1, 1]} : vector<8x128xf32> to vector<8x16xf32>
    %cst_18 = arith.constant dense<0.000000e+00> : vector<8x16xf32>
    %28 = tpu.matmul %26, %27, %cst_18 {dimension_numbers = #tpu.dot_dimension_numbers<[1], [0], [0], [1], [0, 0, 1, 1], [], []>} : vector<8x8xf32>, vector<8x16xf32>, vector<8x16xf32> -> vector<8x16xf32>
    %29 = arith.extui %0 : i1 to i32
    %c0_i32_19 = arith.constant 0 : i32
    %30 = arith.cmpi ne, %29, %c0_i32_19 : i32
    scf.if %30 {
      %c0_72 = arith.constant 0 : index
      %c0_73 = arith.constant 0 : index
      %183 = vector.load %arg11[%c0_72, %c0_73] : memref<8x128xf32, #tpu.memory_space<vmem>>, vector<8x16xf32>
      tpu.vector_store %arg11[%c0_72, %c0_73], %28 {strides = array<i32>} : memref<8x128xf32, #tpu.memory_space<vmem>>, vector<8x16xf32>,
    } else {
    }
    %31 = arith.extui %1 : i1 to i32
    %c0_i32_20 = arith.constant 0 : i32
    %32 = arith.cmpi ne, %31, %c0_i32_20 : i32
    scf.if %32 {
      %c0_72 = arith.constant 0 : index
      %c0_73 = arith.constant 0 : index
      %183 = vector.load %arg11[%c0_72, %c0_73] : memref<8x128xf32, #tpu.memory_space<vmem>>, vector<8x16xf32>
      %184 = arith.addf %183, %28 : vector<8x16xf32>
      %c0_74 = arith.constant 0 : index
      %c0_75 = arith.constant 0 : index
      %185 = vector.load %arg11[%c0_74, %c0_75] : memref<8x128xf32, #tpu.memory_space<vmem>>, vector<8x16xf32>
      tpu.vector_store %arg11[%c0_74, %c0_75], %184 {strides = array<i32>} : memref<8x128xf32, #tpu.memory_space<vmem>>, vector<8x16xf32>,
    } else {
    }
    %33 = vector.extract_strided_slice %11 {offsets = [0, 16], sizes = [8, 16], strides = [1, 1]} : vector<8x128xf32> to vector<8x16xf32>
    %34 = vector.extract_strided_slice %7 {offsets = [0, 16], sizes = [8, 16], strides = [1, 1]} : vector<8x128xf32> to vector<8x16xf32>
    %cst_21 = arith.constant dense<0.000000e+00> : vector<8x8xf32>
    %35 = tpu.matmul %33, %34, %cst_21 {dimension_numbers = #tpu.dot_dimension_numbers<[1], [1], [0], [0], [0, 0, 1, 0], [], []>} : vector<8x16xf32>, vector<8x16xf32>, vector<8x8xf32> -> vector<8x8xf32>
    %cst_22 = arith.constant 0.176776692 : f32
    %36 = vector.broadcast %cst_22 : f32 to vector<8x8xf32>
    %37 = arith.mulf %35, %36 : vector<8x8xf32>
    %cst_23 = arith.constant dense<0xFF800000> : vector<8xf32>
    %38 = vector.multi_reduction <maximumf>, %37, %cst_23 [0] : vector<8x8xf32> to vector<8xf32>
    %39 = vector.shape_cast %38 : vector<8xf32> to vector<1x8xf32>
    %40 = vector.broadcast %39 : vector<1x8xf32> to vector<8x8xf32>
    %41 = arith.subf %37, %40 : vector<8x8xf32>
    %42 = math.exp %41 : vector<8x8xf32>
    %cst_24 = arith.constant dense<0.000000e+00> : vector<8xf32>
    %43 = vector.multi_reduction <add>, %42, %cst_24 [0] : vector<8x8xf32> to vector<8xf32>
    %44 = vector.shape_cast %43 : vector<8xf32> to vector<1x8xf32>
    %45 = tpu.reciprocal %44 : vector<1x8xf32> -> vector<1x8xf32>
    %46 = vector.broadcast %45 : vector<1x8xf32> to vector<8x8xf32>
    %47 = arith.mulf %42, %46 : vector<8x8xf32>
    %48 = vector.extract_strided_slice %9 {offsets = [0, 16], sizes = [8, 16], strides = [1, 1]} : vector<8x128xf32> to vector<8x16xf32>
    %cst_25 = arith.constant dense<0.000000e+00> : vector<8x16xf32>
    %49 = tpu.matmul %47, %48, %cst_25 {dimension_numbers = #tpu.dot_dimension_numbers<[1], [0], [0], [1], [0, 0, 1, 1], [], []>} : vector<8x8xf32>, vector<8x16xf32>, vector<8x16xf32> -> vector<8x16xf32>
    %50 = arith.extui %0 : i1 to i32
    %c0_i32_26 = arith.constant 0 : i32
    %51 = arith.cmpi ne, %50, %c0_i32_26 : i32
    scf.if %51 {
      %c0_72 = arith.constant 0 : index
      %c16 = arith.constant 16 : index
      %183 = vector.load %arg11[%c0_72, %c16] : memref<8x128xf32, #tpu.memory_space<vmem>>, vector<8x16xf32>
      tpu.vector_store %arg11[%c0_72, %c16], %49 {strides = array<i32>} : memref<8x128xf32, #tpu.memory_space<vmem>>, vector<8x16xf32>,
    } else {
    }
    %52 = arith.extui %1 : i1 to i32
    %c0_i32_27 = arith.constant 0 : i32
    %53 = arith.cmpi ne, %52, %c0_i32_27 : i32
    scf.if %53 {
      %c0_72 = arith.constant 0 : index
      %c16 = arith.constant 16 : index
      %183 = vector.load %arg11[%c0_72, %c16] : memref<8x128xf32, #tpu.memory_space<vmem>>, vector<8x16xf32>
      %184 = arith.addf %183, %49 : vector<8x16xf32>
      %c0_73 = arith.constant 0 : index
      %c16_74 = arith.constant 16 : index
      %185 = vector.load %arg11[%c0_73, %c16_74] : memref<8x128xf32, #tpu.memory_space<vmem>>, vector<8x16xf32>
      tpu.vector_store %arg11[%c0_73, %c16_74], %184 {strides = array<i32>} : memref<8x128xf32, #tpu.memory_space<vmem>>, vector<8x16xf32>,
    } else {
    }
    %54 = vector.extract_strided_slice %11 {offsets = [0, 32], sizes = [8, 16], strides = [1, 1]} : vector<8x128xf32> to vector<8x16xf32>
    %55 = vector.extract_strided_slice %7 {offsets = [0, 32], sizes = [8, 16], strides = [1, 1]} : vector<8x128xf32> to vector<8x16xf32>
    %cst_28 = arith.constant dense<0.000000e+00> : vector<8x8xf32>
    %56 = tpu.matmul %54, %55, %cst_28 {dimension_numbers = #tpu.dot_dimension_numbers<[1], [1], [0], [0], [0, 0, 1, 0], [], []>} : vector<8x16xf32>, vector<8x16xf32>, vector<8x8xf32> -> vector<8x8xf32>
    %cst_29 = arith.constant 0.176776692 : f32
    %57 = vector.broadcast %cst_29 : f32 to vector<8x8xf32>
    %58 = arith.mulf %56, %57 : vector<8x8xf32>
    %cst_30 = arith.constant dense<0xFF800000> : vector<8xf32>
    %59 = vector.multi_reduction <maximumf>, %58, %cst_30 [0] : vector<8x8xf32> to vector<8xf32>
    %60 = vector.shape_cast %59 : vector<8xf32> to vector<1x8xf32>
    %61 = vector.broadcast %60 : vector<1x8xf32> to vector<8x8xf32>
    %62 = arith.subf %58, %61 : vector<8x8xf32>
    %63 = math.exp %62 : vector<8x8xf32>
    %cst_31 = arith.constant dense<0.000000e+00> : vector<8xf32>
    %64 = vector.multi_reduction <add>, %63, %cst_31 [0] : vector<8x8xf32> to vector<8xf32>
    %65 = vector.shape_cast %64 : vector<8xf32> to vector<1x8xf32>
    %66 = tpu.reciprocal %65 : vector<1x8xf32> -> vector<1x8xf32>
    %67 = vector.broadcast %66 : vector<1x8xf32> to vector<8x8xf32>
    %68 = arith.mulf %63, %67 : vector<8x8xf32>
    %69 = vector.extract_strided_slice %9 {offsets = [0, 32], sizes = [8, 16], strides = [1, 1]} : vector<8x128xf32> to vector<8x16xf32>
    %cst_32 = arith.constant dense<0.000000e+00> : vector<8x16xf32>
    %70 = tpu.matmul %68, %69, %cst_32 {dimension_numbers = #tpu.dot_dimension_numbers<[1], [0], [0], [1], [0, 0, 1, 1], [], []>} : vector<8x8xf32>, vector<8x16xf32>, vector<8x16xf32> -> vector<8x16xf32>
    %71 = arith.extui %0 : i1 to i32
    %c0_i32_33 = arith.constant 0 : i32
    %72 = arith.cmpi ne, %71, %c0_i32_33 : i32
    scf.if %72 {
      %c0_72 = arith.constant 0 : index
      %c32 = arith.constant 32 : index
      %183 = vector.load %arg11[%c0_72, %c32] : memref<8x128xf32, #tpu.memory_space<vmem>>, vector<8x16xf32>
      tpu.vector_store %arg11[%c0_72, %c32], %70 {strides = array<i32>} : memref<8x128xf32, #tpu.memory_space<vmem>>, vector<8x16xf32>,
    } else {
    }
    %73 = arith.extui %1 : i1 to i32
    %c0_i32_34 = arith.constant 0 : i32
    %74 = arith.cmpi ne, %73, %c0_i32_34 : i32
    scf.if %74 {
      %c0_72 = arith.constant 0 : index
      %c32 = arith.constant 32 : index
      %183 = vector.load %arg11[%c0_72, %c32] : memref<8x128xf32, #tpu.memory_space<vmem>>, vector<8x16xf32>
      %184 = arith.addf %183, %70 : vector<8x16xf32>
      %c0_73 = arith.constant 0 : index
      %c32_74 = arith.constant 32 : index
      %185 = vector.load %arg11[%c0_73, %c32_74] : memref<8x128xf32, #tpu.memory_space<vmem>>, vector<8x16xf32>
      tpu.vector_store %arg11[%c0_73, %c32_74], %184 {strides = array<i32>} : memref<8x128xf32, #tpu.memory_space<vmem>>, vector<8x16xf32>,
    } else {
    }
    %75 = vector.extract_strided_slice %11 {offsets = [0, 48], sizes = [8, 16], strides = [1, 1]} : vector<8x128xf32> to vector<8x16xf32>
    %76 = vector.extract_strided_slice %7 {offsets = [0, 48], sizes = [8, 16], strides = [1, 1]} : vector<8x128xf32> to vector<8x16xf32>
    %cst_35 = arith.constant dense<0.000000e+00> : vector<8x8xf32>
    %77 = tpu.matmul %75, %76, %cst_35 {dimension_numbers = #tpu.dot_dimension_numbers<[1], [1], [0], [0], [0, 0, 1, 0], [], []>} : vector<8x16xf32>, vector<8x16xf32>, vector<8x8xf32> -> vector<8x8xf32>
    %cst_36 = arith.constant 0.176776692 : f32
    %78 = vector.broadcast %cst_36 : f32 to vector<8x8xf32>
    %79 = arith.mulf %77, %78 : vector<8x8xf32>
    %cst_37 = arith.constant dense<0xFF800000> : vector<8xf32>
    %80 = vector.multi_reduction <maximumf>, %79, %cst_37 [0] : vector<8x8xf32> to vector<8xf32>
    %81 = vector.shape_cast %80 : vector<8xf32> to vector<1x8xf32>
    %82 = vector.broadcast %81 : vector<1x8xf32> to vector<8x8xf32>
    %83 = arith.subf %79, %82 : vector<8x8xf32>
    %84 = math.exp %83 : vector<8x8xf32>
    %cst_38 = arith.constant dense<0.000000e+00> : vector<8xf32>
    %85 = vector.multi_reduction <add>, %84, %cst_38 [0] : vector<8x8xf32> to vector<8xf32>
    %86 = vector.shape_cast %85 : vector<8xf32> to vector<1x8xf32>
    %87 = tpu.reciprocal %86 : vector<1x8xf32> -> vector<1x8xf32>
    %88 = vector.broadcast %87 : vector<1x8xf32> to vector<8x8xf32>
    %89 = arith.mulf %84, %88 : vector<8x8xf32>
    %90 = vector.extract_strided_slice %9 {offsets = [0, 48], sizes = [8, 16], strides = [1, 1]} : vector<8x128xf32> to vector<8x16xf32>
    %cst_39 = arith.constant dense<0.000000e+00> : vector<8x16xf32>
    %91 = tpu.matmul %89, %90, %cst_39 {dimension_numbers = #tpu.dot_dimension_numbers<[1], [0], [0], [1], [0, 0, 1, 1], [], []>} : vector<8x8xf32>, vector<8x16xf32>, vector<8x16xf32> -> vector<8x16xf32>
    %92 = arith.extui %0 : i1 to i32
    %c0_i32_40 = arith.constant 0 : i32
    %93 = arith.cmpi ne, %92, %c0_i32_40 : i32
    scf.if %93 {
      %c0_72 = arith.constant 0 : index
      %c48 = arith.constant 48 : index
      %183 = vector.load %arg11[%c0_72, %c48] : memref<8x128xf32, #tpu.memory_space<vmem>>, vector<8x16xf32>
      tpu.vector_store %arg11[%c0_72, %c48], %91 {strides = array<i32>} : memref<8x128xf32, #tpu.memory_space<vmem>>, vector<8x16xf32>,
    } else {
    }
    %94 = arith.extui %1 : i1 to i32
    %c0_i32_41 = arith.constant 0 : i32
    %95 = arith.cmpi ne, %94, %c0_i32_41 : i32
    scf.if %95 {
      %c0_72 = arith.constant 0 : index
      %c48 = arith.constant 48 : index
      %183 = vector.load %arg11[%c0_72, %c48] : memref<8x128xf32, #tpu.memory_space<vmem>>, vector<8x16xf32>
      %184 = arith.addf %183, %91 : vector<8x16xf32>
      %c0_73 = arith.constant 0 : index
      %c48_74 = arith.constant 48 : index
      %185 = vector.load %arg11[%c0_73, %c48_74] : memref<8x128xf32, #tpu.memory_space<vmem>>, vector<8x16xf32>
      tpu.vector_store %arg11[%c0_73, %c48_74], %184 {strides = array<i32>} : memref<8x128xf32, #tpu.memory_space<vmem>>, vector<8x16xf32>,
    } else {
    }
    %96 = vector.extract_strided_slice %11 {offsets = [0, 64], sizes = [8, 16], strides = [1, 1]} : vector<8x128xf32> to vector<8x16xf32>
    %97 = vector.extract_strided_slice %7 {offsets = [0, 64], sizes = [8, 16], strides = [1, 1]} : vector<8x128xf32> to vector<8x16xf32>
    %cst_42 = arith.constant dense<0.000000e+00> : vector<8x8xf32>
    %98 = tpu.matmul %96, %97, %cst_42 {dimension_numbers = #tpu.dot_dimension_numbers<[1], [1], [0], [0], [0, 0, 1, 0], [], []>} : vector<8x16xf32>, vector<8x16xf32>, vector<8x8xf32> -> vector<8x8xf32>
    %cst_43 = arith.constant 0.176776692 : f32
    %99 = vector.broadcast %cst_43 : f32 to vector<8x8xf32>
    %100 = arith.mulf %98, %99 : vector<8x8xf32>
    %cst_44 = arith.constant dense<0xFF800000> : vector<8xf32>
    %101 = vector.multi_reduction <maximumf>, %100, %cst_44 [0] : vector<8x8xf32> to vector<8xf32>
    %102 = vector.shape_cast %101 : vector<8xf32> to vector<1x8xf32>
    %103 = vector.broadcast %102 : vector<1x8xf32> to vector<8x8xf32>
    %104 = arith.subf %100, %103 : vector<8x8xf32>
    %105 = math.exp %104 : vector<8x8xf32>
    %cst_45 = arith.constant dense<0.000000e+00> : vector<8xf32>
    %106 = vector.multi_reduction <add>, %105, %cst_45 [0] : vector<8x8xf32> to vector<8xf32>
    %107 = vector.shape_cast %106 : vector<8xf32> to vector<1x8xf32>
    %108 = tpu.reciprocal %107 : vector<1x8xf32> -> vector<1x8xf32>
    %109 = vector.broadcast %108 : vector<1x8xf32> to vector<8x8xf32>
    %110 = arith.mulf %105, %109 : vector<8x8xf32>
    %111 = vector.extract_strided_slice %9 {offsets = [0, 64], sizes = [8, 16], strides = [1, 1]} : vector<8x128xf32> to vector<8x16xf32>
    %cst_46 = arith.constant dense<0.000000e+00> : vector<8x16xf32>
    %112 = tpu.matmul %110, %111, %cst_46 {dimension_numbers = #tpu.dot_dimension_numbers<[1], [0], [0], [1], [0, 0, 1, 1], [], []>} : vector<8x8xf32>, vector<8x16xf32>, vector<8x16xf32> -> vector<8x16xf32>
    %113 = arith.extui %0 : i1 to i32
    %c0_i32_47 = arith.constant 0 : i32
    %114 = arith.cmpi ne, %113, %c0_i32_47 : i32
    scf.if %114 {
      %c0_72 = arith.constant 0 : index
      %c64 = arith.constant 64 : index
      %183 = vector.load %arg11[%c0_72, %c64] : memref<8x128xf32, #tpu.memory_space<vmem>>, vector<8x16xf32>
      tpu.vector_store %arg11[%c0_72, %c64], %112 {strides = array<i32>} : memref<8x128xf32, #tpu.memory_space<vmem>>, vector<8x16xf32>,
    } else {
    }
    %115 = arith.extui %1 : i1 to i32
    %c0_i32_48 = arith.constant 0 : i32
    %116 = arith.cmpi ne, %115, %c0_i32_48 : i32
    scf.if %116 {
      %c0_72 = arith.constant 0 : index
      %c64 = arith.constant 64 : index
      %183 = vector.load %arg11[%c0_72, %c64] : memref<8x128xf32, #tpu.memory_space<vmem>>, vector<8x16xf32>
      %184 = arith.addf %183, %112 : vector<8x16xf32>
      %c0_73 = arith.constant 0 : index
      %c64_74 = arith.constant 64 : index
      %185 = vector.load %arg11[%c0_73, %c64_74] : memref<8x128xf32, #tpu.memory_space<vmem>>, vector<8x16xf32>
      tpu.vector_store %arg11[%c0_73, %c64_74], %184 {strides = array<i32>} : memref<8x128xf32, #tpu.memory_space<vmem>>, vector<8x16xf32>,
    } else {
    }
    %117 = vector.extract_strided_slice %11 {offsets = [0, 80], sizes = [8, 16], strides = [1, 1]} : vector<8x128xf32> to vector<8x16xf32>
    %118 = vector.extract_strided_slice %7 {offsets = [0, 80], sizes = [8, 16], strides = [1, 1]} : vector<8x128xf32> to vector<8x16xf32>
    %cst_49 = arith.constant dense<0.000000e+00> : vector<8x8xf32>
    %119 = tpu.matmul %117, %118, %cst_49 {dimension_numbers = #tpu.dot_dimension_numbers<[1], [1], [0], [0], [0, 0, 1, 0], [], []>} : vector<8x16xf32>, vector<8x16xf32>, vector<8x8xf32> -> vector<8x8xf32>
    %cst_50 = arith.constant 0.176776692 : f32
    %120 = vector.broadcast %cst_50 : f32 to vector<8x8xf32>
    %121 = arith.mulf %119, %120 : vector<8x8xf32>
    %cst_51 = arith.constant dense<0xFF800000> : vector<8xf32>
    %122 = vector.multi_reduction <maximumf>, %121, %cst_51 [0] : vector<8x8xf32> to vector<8xf32>
    %123 = vector.shape_cast %122 : vector<8xf32> to vector<1x8xf32>
    %124 = vector.broadcast %123 : vector<1x8xf32> to vector<8x8xf32>
    %125 = arith.subf %121, %124 : vector<8x8xf32>
    %126 = math.exp %125 : vector<8x8xf32>
    %cst_52 = arith.constant dense<0.000000e+00> : vector<8xf32>
    %127 = vector.multi_reduction <add>, %126, %cst_52 [0] : vector<8x8xf32> to vector<8xf32>
    %128 = vector.shape_cast %127 : vector<8xf32> to vector<1x8xf32>
    %129 = tpu.reciprocal %128 : vector<1x8xf32> -> vector<1x8xf32>
    %130 = vector.broadcast %129 : vector<1x8xf32> to vector<8x8xf32>
    %131 = arith.mulf %126, %130 : vector<8x8xf32>
    %132 = vector.extract_strided_slice %9 {offsets = [0, 80], sizes = [8, 16], strides = [1, 1]} : vector<8x128xf32> to vector<8x16xf32>
    %cst_53 = arith.constant dense<0.000000e+00> : vector<8x16xf32>
    %133 = tpu.matmul %131, %132, %cst_53 {dimension_numbers = #tpu.dot_dimension_numbers<[1], [0], [0], [1], [0, 0, 1, 1], [], []>} : vector<8x8xf32>, vector<8x16xf32>, vector<8x16xf32> -> vector<8x16xf32>
    %134 = arith.extui %0 : i1 to i32
    %c0_i32_54 = arith.constant 0 : i32
    %135 = arith.cmpi ne, %134, %c0_i32_54 : i32
    scf.if %135 {
      %c0_72 = arith.constant 0 : index
      %c80 = arith.constant 80 : index
      %183 = vector.load %arg11[%c0_72, %c80] : memref<8x128xf32, #tpu.memory_space<vmem>>, vector<8x16xf32>
      tpu.vector_store %arg11[%c0_72, %c80], %133 {strides = array<i32>} : memref<8x128xf32, #tpu.memory_space<vmem>>, vector<8x16xf32>,
    } else {
    }
    %136 = arith.extui %1 : i1 to i32
    %c0_i32_55 = arith.constant 0 : i32
    %137 = arith.cmpi ne, %136, %c0_i32_55 : i32
    scf.if %137 {
      %c0_72 = arith.constant 0 : index
      %c80 = arith.constant 80 : index
      %183 = vector.load %arg11[%c0_72, %c80] : memref<8x128xf32, #tpu.memory_space<vmem>>, vector<8x16xf32>
      %184 = arith.addf %183, %133 : vector<8x16xf32>
      %c0_73 = arith.constant 0 : index
      %c80_74 = arith.constant 80 : index
      %185 = vector.load %arg11[%c0_73, %c80_74] : memref<8x128xf32, #tpu.memory_space<vmem>>, vector<8x16xf32>
      tpu.vector_store %arg11[%c0_73, %c80_74], %184 {strides = array<i32>} : memref<8x128xf32, #tpu.memory_space<vmem>>, vector<8x16xf32>,
    } else {
    }
    %138 = vector.extract_strided_slice %11 {offsets = [0, 96], sizes = [8, 16], strides = [1, 1]} : vector<8x128xf32> to vector<8x16xf32>
    %139 = vector.extract_strided_slice %7 {offsets = [0, 96], sizes = [8, 16], strides = [1, 1]} : vector<8x128xf32> to vector<8x16xf32>
    %cst_56 = arith.constant dense<0.000000e+00> : vector<8x8xf32>
    %140 = tpu.matmul %138, %139, %cst_56 {dimension_numbers = #tpu.dot_dimension_numbers<[1], [1], [0], [0], [0, 0, 1, 0], [], []>} : vector<8x16xf32>, vector<8x16xf32>, vector<8x8xf32> -> vector<8x8xf32>
    %cst_57 = arith.constant 0.176776692 : f32
    %141 = vector.broadcast %cst_57 : f32 to vector<8x8xf32>
    %142 = arith.mulf %140, %141 : vector<8x8xf32>
    %cst_58 = arith.constant dense<0xFF800000> : vector<8xf32>
    %143 = vector.multi_reduction <maximumf>, %142, %cst_58 [0] : vector<8x8xf32> to vector<8xf32>
    %144 = vector.shape_cast %143 : vector<8xf32> to vector<1x8xf32>
    %145 = vector.broadcast %144 : vector<1x8xf32> to vector<8x8xf32>
    %146 = arith.subf %142, %145 : vector<8x8xf32>
    %147 = math.exp %146 : vector<8x8xf32>
    %cst_59 = arith.constant dense<0.000000e+00> : vector<8xf32>
    %148 = vector.multi_reduction <add>, %147, %cst_59 [0] : vector<8x8xf32> to vector<8xf32>
    %149 = vector.shape_cast %148 : vector<8xf32> to vector<1x8xf32>
    %150 = tpu.reciprocal %149 : vector<1x8xf32> -> vector<1x8xf32>
    %151 = vector.broadcast %150 : vector<1x8xf32> to vector<8x8xf32>
    %152 = arith.mulf %147, %151 : vector<8x8xf32>
    %153 = vector.extract_strided_slice %9 {offsets = [0, 96], sizes = [8, 16], strides = [1, 1]} : vector<8x128xf32> to vector<8x16xf32>
    %cst_60 = arith.constant dense<0.000000e+00> : vector<8x16xf32>
    %154 = tpu.matmul %152, %153, %cst_60 {dimension_numbers = #tpu.dot_dimension_numbers<[1], [0], [0], [1], [0, 0, 1, 1], [], []>} : vector<8x8xf32>, vector<8x16xf32>, vector<8x16xf32> -> vector<8x16xf32>
    %155 = arith.extui %0 : i1 to i32
    %c0_i32_61 = arith.constant 0 : i32
    %156 = arith.cmpi ne, %155, %c0_i32_61 : i32
    scf.if %156 {
      %c0_72 = arith.constant 0 : index
      %c96 = arith.constant 96 : index
      %183 = vector.load %arg11[%c0_72, %c96] : memref<8x128xf32, #tpu.memory_space<vmem>>, vector<8x16xf32>
      tpu.vector_store %arg11[%c0_72, %c96], %154 {strides = array<i32>} : memref<8x128xf32, #tpu.memory_space<vmem>>, vector<8x16xf32>,
    } else {
    }
    %157 = arith.extui %1 : i1 to i32
    %c0_i32_62 = arith.constant 0 : i32
    %158 = arith.cmpi ne, %157, %c0_i32_62 : i32
    scf.if %158 {
      %c0_72 = arith.constant 0 : index
      %c96 = arith.constant 96 : index
      %183 = vector.load %arg11[%c0_72, %c96] : memref<8x128xf32, #tpu.memory_space<vmem>>, vector<8x16xf32>
      %184 = arith.addf %183, %154 : vector<8x16xf32>
      %c0_73 = arith.constant 0 : index
      %c96_74 = arith.constant 96 : index
      %185 = vector.load %arg11[%c0_73, %c96_74] : memref<8x128xf32, #tpu.memory_space<vmem>>, vector<8x16xf32>
      tpu.vector_store %arg11[%c0_73, %c96_74], %184 {strides = array<i32>} : memref<8x128xf32, #tpu.memory_space<vmem>>, vector<8x16xf32>,
    } else {
    }
    %159 = vector.extract_strided_slice %11 {offsets = [0, 112], sizes = [8, 16], strides = [1, 1]} : vector<8x128xf32> to vector<8x16xf32>
    %160 = vector.extract_strided_slice %7 {offsets = [0, 112], sizes = [8, 16], strides = [1, 1]} : vector<8x128xf32> to vector<8x16xf32>
    %cst_63 = arith.constant dense<0.000000e+00> : vector<8x8xf32>
    %161 = tpu.matmul %159, %160, %cst_63 {dimension_numbers = #tpu.dot_dimension_numbers<[1], [1], [0], [0], [0, 0, 1, 0], [], []>} : vector<8x16xf32>, vector<8x16xf32>, vector<8x8xf32> -> vector<8x8xf32>
    %cst_64 = arith.constant 0.176776692 : f32
    %162 = vector.broadcast %cst_64 : f32 to vector<8x8xf32>
    %163 = arith.mulf %161, %162 : vector<8x8xf32>
    %cst_65 = arith.constant dense<0xFF800000> : vector<8xf32>
    %164 = vector.multi_reduction <maximumf>, %163, %cst_65 [0] : vector<8x8xf32> to vector<8xf32>
    %165 = vector.shape_cast %164 : vector<8xf32> to vector<1x8xf32>
    %166 = vector.broadcast %165 : vector<1x8xf32> to vector<8x8xf32>
    %167 = arith.subf %163, %166 : vector<8x8xf32>
    %168 = math.exp %167 : vector<8x8xf32>
    %cst_66 = arith.constant dense<0.000000e+00> : vector<8xf32>
    %169 = vector.multi_reduction <add>, %168, %cst_66 [0] : vector<8x8xf32> to vector<8xf32>
    %170 = vector.shape_cast %169 : vector<8xf32> to vector<1x8xf32>
    %171 = tpu.reciprocal %170 : vector<1x8xf32> -> vector<1x8xf32>
    %172 = vector.broadcast %171 : vector<1x8xf32> to vector<8x8xf32>
    %173 = arith.mulf %168, %172 : vector<8x8xf32>
    %174 = vector.extract_strided_slice %9 {offsets = [0, 112], sizes = [8, 16], strides = [1, 1]} : vector<8x128xf32> to vector<8x16xf32>
    %cst_67 = arith.constant dense<0.000000e+00> : vector<8x16xf32>
    %175 = tpu.matmul %173, %174, %cst_67 {dimension_numbers = #tpu.dot_dimension_numbers<[1], [0], [0], [1], [0, 0, 1, 1], [], []>} : vector<8x8xf32>, vector<8x16xf32>, vector<8x16xf32> -> vector<8x16xf32>
    %176 = arith.extui %0 : i1 to i32
    %c0_i32_68 = arith.constant 0 : i32
    %177 = arith.cmpi ne, %176, %c0_i32_68 : i32
    scf.if %177 {
      %c0_72 = arith.constant 0 : index
      %c112 = arith.constant 112 : index
      %183 = vector.load %arg11[%c0_72, %c112] : memref<8x128xf32, #tpu.memory_space<vmem>>, vector<8x16xf32>
      tpu.vector_store %arg11[%c0_72, %c112], %175 {strides = array<i32>} : memref<8x128xf32, #tpu.memory_space<vmem>>, vector<8x16xf32>,
    } else {
    }
    %178 = arith.extui %1 : i1 to i32
    %c0_i32_69 = arith.constant 0 : i32
    %179 = arith.cmpi ne, %178, %c0_i32_69 : i32
    scf.if %179 {
      %c0_72 = arith.constant 0 : index
      %c112 = arith.constant 112 : index
      %183 = vector.load %arg11[%c0_72, %c112] : memref<8x128xf32, #tpu.memory_space<vmem>>, vector<8x16xf32>
      %184 = arith.addf %183, %175 : vector<8x16xf32>
      %c0_73 = arith.constant 0 : index
      %c112_74 = arith.constant 112 : index
      %185 = vector.load %arg11[%c0_73, %c112_74] : memref<8x128xf32, #tpu.memory_space<vmem>>, vector<8x16xf32>
      tpu.vector_store %arg11[%c0_73, %c112_74], %184 {strides = array<i32>} : memref<8x128xf32, #tpu.memory_space<vmem>>, vector<8x16xf32>,
    } else {
    }
    %c0_i32_70 = arith.constant 0 : i32
    %180 = arith.cmpi eq, %arg1, %c0_i32_70 : i32
    %181 = arith.extui %180 : i1 to i32
    %c0_i32_71 = arith.constant 0 : i32
    %182 = arith.cmpi ne, %181, %c0_i32_71 : i32
    scf.if %182 {
      %c0_72 = arith.constant 0 : index
      %c0_73 = arith.constant 0 : index
      %183 = vector.load %arg11[%c0_72, %c0_73] : memref<8x128xf32, #tpu.memory_space<vmem>>, vector<8x128xf32>
      %c0_74 = arith.constant 0 : index
      %c0_75 = arith.constant 0 : index
      %184 = vector.load %arg8[%c0_74, %c0_75] : memref<128x32xf32, #tpu.memory_space<vmem>>, vector<128x32xf32>
      %cst_76 = arith.constant dense<0.000000e+00> : vector<8x32xf32>
      %185 = tpu.matmul %183, %184, %cst_76 {dimension_numbers = #tpu.dot_dimension_numbers<[1], [0], [0], [1], [0, 0, 1, 1], [], []>} : vector<8x128xf32>, vector<128x32xf32>, vector<8x32xf32> -> vector<8x32xf32>
      %c0_77 = arith.constant 0 : index
      %c0_78 = arith.constant 0 : index
      %186 = vector.load %arg9[%c0_77, %c0_78] : memref<1x32xf32, #tpu.memory_space<vmem>>, vector<1x32xf32>
      %187 = vector.broadcast %186 : vector<1x32xf32> to vector<8x32xf32>
      %188 = arith.addf %185, %187 : vector<8x32xf32>
      %c0_79 = arith.constant 0 : index
      %c0_80 = arith.constant 0 : index
      %c0_81 = arith.constant 0 : index
      %189 = vector.load %arg2[%c0_79, %c0_80, %c0_81] : memref<1x8x32xf32, #tpu.memory_space<vmem>>, vector<1x8x32xf32>
      %190 = vector.shape_cast %189 : vector<1x8x32xf32> to vector<8x32xf32>
      %191 = arith.addf %188, %190 : vector<8x32xf32>
      %192 = vector.shape_cast %191 : vector<8x32xf32> to vector<1x8x32xf32>
      %c0_82 = arith.constant 0 : index
      %c0_83 = arith.constant 0 : index
      %c0_84 = arith.constant 0 : index
      %193 = vector.load %arg10[%c0_82, %c0_83, %c0_84] : memref<1x8x32xf32, #tpu.memory_space<vmem>>, vector<1x8x32xf32>
      tpu.vector_store %arg10[%c0_82, %c0_83, %c0_84], %192 {strides = array<i32>} : memref<1x8x32xf32, #tpu.memory_space<vmem>>, vector<1x8x32xf32>,
    } else {
    }
    return
  }
  func.func @transform_0(%arg0: i32, %arg1: i32) -> (i32, i32, i32) {
    %c0_i32 = arith.constant 0 : i32
    %c0_i32_0 = arith.constant 0 : i32
    %c0_i32_1 = arith.constant 0 : i32
    return %arg0, %c0_i32, %c0_i32_0 : i32, i32, i32
  }
  func.func @transform_1(%arg0: i32, %arg1: i32) -> (i32, i32, i32) {
    %c0_i32 = arith.constant 0 : i32
    %c0_i32_0 = arith.constant 0 : i32
    %c0_i32_1 = arith.constant 0 : i32
    return %arg0, %c0_i32, %c0_i32_0 : i32, i32, i32
  }
  func.func @transform_2(%arg0: i32, %arg1: i32) -> (i32, i32, i32) {
    %c0_i32 = arith.constant 0 : i32
    %c0_i32_0 = arith.constant 0 : i32
    return %arg0, %arg1, %c0_i32 : i32, i32, i32
  }
  func.func @transform_3(%arg0: i32, %arg1: i32) -> (i32, i32, i32) {
    %c0_i32 = arith.constant 0 : i32
    %c0_i32_0 = arith.constant 0 : i32
    return %arg0, %arg1, %c0_i32 : i32, i32, i32
  }
  func.func @transform_4(%arg0: i32, %arg1: i32) -> (i32, i32) {
    %c0_i32 = arith.constant 0 : i32
    %c0_i32_0 = arith.constant 0 : i32
    %c0_i32_1 = arith.constant 0 : i32
    return %c0_i32, %c0_i32_0 : i32, i32
  }
  func.func @transform_5(%arg0: i32, %arg1: i32) -> (i32, i32) {
    %c0_i32 = arith.constant 0 : i32
    %c0_i32_0 = arith.constant 0 : i32
    %c0_i32_1 = arith.constant 0 : i32
    return %c0_i32, %c0_i32_0 : i32, i32
  }
  func.func @transform_6(%arg0: i32, %arg1: i32) -> (i32, i32) {
    %c0_i32 = arith.constant 0 : i32
    %c0_i32_0 = arith.constant 0 : i32
    %c0_i32_1 = arith.constant 0 : i32
    return %c0_i32, %c0_i32_0 : i32, i32
  }
  func.func @transform_7(%arg0: i32, %arg1: i32) -> (i32, i32) {
    %c0_i32 = arith.constant 0 : i32
    %c0_i32_0 = arith.constant 0 : i32
    %c0_i32_1 = arith.constant 0 : i32
    return %c0_i32, %c0_i32_0 : i32, i32
  }
  func.func @transform_8(%arg0: i32, %arg1: i32) -> (i32, i32, i32) {
    %c0_i32 = arith.constant 0 : i32
    %c0_i32_0 = arith.constant 0 : i32
    %c0_i32_1 = arith.constant 0 : i32
    return %arg0, %c0_i32, %c0_i32_0 : i32, i32, i32
  }
}

module attributes {stable_mosaic.version = 11 : i64} {
  func.func @_mha_kernel(%arg0: i32, %arg1: i32, %arg2: memref<1x8x32xf32, #tpu.memory_space<vmem>>, %arg3: memref<1x8x128xf32, #tpu.memory_space<vmem>>, %arg4: memref<1x8x32xf32, #tpu.memory_space<vmem>>, %arg5: memref<1x8x32xf32, #tpu.memory_space<vmem>>, %arg6: memref<32x128xf32, #tpu.memory_space<vmem>>, %arg7: memref<32x128xf32, #tpu.memory_space<vmem>>, %arg8: memref<128x32xf32, #tpu.memory_space<vmem>>, %arg9: memref<1x32xf32, #tpu.memory_space<vmem>>, %arg10: memref<1x8x32xf32, #tpu.memory_space<vmem>>, %arg11: memref<8x128xf32, #tpu.memory_space<vmem>>) attributes {dimension_semantics = [#tpu.dimension_semantics<parallel>, #tpu.dimension_semantics<arbitrary>], iteration_bounds = array<i64: 2, 1>, scalar_prefetch = 0 : i64, scratch_operands = 1 : i64, tpu.core_type = #tpu.core_type<tc>, window_params = [{transform_indices = @transform_0, window_bounds = array<i64: 1, 8, 32>}, {transform_indices = @transform_1, window_bounds = array<i64: 1, 8, 128>}, {transform_indices = @transform_2, window_bounds = array<i64: 1, 8, 32>}, {transform_indices = @transform_3, window_bounds = array<i64: 1, 8, 32>}, {pipeline_mode = #tpu.pipeline_mode<synchronous>, transform_indices = @transform_4, window_bounds = array<i64: 32, 128>}, {pipeline_mode = #tpu.pipeline_mode<synchronous>, transform_indices = @transform_5, window_bounds = array<i64: 32, 128>}, {pipeline_mode = #tpu.pipeline_mode<synchronous>, transform_indices = @transform_6, window_bounds = array<i64: 128, 32>}, {pipeline_mode = #tpu.pipeline_mode<synchronous>, transform_indices = @transform_7, window_bounds = array<i64: 1, 32>}, {transform_indices = @transform_8, window_bounds = array<i64: 1, 8, 32>}]} {
    %c0_i32 = arith.constant 0 : i32
    %0 = arith.cmpi eq, %arg1, %c0_i32 : i32
    %c0_i32_0 = arith.constant 0 : i32
    %1 = arith.cmpi ne, %arg1, %c0_i32_0 : i32
    %c0 = arith.constant 0 : index
    %c0_1 = arith.constant 0 : index
    %c0_2 = arith.constant 0 : index
    %2 = vector.load %arg4[%c0, %c0_1, %c0_2] : memref<1x8x32xf32, #tpu.memory_space<vmem>>, vector<1x8x32xf32>
    %3 = vector.shape_cast %2 : vector<1x8x32xf32> to vector<8x32xf32>
    %c0_3 = arith.constant 0 : index
    %c0_4 = arith.constant 0 : index
    %c0_5 = arith.constant 0 : index
    %4 = vector.load %arg5[%c0_3, %c0_4, %c0_5] : memref<1x8x32xf32, #tpu.memory_space<vmem>>, vector<1x8x32xf32>
    %5 = vector.shape_cast %4 : vector<1x8x32xf32> to vector<8x32xf32>
    %c0_6 = arith.constant 0 : index
    %c0_7 = arith.constant 0 : index
    %6 = vector.load %arg6[%c0_6, %c0_7] : memref<32x128xf32, #tpu.memory_space<vmem>>, vector<32x128xf32>
    %cst = arith.constant dense<0.000000e+00> : vector<8x128xf32>
    %7 = tpu.matmul %3, %6, %cst {dimension_numbers = #tpu.dot_dimension_numbers<[1], [0], [0], [1], [0, 0, 1, 1], [], []>} : vector<8x32xf32>, vector<32x128xf32>, vector<8x128xf32> -> vector<8x128xf32>
    %c0_8 = arith.constant 0 : index
    %c0_9 = arith.constant 0 : index
    %8 = vector.load %arg7[%c0_8, %c0_9] : memref<32x128xf32, #tpu.memory_space<vmem>>, vector<32x128xf32>
    %cst_10 = arith.constant dense<0.000000e+00> : vector<8x128xf32>
    %9 = tpu.matmul %5, %8, %cst_10 {dimension_numbers = #tpu.dot_dimension_numbers<[1], [0], [0], [1], [0, 0, 1, 1], [], []>} : vector<8x32xf32>, vector<32x128xf32>, vector<8x128xf32> -> vector<8x128xf32>
    %c0_11 = arith.constant 0 : index
    %c0_12 = arith.constant 0 : index
    %c0_13 = arith.constant 0 : index
    %10 = vector.load %arg3[%c0_11, %c0_12, %c0_13] : memref<1x8x128xf32, #tpu.memory_space<vmem>>, vector<1x8x128xf32>
    %11 = vector.shape_cast %10 : vector<1x8x128xf32> to vector<8x128xf32>
    %12 = vector.extract_strided_slice %11 {offsets = [0, 0], sizes = [8, 16], strides = [1, 1]} : vector<8x128xf32> to vector<8x16xf32>
    %13 = vector.extract_strided_slice %7 {offsets = [0, 0], sizes = [8, 16], strides = [1, 1]} : vector<8x128xf32> to vector<8x16xf32>
    %cst_14 = arith.constant dense<0.000000e+00> : vector<8x8xf32>
    %14 = tpu.matmul %12, %13, %cst_14 {dimension_numbers = #tpu.dot_dimension_numbers<[1], [1], [0], [0], [0, 0, 1, 0], [], []>} : vector<8x16xf32>, vector<8x16xf32>, vector<8x8xf32> -> vector<8x8xf32>
    %cst_15 = arith.constant 0.176776692 : f32
    %15 = vector.broadcast %cst_15 : f32 to vector<8x8xf32>
    %16 = arith.mulf %14, %15 : vector<8x8xf32>
    %cst_16 = arith.constant dense<0xFF800000> : vector<8xf32>
    %17 = vector.multi_reduction <maximumf>, %16, %cst_16 [0] : vector<8x8xf32> to vector<8xf32>
    %18 = vector.shape_cast %17 : vector<8xf32> to vector<1x8xf32>
    %19 = vector.broadcast %18 : vector<1x8xf32> to vector<8x8xf32>
    %20 = arith.subf %16, %19 : vector<8x8xf32>
    %21 = math.exp %20 : vector<8x8xf32>
    %cst_17 = arith.constant dense<0.000000e+00> : vector<8xf32>
    %22 = vector.multi_reduction <add>, %21, %cst_17 [0] : vector<8x8xf32> to vector<8xf32>
    %23 = vector.shape_cast %22 : vector<8xf32> to vector<1x8xf32>
    %24 = tpu.reciprocal %23 : vector<1x8xf32> -> vector<1x8xf32>
    %25 = vector.broadcast %24 : vector<1x8xf32> to vector<8x8xf32>
    %26 = arith.mulf %21, %25 : vector<8x8xf32>
    %27 = vector.extract_strided_slice %9 {offsets = [0, 0], sizes = [8, 16], strides = [1, 1]} : vector<8x128xf32> to vector<8x16xf32>
    %cst_18 = arith.constant dense<0.000000e+00> : vector<8x16xf32>
    %28 = tpu.matmul %26, %27, %cst_18 {dimension_numbers = #tpu.dot_dimension_numbers<[1], [0], [0], [1], [0, 0, 1, 1], [], []>} : vector<8x8xf32>, vector<8x16xf32>, vector<8x16xf32> -> vector<8x16xf32>
    %29 = arith.extui %0 : i1 to i32
    %c0_i32_19 = arith.constant 0 : i32
    %30 = arith.cmpi ne, %29, %c0_i32_19 : i32
    scf.if %30 {
      %c0_72 = arith.constant 0 : index
      %c0_73 = arith.constant 0 : index
      %183 = vector.load %arg11[%c0_72, %c0_73] : memref<8x128xf32, #tpu.memory_space<vmem>>, vector<8x16xf32>
      tpu.vector_store %arg11[%c0_72, %c0_73], %28 {strides = array<i32>} : memref<8x128xf32, #tpu.memory_space<vmem>>, vector<8x16xf32>,
    } else {
    }
    %31 = arith.extui %1 : i1 to i32
    %c0_i32_20 = arith.constant 0 : i32
    %32 = arith.cmpi ne, %31, %c0_i32_20 : i32
    scf.if %32 {
      %c0_72 = arith.constant 0 : index
      %c0_73 = arith.constant 0 : index
      %183 = vector.load %arg11[%c0_72, %c0_73] : memref<8x128xf32, #tpu.memory_space<vmem>>, vector<8x16xf32>
      %184 = arith.addf %183, %28 : vector<8x16xf32>
      %c0_74 = arith.constant 0 : index
      %c0_75 = arith.constant 0 : index
      %185 = vector.load %arg11[%c0_74, %c0_75] : memref<8x128xf32, #tpu.memory_space<vmem>>, vector<8x16xf32>
      tpu.vector_store %arg11[%c0_74, %c0_75], %184 {strides = array<i32>} : memref<8x128xf32, #tpu.memory_space<vmem>>, vector<8x16xf32>,
    } else {
    }
    %33 = vector.extract_strided_slice %11 {offsets = [0, 16], sizes = [8, 16], strides = [1, 1]} : vector<8x128xf32> to vector<8x16xf32>
    %34 = vector.extract_strided_slice %7 {offsets = [0, 16], sizes = [8, 16], strides = [1, 1]} : vector<8x128xf32> to vector<8x16xf32>
    %cst_21 = arith.constant dense<0.000000e+00> : vector<8x8xf32>
    %35 = tpu.matmul %33, %34, %cst_21 {dimension_numbers = #tpu.dot_dimension_numbers<[1], [1], [0], [0], [0, 0, 1, 0], [], []>} : vector<8x16xf32>, vector<8x16xf32>, vector<8x8xf32> -> vector<8x8xf32>
    %cst_22 = arith.constant 0.176776692 : f32
    %36 = vector.broadcast %cst_22 : f32 to vector<8x8xf32>
    %37 = arith.mulf %35, %36 : vector<8x8xf32>
    %cst_23 = arith.constant dense<0xFF800000> : vector<8xf32>
    %38 = vector.multi_reduction <maximumf>, %37, %cst_23 [0] : vector<8x8xf32> to vector<8xf32>
    %39 = vector.shape_cast %38 : vector<8xf32> to vector<1x8xf32>
    %40 = vector.broadcast %39 : vector<1x8xf32> to vector<8x8xf32>
    %41 = arith.subf %37, %40 : vector<8x8xf32>
    %42 = math.exp %41 : vector<8x8xf32>
    %cst_24 = arith.constant dense<0.000000e+00> : vector<8xf32>
    %43 = vector.multi_reduction <add>, %42, %cst_24 [0] : vector<8x8xf32> to vector<8xf32>
    %44 = vector.shape_cast %43 : vector<8xf32> to vector<1x8xf32>
    %45 = tpu.reciprocal %44 : vector<1x8xf32> -> vector<1x8xf32>
    %46 = vector.broadcast %45 : vector<1x8xf32> to vector<8x8xf32>
    %47 = arith.mulf %42, %46 : vector<8x8xf32>
    %48 = vector.extract_strided_slice %9 {offsets = [0, 16], sizes = [8, 16], strides = [1, 1]} : vector<8x128xf32> to vector<8x16xf32>
    %cst_25 = arith.constant dense<0.000000e+00> : vector<8x16xf32>
    %49 = tpu.matmul %47, %48, %cst_25 {dimension_numbers = #tpu.dot_dimension_numbers<[1], [0], [0], [1], [0, 0, 1, 1], [], []>} : vector<8x8xf32>, vector<8x16xf32>, vector<8x16xf32> -> vector<8x16xf32>
    %50 = arith.extui %0 : i1 to i32
    %c0_i32_26 = arith.constant 0 : i32
    %51 = arith.cmpi ne, %50, %c0_i32_26 : i32
    scf.if %51 {
      %c0_72 = arith.constant 0 : index
      %c16 = arith.constant 16 : index
      %183 = vector.load %arg11[%c0_72, %c16] : memref<8x128xf32, #tpu.memory_space<vmem>>, vector<8x16xf32>
      tpu.vector_store %arg11[%c0_72, %c16], %49 {strides = array<i32>} : memref<8x128xf32, #tpu.memory_space<vmem>>, vector<8x16xf32>,
    } else {
    }
    %52 = arith.extui %1 : i1 to i32
    %c0_i32_27 = arith.constant 0 : i32
    %53 = arith.cmpi ne, %52, %c0_i32_27 : i32
    scf.if %53 {
      %c0_72 = arith.constant 0 : index
      %c16 = arith.constant 16 : index
      %183 = vector.load %arg11[%c0_72, %c16] : memref<8x128xf32, #tpu.memory_space<vmem>>, vector<8x16xf32>
      %184 = arith.addf %183, %49 : vector<8x16xf32>
      %c0_73 = arith.constant 0 : index
      %c16_74 = arith.constant 16 : index
      %185 = vector.load %arg11[%c0_73, %c16_74] : memref<8x128xf32, #tpu.memory_space<vmem>>, vector<8x16xf32>
      tpu.vector_store %arg11[%c0_73, %c16_74], %184 {strides = array<i32>} : memref<8x128xf32, #tpu.memory_space<vmem>>, vector<8x16xf32>,
    } else {
    }
    %54 = vector.extract_strided_slice %11 {offsets = [0, 32], sizes = [8, 16], strides = [1, 1]} : vector<8x128xf32> to vector<8x16xf32>
    %55 = vector.extract_strided_slice %7 {offsets = [0, 32], sizes = [8, 16], strides = [1, 1]} : vector<8x128xf32> to vector<8x16xf32>
    %cst_28 = arith.constant dense<0.000000e+00> : vector<8x8xf32>
    %56 = tpu.matmul %54, %55, %cst_28 {dimension_numbers = #tpu.dot_dimension_numbers<[1], [1], [0], [0], [0, 0, 1, 0], [], []>} : vector<8x16xf32>, vector<8x16xf32>, vector<8x8xf32> -> vector<8x8xf32>
    %cst_29 = arith.constant 0.176776692 : f32
    %57 = vector.broadcast %cst_29 : f32 to vector<8x8xf32>
    %58 = arith.mulf %56, %57 : vector<8x8xf32>
    %cst_30 = arith.constant dense<0xFF800000> : vector<8xf32>
    %59 = vector.multi_reduction <maximumf>, %58, %cst_30 [0] : vector<8x8xf32> to vector<8xf32>
    %60 = vector.shape_cast %59 : vector<8xf32> to vector<1x8xf32>
    %61 = vector.broadcast %60 : vector<1x8xf32> to vector<8x8xf32>
    %62 = arith.subf %58, %61 : vector<8x8xf32>
    %63 = math.exp %62 : vector<8x8xf32>
    %cst_31 = arith.constant dense<0.000000e+00> : vector<8xf32>
    %64 = vector.multi_reduction <add>, %63, %cst_31 [0] : vector<8x8xf32> to vector<8xf32>
    %65 = vector.shape_cast %64 : vector<8xf32> to vector<1x8xf32>
    %66 = tpu.reciprocal %65 : vector<1x8xf32> -> vector<1x8xf32>
    %67 = vector.broadcast %66 : vector<1x8xf32> to vector<8x8xf32>
    %68 = arith.mulf %63, %67 : vector<8x8xf32>
    %69 = vector.extract_strided_slice %9 {offsets = [0, 32], sizes = [8, 16], strides = [1, 1]} : vector<8x128xf32> to vector<8x16xf32>
    %cst_32 = arith.constant dense<0.000000e+00> : vector<8x16xf32>
    %70 = tpu.matmul %68, %69, %cst_32 {dimension_numbers = #tpu.dot_dimension_numbers<[1], [0], [0], [1], [0, 0, 1, 1], [], []>} : vector<8x8xf32>, vector<8x16xf32>, vector<8x16xf32> -> vector<8x16xf32>
    %71 = arith.extui %0 : i1 to i32
    %c0_i32_33 = arith.constant 0 : i32
    %72 = arith.cmpi ne, %71, %c0_i32_33 : i32
    scf.if %72 {
      %c0_72 = arith.constant 0 : index
      %c32 = arith.constant 32 : index
      %183 = vector.load %arg11[%c0_72, %c32] : memref<8x128xf32, #tpu.memory_space<vmem>>, vector<8x16xf32>
      tpu.vector_store %arg11[%c0_72, %c32], %70 {strides = array<i32>} : memref<8x128xf32, #tpu.memory_space<vmem>>, vector<8x16xf32>,
    } else {
    }
    %73 = arith.extui %1 : i1 to i32
    %c0_i32_34 = arith.constant 0 : i32
    %74 = arith.cmpi ne, %73, %c0_i32_34 : i32
    scf.if %74 {
      %c0_72 = arith.constant 0 : index
      %c32 = arith.constant 32 : index
      %183 = vector.load %arg11[%c0_72, %c32] : memref<8x128xf32, #tpu.memory_space<vmem>>, vector<8x16xf32>
      %184 = arith.addf %183, %70 : vector<8x16xf32>
      %c0_73 = arith.constant 0 : index
      %c32_74 = arith.constant 32 : index
      %185 = vector.load %arg11[%c0_73, %c32_74] : memref<8x128xf32, #tpu.memory_space<vmem>>, vector<8x16xf32>
      tpu.vector_store %arg11[%c0_73, %c32_74], %184 {strides = array<i32>} : memref<8x128xf32, #tpu.memory_space<vmem>>, vector<8x16xf32>,
    } else {
    }
    %75 = vector.extract_strided_slice %11 {offsets = [0, 48], sizes = [8, 16], strides = [1, 1]} : vector<8x128xf32> to vector<8x16xf32>
    %76 = vector.extract_strided_slice %7 {offsets = [0, 48], sizes = [8, 16], strides = [1, 1]} : vector<8x128xf32> to vector<8x16xf32>
    %cst_35 = arith.constant dense<0.000000e+00> : vector<8x8xf32>
    %77 = tpu.matmul %75, %76, %cst_35 {dimension_numbers = #tpu.dot_dimension_numbers<[1], [1], [0], [0], [0, 0, 1, 0], [], []>} : vector<8x16xf32>, vector<8x16xf32>, vector<8x8xf32> -> vector<8x8xf32>
    %cst_36 = arith.constant 0.176776692 : f32
    %78 = vector.broadcast %cst_36 : f32 to vector<8x8xf32>
    %79 = arith.mulf %77, %78 : vector<8x8xf32>
    %cst_37 = arith.constant dense<0xFF800000> : vector<8xf32>
    %80 = vector.multi_reduction <maximumf>, %79, %cst_37 [0] : vector<8x8xf32> to vector<8xf32>
    %81 = vector.shape_cast %80 : vector<8xf32> to vector<1x8xf32>
    %82 = vector.broadcast %81 : vector<1x8xf32> to vector<8x8xf32>
    %83 = arith.subf %79, %82 : vector<8x8xf32>
    %84 = math.exp %83 : vector<8x8xf32>
    %cst_38 = arith.constant dense<0.000000e+00> : vector<8xf32>
    %85 = vector.multi_reduction <add>, %84, %cst_38 [0] : vector<8x8xf32> to vector<8xf32>
    %86 = vector.shape_cast %85 : vector<8xf32> to vector<1x8xf32>
    %87 = tpu.reciprocal %86 : vector<1x8xf32> -> vector<1x8xf32>
    %88 = vector.broadcast %87 : vector<1x8xf32> to vector<8x8xf32>
    %89 = arith.mulf %84, %88 : vector<8x8xf32>
    %90 = vector.extract_strided_slice %9 {offsets = [0, 48], sizes = [8, 16], strides = [1, 1]} : vector<8x128xf32> to vector<8x16xf32>
    %cst_39 = arith.constant dense<0.000000e+00> : vector<8x16xf32>
    %91 = tpu.matmul %89, %90, %cst_39 {dimension_numbers = #tpu.dot_dimension_numbers<[1], [0], [0], [1], [0, 0, 1, 1], [], []>} : vector<8x8xf32>, vector<8x16xf32>, vector<8x16xf32> -> vector<8x16xf32>
    %92 = arith.extui %0 : i1 to i32
    %c0_i32_40 = arith.constant 0 : i32
    %93 = arith.cmpi ne, %92, %c0_i32_40 : i32
    scf.if %93 {
      %c0_72 = arith.constant 0 : index
      %c48 = arith.constant 48 : index
      %183 = vector.load %arg11[%c0_72, %c48] : memref<8x128xf32, #tpu.memory_space<vmem>>, vector<8x16xf32>
      tpu.vector_store %arg11[%c0_72, %c48], %91 {strides = array<i32>} : memref<8x128xf32, #tpu.memory_space<vmem>>, vector<8x16xf32>,
    } else {
    }
    %94 = arith.extui %1 : i1 to i32
    %c0_i32_41 = arith.constant 0 : i32
    %95 = arith.cmpi ne, %94, %c0_i32_41 : i32
    scf.if %95 {
      %c0_72 = arith.constant 0 : index
      %c48 = arith.constant 48 : index
      %183 = vector.load %arg11[%c0_72, %c48] : memref<8x128xf32, #tpu.memory_space<vmem>>, vector<8x16xf32>
      %184 = arith.addf %183, %91 : vector<8x16xf32>
      %c0_73 = arith.constant 0 : index
      %c48_74 = arith.constant 48 : index
      %185 = vector.load %arg11[%c0_73, %c48_74] : memref<8x128xf32, #tpu.memory_space<vmem>>, vector<8x16xf32>
      tpu.vector_store %arg11[%c0_73, %c48_74], %184 {strides = array<i32>} : memref<8x128xf32, #tpu.memory_space<vmem>>, vector<8x16xf32>,
    } else {
    }
    %96 = vector.extract_strided_slice %11 {offsets = [0, 64], sizes = [8, 16], strides = [1, 1]} : vector<8x128xf32> to vector<8x16xf32>
    %97 = vector.extract_strided_slice %7 {offsets = [0, 64], sizes = [8, 16], strides = [1, 1]} : vector<8x128xf32> to vector<8x16xf32>
    %cst_42 = arith.constant dense<0.000000e+00> : vector<8x8xf32>
    %98 = tpu.matmul %96, %97, %cst_42 {dimension_numbers = #tpu.dot_dimension_numbers<[1], [1], [0], [0], [0, 0, 1, 0], [], []>} : vector<8x16xf32>, vector<8x16xf32>, vector<8x8xf32> -> vector<8x8xf32>
    %cst_43 = arith.constant 0.176776692 : f32
    %99 = vector.broadcast %cst_43 : f32 to vector<8x8xf32>
    %100 = arith.mulf %98, %99 : vector<8x8xf32>
    %cst_44 = arith.constant dense<0xFF800000> : vector<8xf32>
    %101 = vector.multi_reduction <maximumf>, %100, %cst_44 [0] : vector<8x8xf32> to vector<8xf32>
    %102 = vector.shape_cast %101 : vector<8xf32> to vector<1x8xf32>
    %103 = vector.broadcast %102 : vector<1x8xf32> to vector<8x8xf32>
    %104 = arith.subf %100, %103 : vector<8x8xf32>
    %105 = math.exp %104 : vector<8x8xf32>
    %cst_45 = arith.constant dense<0.000000e+00> : vector<8xf32>
    %106 = vector.multi_reduction <add>, %105, %cst_45 [0] : vector<8x8xf32> to vector<8xf32>
    %107 = vector.shape_cast %106 : vector<8xf32> to vector<1x8xf32>
    %108 = tpu.reciprocal %107 : vector<1x8xf32> -> vector<1x8xf32>
    %109 = vector.broadcast %108 : vector<1x8xf32> to vector<8x8xf32>
    %110 = arith.mulf %105, %109 : vector<8x8xf32>
    %111 = vector.extract_strided_slice %9 {offsets = [0, 64], sizes = [8, 16], strides = [1, 1]} : vector<8x128xf32> to vector<8x16xf32>
    %cst_46 = arith.constant dense<0.000000e+00> : vector<8x16xf32>
    %112 = tpu.matmul %110, %111, %cst_46 {dimension_numbers = #tpu.dot_dimension_numbers<[1], [0], [0], [1], [0, 0, 1, 1], [], []>} : vector<8x8xf32>, vector<8x16xf32>, vector<8x16xf32> -> vector<8x16xf32>
    %113 = arith.extui %0 : i1 to i32
    %c0_i32_47 = arith.constant 0 : i32
    %114 = arith.cmpi ne, %113, %c0_i32_47 : i32
    scf.if %114 {
      %c0_72 = arith.constant 0 : index
      %c64 = arith.constant 64 : index
      %183 = vector.load %arg11[%c0_72, %c64] : memref<8x128xf32, #tpu.memory_space<vmem>>, vector<8x16xf32>
      tpu.vector_store %arg11[%c0_72, %c64], %112 {strides = array<i32>} : memref<8x128xf32, #tpu.memory_space<vmem>>, vector<8x16xf32>,
    } else {
    }
    %115 = arith.extui %1 : i1 to i32
    %c0_i32_48 = arith.constant 0 : i32
    %116 = arith.cmpi ne, %115, %c0_i32_48 : i32
    scf.if %116 {
      %c0_72 = arith.constant 0 : index
      %c64 = arith.constant 64 : index
      %183 = vector.load %arg11[%c0_72, %c64] : memref<8x128xf32, #tpu.memory_space<vmem>>, vector<8x16xf32>
      %184 = arith.addf %183, %112 : vector<8x16xf32>
      %c0_73 = arith.constant 0 : index
      %c64_74 = arith.constant 64 : index
      %185 = vector.load %arg11[%c0_73, %c64_74] : memref<8x128xf32, #tpu.memory_space<vmem>>, vector<8x16xf32>
      tpu.vector_store %arg11[%c0_73, %c64_74], %184 {strides = array<i32>} : memref<8x128xf32, #tpu.memory_space<vmem>>, vector<8x16xf32>,
    } else {
    }
    %117 = vector.extract_strided_slice %11 {offsets = [0, 80], sizes = [8, 16], strides = [1, 1]} : vector<8x128xf32> to vector<8x16xf32>
    %118 = vector.extract_strided_slice %7 {offsets = [0, 80], sizes = [8, 16], strides = [1, 1]} : vector<8x128xf32> to vector<8x16xf32>
    %cst_49 = arith.constant dense<0.000000e+00> : vector<8x8xf32>
    %119 = tpu.matmul %117, %118, %cst_49 {dimension_numbers = #tpu.dot_dimension_numbers<[1], [1], [0], [0], [0, 0, 1, 0], [], []>} : vector<8x16xf32>, vector<8x16xf32>, vector<8x8xf32> -> vector<8x8xf32>
    %cst_50 = arith.constant 0.176776692 : f32
    %120 = vector.broadcast %cst_50 : f32 to vector<8x8xf32>
    %121 = arith.mulf %119, %120 : vector<8x8xf32>
    %cst_51 = arith.constant dense<0xFF800000> : vector<8xf32>
    %122 = vector.multi_reduction <maximumf>, %121, %cst_51 [0] : vector<8x8xf32> to vector<8xf32>
    %123 = vector.shape_cast %122 : vector<8xf32> to vector<1x8xf32>
    %124 = vector.broadcast %123 : vector<1x8xf32> to vector<8x8xf32>
    %125 = arith.subf %121, %124 : vector<8x8xf32>
    %126 = math.exp %125 : vector<8x8xf32>
    %cst_52 = arith.constant dense<0.000000e+00> : vector<8xf32>
    %127 = vector.multi_reduction <add>, %126, %cst_52 [0] : vector<8x8xf32> to vector<8xf32>
    %128 = vector.shape_cast %127 : vector<8xf32> to vector<1x8xf32>
    %129 = tpu.reciprocal %128 : vector<1x8xf32> -> vector<1x8xf32>
    %130 = vector.broadcast %129 : vector<1x8xf32> to vector<8x8xf32>
    %131 = arith.mulf %126, %130 : vector<8x8xf32>
    %132 = vector.extract_strided_slice %9 {offsets = [0, 80], sizes = [8, 16], strides = [1, 1]} : vector<8x128xf32> to vector<8x16xf32>
    %cst_53 = arith.constant dense<0.000000e+00> : vector<8x16xf32>
    %133 = tpu.matmul %131, %132, %cst_53 {dimension_numbers = #tpu.dot_dimension_numbers<[1], [0], [0], [1], [0, 0, 1, 1], [], []>} : vector<8x8xf32>, vector<8x16xf32>, vector<8x16xf32> -> vector<8x16xf32>
    %134 = arith.extui %0 : i1 to i32
    %c0_i32_54 = arith.constant 0 : i32
    %135 = arith.cmpi ne, %134, %c0_i32_54 : i32
    scf.if %135 {
      %c0_72 = arith.constant 0 : index
      %c80 = arith.constant 80 : index
      %183 = vector.load %arg11[%c0_72, %c80] : memref<8x128xf32, #tpu.memory_space<vmem>>, vector<8x16xf32>
      tpu.vector_store %arg11[%c0_72, %c80], %133 {strides = array<i32>} : memref<8x128xf32, #tpu.memory_space<vmem>>, vector<8x16xf32>,
    } else {
    }
    %136 = arith.extui %1 : i1 to i32
    %c0_i32_55 = arith.constant 0 : i32
    %137 = arith.cmpi ne, %136, %c0_i32_55 : i32
    scf.if %137 {
      %c0_72 = arith.constant 0 : index
      %c80 = arith.constant 80 : index
      %183 = vector.load %arg11[%c0_72, %c80] : memref<8x128xf32, #tpu.memory_space<vmem>>, vector<8x16xf32>
      %184 = arith.addf %183, %133 : vector<8x16xf32>
      %c0_73 = arith.constant 0 : index
      %c80_74 = arith.constant 80 : index
      %185 = vector.load %arg11[%c0_73, %c80_74] : memref<8x128xf32, #tpu.memory_space<vmem>>, vector<8x16xf32>
      tpu.vector_store %arg11[%c0_73, %c80_74], %184 {strides = array<i32>} : memref<8x128xf32, #tpu.memory_space<vmem>>, vector<8x16xf32>,
    } else {
    }
    %138 = vector.extract_strided_slice %11 {offsets = [0, 96], sizes = [8, 16], strides = [1, 1]} : vector<8x128xf32> to vector<8x16xf32>
    %139 = vector.extract_strided_slice %7 {offsets = [0, 96], sizes = [8, 16], strides = [1, 1]} : vector<8x128xf32> to vector<8x16xf32>
    %cst_56 = arith.constant dense<0.000000e+00> : vector<8x8xf32>
    %140 = tpu.matmul %138, %139, %cst_56 {dimension_numbers = #tpu.dot_dimension_numbers<[1], [1], [0], [0], [0, 0, 1, 0], [], []>} : vector<8x16xf32>, vector<8x16xf32>, vector<8x8xf32> -> vector<8x8xf32>
    %cst_57 = arith.constant 0.176776692 : f32
    %141 = vector.broadcast %cst_57 : f32 to vector<8x8xf32>
    %142 = arith.mulf %140, %141 : vector<8x8xf32>
    %cst_58 = arith.constant dense<0xFF800000> : vector<8xf32>
    %143 = vector.multi_reduction <maximumf>, %142, %cst_58 [0] : vector<8x8xf32> to vector<8xf32>
    %144 = vector.shape_cast %143 : vector<8xf32> to vector<1x8xf32>
    %145 = vector.broadcast %144 : vector<1x8xf32> to vector<8x8xf32>
    %146 = arith.subf %142, %145 : vector<8x8xf32>
    %147 = math.exp %146 : vector<8x8xf32>
    %cst_59 = arith.constant dense<0.000000e+00> : vector<8xf32>
    %148 = vector.multi_reduction <add>, %147, %cst_59 [0] : vector<8x8xf32> to vector<8xf32>
    %149 = vector.shape_cast %148 : vector<8xf32> to vector<1x8xf32>
    %150 = tpu.reciprocal %149 : vector<1x8xf32> -> vector<1x8xf32>
    %151 = vector.broadcast %150 : vector<1x8xf32> to vector<8x8xf32>
    %152 = arith.mulf %147, %151 : vector<8x8xf32>
    %153 = vector.extract_strided_slice %9 {offsets = [0, 96], sizes = [8, 16], strides = [1, 1]} : vector<8x128xf32> to vector<8x16xf32>
    %cst_60 = arith.constant dense<0.000000e+00> : vector<8x16xf32>
    %154 = tpu.matmul %152, %153, %cst_60 {dimension_numbers = #tpu.dot_dimension_numbers<[1], [0], [0], [1], [0, 0, 1, 1], [], []>} : vector<8x8xf32>, vector<8x16xf32>, vector<8x16xf32> -> vector<8x16xf32>
    %155 = arith.extui %0 : i1 to i32
    %c0_i32_61 = arith.constant 0 : i32
    %156 = arith.cmpi ne, %155, %c0_i32_61 : i32
    scf.if %156 {
      %c0_72 = arith.constant 0 : index
      %c96 = arith.constant 96 : index
      %183 = vector.load %arg11[%c0_72, %c96] : memref<8x128xf32, #tpu.memory_space<vmem>>, vector<8x16xf32>
      tpu.vector_store %arg11[%c0_72, %c96], %154 {strides = array<i32>} : memref<8x128xf32, #tpu.memory_space<vmem>>, vector<8x16xf32>,
    } else {
    }
    %157 = arith.extui %1 : i1 to i32
    %c0_i32_62 = arith.constant 0 : i32
    %158 = arith.cmpi ne, %157, %c0_i32_62 : i32
    scf.if %158 {
      %c0_72 = arith.constant 0 : index
      %c96 = arith.constant 96 : index
      %183 = vector.load %arg11[%c0_72, %c96] : memref<8x128xf32, #tpu.memory_space<vmem>>, vector<8x16xf32>
      %184 = arith.addf %183, %154 : vector<8x16xf32>
      %c0_73 = arith.constant 0 : index
      %c96_74 = arith.constant 96 : index
      %185 = vector.load %arg11[%c0_73, %c96_74] : memref<8x128xf32, #tpu.memory_space<vmem>>, vector<8x16xf32>
      tpu.vector_store %arg11[%c0_73, %c96_74], %184 {strides = array<i32>} : memref<8x128xf32, #tpu.memory_space<vmem>>, vector<8x16xf32>,
    } else {
    }
    %159 = vector.extract_strided_slice %11 {offsets = [0, 112], sizes = [8, 16], strides = [1, 1]} : vector<8x128xf32> to vector<8x16xf32>
    %160 = vector.extract_strided_slice %7 {offsets = [0, 112], sizes = [8, 16], strides = [1, 1]} : vector<8x128xf32> to vector<8x16xf32>
    %cst_63 = arith.constant dense<0.000000e+00> : vector<8x8xf32>
    %161 = tpu.matmul %159, %160, %cst_63 {dimension_numbers = #tpu.dot_dimension_numbers<[1], [1], [0], [0], [0, 0, 1, 0], [], []>} : vector<8x16xf32>, vector<8x16xf32>, vector<8x8xf32> -> vector<8x8xf32>
    %cst_64 = arith.constant 0.176776692 : f32
    %162 = vector.broadcast %cst_64 : f32 to vector<8x8xf32>
    %163 = arith.mulf %161, %162 : vector<8x8xf32>
    %cst_65 = arith.constant dense<0xFF800000> : vector<8xf32>
    %164 = vector.multi_reduction <maximumf>, %163, %cst_65 [0] : vector<8x8xf32> to vector<8xf32>
    %165 = vector.shape_cast %164 : vector<8xf32> to vector<1x8xf32>
    %166 = vector.broadcast %165 : vector<1x8xf32> to vector<8x8xf32>
    %167 = arith.subf %163, %166 : vector<8x8xf32>
    %168 = math.exp %167 : vector<8x8xf32>
    %cst_66 = arith.constant dense<0.000000e+00> : vector<8xf32>
    %169 = vector.multi_reduction <add>, %168, %cst_66 [0] : vector<8x8xf32> to vector<8xf32>
    %170 = vector.shape_cast %169 : vector<8xf32> to vector<1x8xf32>
    %171 = tpu.reciprocal %170 : vector<1x8xf32> -> vector<1x8xf32>
    %172 = vector.broadcast %171 : vector<1x8xf32> to vector<8x8xf32>
    %173 = arith.mulf %168, %172 : vector<8x8xf32>
    %174 = vector.extract_strided_slice %9 {offsets = [0, 112], sizes = [8, 16], strides = [1, 1]} : vector<8x128xf32> to vector<8x16xf32>
    %cst_67 = arith.constant dense<0.000000e+00> : vector<8x16xf32>
    %175 = tpu.matmul %173, %174, %cst_67 {dimension_numbers = #tpu.dot_dimension_numbers<[1], [0], [0], [1], [0, 0, 1, 1], [], []>} : vector<8x8xf32>, vector<8x16xf32>, vector<8x16xf32> -> vector<8x16xf32>
    %176 = arith.extui %0 : i1 to i32
    %c0_i32_68 = arith.constant 0 : i32
    %177 = arith.cmpi ne, %176, %c0_i32_68 : i32
    scf.if %177 {
      %c0_72 = arith.constant 0 : index
      %c112 = arith.constant 112 : index
      %183 = vector.load %arg11[%c0_72, %c112] : memref<8x128xf32, #tpu.memory_space<vmem>>, vector<8x16xf32>
      tpu.vector_store %arg11[%c0_72, %c112], %175 {strides = array<i32>} : memref<8x128xf32, #tpu.memory_space<vmem>>, vector<8x16xf32>,
    } else {
    }
    %178 = arith.extui %1 : i1 to i32
    %c0_i32_69 = arith.constant 0 : i32
    %179 = arith.cmpi ne, %178, %c0_i32_69 : i32
    scf.if %179 {
      %c0_72 = arith.constant 0 : index
      %c112 = arith.constant 112 : index
      %183 = vector.load %arg11[%c0_72, %c112] : memref<8x128xf32, #tpu.memory_space<vmem>>, vector<8x16xf32>
      %184 = arith.addf %183, %175 : vector<8x16xf32>
      %c0_73 = arith.constant 0 : index
      %c112_74 = arith.constant 112 : index
      %185 = vector.load %arg11[%c0_73, %c112_74] : memref<8x128xf32, #tpu.memory_space<vmem>>, vector<8x16xf32>
      tpu.vector_store %arg11[%c0_73, %c112_74], %184 {strides = array<i32>} : memref<8x128xf32, #tpu.memory_space<vmem>>, vector<8x16xf32>,
    } else {
    }
    %c0_i32_70 = arith.constant 0 : i32
    %180 = arith.cmpi eq, %arg1, %c0_i32_70 : i32
    %181 = arith.extui %180 : i1 to i32
    %c0_i32_71 = arith.constant 0 : i32
    %182 = arith.cmpi ne, %181, %c0_i32_71 : i32
    scf.if %182 {
      %c0_72 = arith.constant 0 : index
      %c0_73 = arith.constant 0 : index
      %183 = vector.load %arg11[%c0_72, %c0_73] : memref<8x128xf32, #tpu.memory_space<vmem>>, vector<8x128xf32>
      %c0_74 = arith.constant 0 : index
      %c0_75 = arith.constant 0 : index
      %184 = vector.load %arg8[%c0_74, %c0_75] : memref<128x32xf32, #tpu.memory_space<vmem>>, vector<128x32xf32>
      %cst_76 = arith.constant dense<0.000000e+00> : vector<8x32xf32>
      %185 = tpu.matmul %183, %184, %cst_76 {dimension_numbers = #tpu.dot_dimension_numbers<[1], [0], [0], [1], [0, 0, 1, 1], [], []>} : vector<8x128xf32>, vector<128x32xf32>, vector<8x32xf32> -> vector<8x32xf32>
      %c0_77 = arith.constant 0 : index
      %c0_78 = arith.constant 0 : index
      %186 = vector.load %arg9[%c0_77, %c0_78] : memref<1x32xf32, #tpu.memory_space<vmem>>, vector<1x32xf32>
      %187 = vector.broadcast %186 : vector<1x32xf32> to vector<8x32xf32>
      %188 = arith.addf %185, %187 : vector<8x32xf32>
      %c0_79 = arith.constant 0 : index
      %c0_80 = arith.constant 0 : index
      %c0_81 = arith.constant 0 : index
      %189 = vector.load %arg2[%c0_79, %c0_80, %c0_81] : memref<1x8x32xf32, #tpu.memory_space<vmem>>, vector<1x8x32xf32>
      %190 = vector.shape_cast %189 : vector<1x8x32xf32> to vector<8x32xf32>
      %191 = arith.addf %188, %190 : vector<8x32xf32>
      %192 = vector.shape_cast %191 : vector<8x32xf32> to vector<1x8x32xf32>
      %c0_82 = arith.constant 0 : index
      %c0_83 = arith.constant 0 : index
      %c0_84 = arith.constant 0 : index
      %193 = vector.load %arg10[%c0_82, %c0_83, %c0_84] : memref<1x8x32xf32, #tpu.memory_space<vmem>>, vector<1x8x32xf32>
      tpu.vector_store %arg10[%c0_82, %c0_83, %c0_84], %192 {strides = array<i32>} : memref<1x8x32xf32, #tpu.memory_space<vmem>>, vector<1x8x32xf32>,
    } else {
    }
    return
  }
  func.func @transform_0(%arg0: i32, %arg1: i32) -> (i32, i32, i32) {
    %c0_i32 = arith.constant 0 : i32
    %c0_i32_0 = arith.constant 0 : i32
    %c0_i32_1 = arith.constant 0 : i32
    return %arg0, %c0_i32, %c0_i32_0 : i32, i32, i32
  }
  func.func @transform_1(%arg0: i32, %arg1: i32) -> (i32, i32, i32) {
    %c0_i32 = arith.constant 0 : i32
    %c0_i32_0 = arith.constant 0 : i32
    %c0_i32_1 = arith.constant 0 : i32
    return %arg0, %c0_i32, %c0_i32_0 : i32, i32, i32
  }
  func.func @transform_2(%arg0: i32, %arg1: i32) -> (i32, i32, i32) {
    %c0_i32 = arith.constant 0 : i32
    %c0_i32_0 = arith.constant 0 : i32
    return %arg0, %arg1, %c0_i32 : i32, i32, i32
  }
  func.func @transform_3(%arg0: i32, %arg1: i32) -> (i32, i32, i32) {
    %c0_i32 = arith.constant 0 : i32
    %c0_i32_0 = arith.constant 0 : i32
    return %arg0, %arg1, %c0_i32 : i32, i32, i32
  }
  func.func @transform_4(%arg0: i32, %arg1: i32) -> (i32, i32) {
    %c0_i32 = arith.constant 0 : i32
    %c0_i32_0 = arith.constant 0 : i32
    %c0_i32_1 = arith.constant 0 : i32
    return %c0_i32, %c0_i32_0 : i32, i32
  }
  func.func @transform_5(%arg0: i32, %arg1: i32) -> (i32, i32) {
    %c0_i32 = arith.constant 0 : i32
    %c0_i32_0 = arith.constant 0 : i32
    %c0_i32_1 = arith.constant 0 : i32
    return %c0_i32, %c0_i32_0 : i32, i32
  }
  func.func @transform_6(%arg0: i32, %arg1: i32) -> (i32, i32) {
    %c0_i32 = arith.constant 0 : i32
    %c0_i32_0 = arith.constant 0 : i32
    %c0_i32_1 = arith.constant 0 : i32
    return %c0_i32, %c0_i32_0 : i32, i32
  }
  func.func @transform_7(%arg0: i32, %arg1: i32) -> (i32, i32) {
    %c0_i32 = arith.constant 0 : i32
    %c0_i32_0 = arith.constant 0 : i32
    %c0_i32_1 = arith.constant 0 : i32
    return %c0_i32, %c0_i32_0 : i32, i32
  }
  func.func @transform_8(%arg0: i32, %arg1: i32) -> (i32, i32, i32) {
    %c0_i32 = arith.constant 0 : i32
    %c0_i32_0 = arith.constant 0 : i32
    %c0_i32_1 = arith.constant 0 : i32
    return %arg0, %c0_i32, %c0_i32_0 : i32, i32, i32
  }
}

</mosaic_0001>

<llo_original>
// kernel: tpu_custom_call.1
$region0: #{tpu_custom_call.1}
  #allocation0 [shape = 'u32[]', space=smem, size = 0x4, offset = 0x4, fixed_abs, tag = 'smem constant byte address 0x4 - core index']
  #allocation1 [shape = 'u32[72,128]{1,0:T(1,128)}', space=vmem, size = 0x9000, scoped, tag = 'internal scratch']
  #allocation2 [shape = 'f32[8,128]{1,0:T(8,128)}', space=vmem, size = 0x1000, scoped, tag = 'scratch operand']
  %s0 = inlined_call_operand.vmem [shape: f32[2,8,32], index: 0, kind: input, shape index: {}]
  %s1 = inlined_call_operand.vmem [shape: f32[2,8,128], index: 1, kind: input, shape index: {}]
  %s2 = inlined_call_operand.vmem [shape: f32[2,8,32], index: 2, kind: input, shape index: {}]
  %s3 = inlined_call_operand.vmem [shape: f32[2,8,32], index: 3, kind: input, shape index: {}]
  %s4 = inlined_call_operand.vmem [shape: f32[32,128], index: 4, kind: input, shape index: {}]
  %s5 = inlined_call_operand.vmem [shape: f32[32,128], index: 5, kind: input, shape index: {}]
  %s6 = inlined_call_operand.vmem [shape: f32[128,32], index: 6, kind: input, shape index: {}]
  %s7 = inlined_call_operand.vmem [shape: f32[1,32], index: 7, kind: input, shape index: {}]
  %s8 = inlined_call_operand.hbm [shape: f32[2,8,32], index: 8, kind: output, shape index: {}]
  %s9 = sld [smem:[#allocation0]]
  $region133: #{tpu_custom_call.1} parent=0
    _
  %s11 = ssub.s32 1, %s9
  %s12 = scalar_select 0, %s11, %s9
  $region1: #{tpu_custom_call.1} parent=0
    #allocation3 [shape = 'u8[8192]{0}', space=vmem, size = 0x2000, scoped, tag = 'output window, operand 0']
    #allocation4 [shape = 's32[2]{0}', space=sflag, size = 0x8, scoped, tag = 'scoped memory for tpu_custom_call.1']
    %13 = vsyncpa [#allocation4], 0
    %s14 = scalar_lea.sflag [#allocation4], 1
    %15 = vsyncpa %s14, 0
    loop: start=0, step=1, limit=4
    $region2: #{tpu_custom_call.1} parent=1 // loop_pre_header
      _
    $region3: #{tpu_custom_call.1} parent=1 // loop_header
      %s17 = sphi 0, %s21
      %p18 = scmp.ge.s32.totalorder %s17, 4
      %s24 = sphi 0, %s36
      %s25 = sphi 0, %s32
      %s26 = sphi 0, %s24
      %s27 = sphi 0, %s25
      %s28 = sphi 0, %s26
      %s29 = sphi 0, %s27
      %s39 = sphi 0, %s41
      %s42 = sphi 0, %s39
      %s43 = sphi 0, %s42
      %s59 = sphi 0, %s43
      %s65 = sphi 0, %s67
      %s68 = sphi 0, %s65
      %s69 = sphi 0, %s68
      %s85 = sphi 0, %s69
      %s93 = sphi 0, %s95
      %s96 = sphi 0, %s93
      %s97 = sphi 0, %s96
      %s113 = sphi 0, %s97
      %s121 = sphi 0, %s123
      %s124 = sphi 0, %s121
      %s125 = sphi 0, %s124
      %s141 = sphi 0, %s125
      %s145 = sphi 0, %s145
      %s147 = sphi 0, %s145
      %s148 = sphi 0, %s147
      %s162 = sphi 0, %s148
      %s166 = sphi 0, %s166
      %s168 = sphi 0, %s166
      %s169 = sphi 0, %s168
      %s183 = sphi 0, %s169
      %s187 = sphi 0, %s187
      %s189 = sphi 0, %s187
      %s190 = sphi 0, %s189
      %s204 = sphi 0, %s190
      %s208 = sphi 0, %s208
      %s210 = sphi 0, %s208
      %s211 = sphi 0, %s210
      %s225 = sphi 0, %s211
      %s231 = sphi 0, %s233
      %s234 = sphi 0, %s231
      %s235 = sphi 0, %s234
      %s251 = sphi 0, %s235
    $region4: #{tpu_custom_call.1} parent=1 // loop_header_branch
      %20 = sbr.rel (%p18) target = $region8
    $region5: #{tpu_custom_call.1} parent=1 // loop_body
      %s22 = ssub.s32 %s17, 1
      %s23 = ssub.s32 %s17, 2
      %s30 = sadd.s32 1, %s25
      %p31 = scmp.ge.s32.totalorder %s30, 1
      %s32 = scalar_select %p31, 0, %s30
      %s33 = sadd.s32 1, %s24
      %s34 = scalar_select %p31, %s33, %s24
      %p35 = scmp.ge.s32.totalorder %s34, 2
      %s36 = scalar_select %p35, 0, %s34
      %s37 = ssub.s32 %s24, %s36
      %p38 = scmp.eq.s32.totalorder %s37, 0
      %s40 = sadd.s32 %s39, 1
      %s41 = scalar_select %p38, %s39, %s40
      %p44 = pneg %p38
      %p45 = scmp.eq.s32.totalorder %s17, 1
      %p46 = por %p44, %p45
      %p47 = scmp.ne.s32.totalorder %s39, %s42
      %p48 = scmp.eq.s32.totalorder %s17, 0
      %p49 = por %p47, %p48
      %p50 = scmp.ne.s32.totalorder %s39, %s42
      %p51 = scmp.eq.s32.totalorder %s22, 1
      %p52 = por %p50, %p51
      %p53 = scmp.ne.s32.totalorder %s42, %s43
      %p54 = scmp.eq.s32.totalorder %s22, 0
      %p55 = por %p53, %p54
      %p56 = scmp.ne.s32.totalorder %s42, %s43
      %p57 = scmp.eq.s32.totalorder %s23, 1
      %p58 = por %p56, %p57
      %p60 = scmp.ne.s32.totalorder %s43, %s59
      %p61 = scmp.eq.s32.totalorder %s23, 0
      %p62 = por %p60, %p61
      %s63 = ssub.s32 %s24, %s36
      %p64 = scmp.eq.s32.totalorder %s63, 0
      %s66 = sadd.s32 %s65, 1
      %s67 = scalar_select %p64, %s65, %s66
      %p70 = pneg %p64
      %p71 = scmp.eq.s32.totalorder %s17, 1
      %p72 = por %p70, %p71
      %p73 = scmp.ne.s32.totalorder %s65, %s68
      %p74 = scmp.eq.s32.totalorder %s17, 0
      %p75 = por %p73, %p74
      %p76 = scmp.ne.s32.totalorder %s65, %s68
      %p77 = scmp.eq.s32.totalorder %s22, 1
      %p78 = por %p76, %p77
      %p79 = scmp.ne.s32.totalorder %s68, %s69
      %p80 = scmp.eq.s32.totalorder %s22, 0
      %p81 = por %p79, %p80
      %p82 = scmp.ne.s32.totalorder %s68, %s69
      %p83 = scmp.eq.s32.totalorder %s23, 1
      %p84 = por %p82, %p83
      %p86 = scmp.ne.s32.totalorder %s69, %s85
      %p87 = scmp.eq.s32.totalorder %s23, 0
      %p88 = por %p86, %p87
      %s89 = ssub.s32 %s24, %s36
      %s90 = ssub.s32 %s25, %s32
      %s91 = sor.u32 %s89, %s90
      %p92 = scmp.eq.s32.totalorder %s91, 0
      %s94 = sadd.s32 %s93, 1
      %s95 = scalar_select %p92, %s93, %s94
      %p98 = pneg %p92
      %p99 = scmp.eq.s32.totalorder %s17, 1
      %p100 = por %p98, %p99
      %p101 = scmp.ne.s32.totalorder %s93, %s96
      %p102 = scmp.eq.s32.totalorder %s17, 0
      %p103 = por %p101, %p102
      %p104 = scmp.ne.s32.totalorder %s93, %s96
      %p105 = scmp.eq.s32.totalorder %s22, 1
      %p106 = por %p104, %p105
      %p107 = scmp.ne.s32.totalorder %s96, %s97
      %p108 = scmp.eq.s32.totalorder %s22, 0
      %p109 = por %p107, %p108
      %p110 = scmp.ne.s32.totalorder %s96, %s97
      %p111 = scmp.eq.s32.totalorder %s23, 1
      %p112 = por %p110, %p111
      %p114 = scmp.ne.s32.totalorder %s97, %s113
      %p115 = scmp.eq.s32.totalorder %s23, 0
      %p116 = por %p114, %p115
      %s117 = ssub.s32 %s24, %s36
      %s118 = ssub.s32 %s25, %s32
      %s119 = sor.u32 %s117, %s118
      %p120 = scmp.eq.s32.totalorder %s119, 0
      %s122 = sadd.s32 %s121, 1
      %s123 = scalar_select %p120, %s121, %s122
      %p126 = pneg %p120
      %p127 = scmp.eq.s32.totalorder %s17, 1
      %p128 = por %p126, %p127
      %p129 = scmp.ne.s32.totalorder %s121, %s124
      %p130 = scmp.eq.s32.totalorder %s17, 0
      %p131 = por %p129, %p130
      %p132 = scmp.ne.s32.totalorder %s121, %s124
      %p133 = scmp.eq.s32.totalorder %s22, 1
      %p134 = por %p132, %p133
      %p135 = scmp.ne.s32.totalorder %s124, %s125
      %p136 = scmp.eq.s32.totalorder %s22, 0
      %p137 = por %p135, %p136
      %p138 = scmp.ne.s32.totalorder %s124, %s125
      %p139 = scmp.eq.s32.totalorder %s23, 1
      %p140 = por %p138, %p139
      %p142 = scmp.ne.s32.totalorder %s125, %s141
      %p143 = scmp.eq.s32.totalorder %s23, 0
      %p144 = por %p142, %p143
      %s146 = sadd.s32 %s145, 1
      %p149 = scmp.eq.s32.totalorder %s17, 1
      %p150 = scmp.ne.s32.totalorder %s145, %s147
      %p151 = scmp.eq.s32.totalorder %s17, 0
      %p152 = por %p150, %p151
      %p153 = scmp.ne.s32.totalorder %s145, %s147
      %p154 = scmp.eq.s32.totalorder %s22, 1
      %p155 = por %p153, %p154
      %p156 = scmp.ne.s32.totalorder %s147, %s148
      %p157 = scmp.eq.s32.totalorder %s22, 0
      %p158 = por %p156, %p157
      %p159 = scmp.ne.s32.totalorder %s147, %s148
      %p160 = scmp.eq.s32.totalorder %s23, 1
      %p161 = por %p159, %p160
      %p163 = scmp.ne.s32.totalorder %s148, %s162
      %p164 = scmp.eq.s32.totalorder %s23, 0
      %p165 = por %p163, %p164
      %s167 = sadd.s32 %s166, 1
      %p170 = scmp.eq.s32.totalorder %s17, 1
      %p171 = scmp.ne.s32.totalorder %s166, %s168
      %p172 = scmp.eq.s32.totalorder %s17, 0
      %p173 = por %p171, %p172
      %p174 = scmp.ne.s32.totalorder %s166, %s168
      %p175 = scmp.eq.s32.totalorder %s22, 1
      %p176 = por %p174, %p175
      %p177 = scmp.ne.s32.totalorder %s168, %s169
      %p178 = scmp.eq.s32.totalorder %s22, 0
      %p179 = por %p177, %p178
      %p180 = scmp.ne.s32.totalorder %s168, %s169
      %p181 = scmp.eq.s32.totalorder %s23, 1
      %p182 = por %p180, %p181
      %p184 = scmp.ne.s32.totalorder %s169, %s183
      %p185 = scmp.eq.s32.totalorder %s23, 0
      %p186 = por %p184, %p185
      %s188 = sadd.s32 %s187, 1
      %p191 = scmp.eq.s32.totalorder %s17, 1
      %p192 = scmp.ne.s32.totalorder %s187, %s189
      %p193 = scmp.eq.s32.totalorder %s17, 0
      %p194 = por %p192, %p193
      %p195 = scmp.ne.s32.totalorder %s187, %s189
      %p196 = scmp.eq.s32.totalorder %s22, 1
      %p197 = por %p195, %p196
      %p198 = scmp.ne.s32.totalorder %s189, %s190
      %p199 = scmp.eq.s32.totalorder %s22, 0
      %p200 = por %p198, %p199
      %p201 = scmp.ne.s32.totalorder %s189, %s190
      %p202 = scmp.eq.s32.totalorder %s23, 1
      %p203 = por %p201, %p202
      %p205 = scmp.ne.s32.totalorder %s190, %s204
      %p206 = scmp.eq.s32.totalorder %s23, 0
      %p207 = por %p205, %p206
      %s209 = sadd.s32 %s208, 1
      %p212 = scmp.eq.s32.totalorder %s17, 1
      %p213 = scmp.ne.s32.totalorder %s208, %s210
      %p214 = scmp.eq.s32.totalorder %s17, 0
      %p215 = por %p213, %p214
      %p216 = scmp.ne.s32.totalorder %s208, %s210
      %p217 = scmp.eq.s32.totalorder %s22, 1
      %p218 = por %p216, %p217
      %p219 = scmp.ne.s32.totalorder %s210, %s211
      %p220 = scmp.eq.s32.totalorder %s22, 0
      %p221 = por %p219, %p220
      %p222 = scmp.ne.s32.totalorder %s210, %s211
      %p223 = scmp.eq.s32.totalorder %s23, 1
      %p224 = por %p222, %p223
      %p226 = scmp.ne.s32.totalorder %s211, %s225
      %p227 = scmp.eq.s32.totalorder %s23, 0
      %p228 = por %p226, %p227
      %s229 = ssub.s32 %s24, %s36
      %p230 = scmp.eq.s32.totalorder %s229, 0
      %s232 = sadd.s32 %s231, 1
      %s233 = scalar_select %p230, %s231, %s232
      %p236 = pneg %p230
      %p237 = scmp.eq.s32.totalorder %s17, 1
      %p238 = por %p236, %p237
      %p239 = scmp.ne.s32.totalorder %s231, %s234
      %p240 = scmp.eq.s32.totalorder %s17, 0
      %p241 = por %p239, %p240
      %p242 = scmp.ne.s32.totalorder %s231, %s234
      %p243 = scmp.eq.s32.totalorder %s22, 1
      %p244 = por %p242, %p243
      %p245 = scmp.ne.s32.totalorder %s234, %s235
      %p246 = scmp.eq.s32.totalorder %s22, 0
      %p247 = por %p245, %p246
      %p248 = scmp.ne.s32.totalorder %s234, %s235
      %p249 = scmp.eq.s32.totalorder %s23, 1
      %p250 = por %p248, %p249
      %p252 = scmp.ne.s32.totalorder %s235, %s251
      %p253 = scmp.eq.s32.totalorder %s23, 0
      %p254 = por %p252, %p253
      %p255 = scmp.le.s32.totalorder 1, %s17
      %p256 = scmp.lt.s32.totalorder %s17, 3
      %p257 = pnand %p255, %p256
      %p258 = pneg %p257
      // Predicated region
      $region9: #{tpu_custom_call.1} parent=5 // pred_check
        _
      $region10: #{tpu_custom_call.1} parent=5 // pred_check_branch
        %260 = sbr.rel (%p257) target = $region12
      $region11: #{tpu_custom_call.1} parent=5 // pred_region
        %s261 = ssub.s32 %s17, 1
        // Predicated region
        $region13: #{tpu_custom_call.1} parent=11 // pred_check
          %p262 = pneg %p158
        $region14: #{tpu_custom_call.1} parent=11 // pred_check_branch
          %264 = sbr.rel (%p262) target = $region16
        $region15: #{tpu_custom_call.1} parent=11 // pred_region
          _
        $region16: #{tpu_custom_call.1} parent=11 // pred_fallthru
          _
        // Predicated region
        $region17: #{tpu_custom_call.1} parent=11 // pred_check
          %p265 = pneg %p179
        $region18: #{tpu_custom_call.1} parent=11 // pred_check_branch
          %267 = sbr.rel (%p265) target = $region20
        $region19: #{tpu_custom_call.1} parent=11 // pred_region
          _
        $region20: #{tpu_custom_call.1} parent=11 // pred_fallthru
          _
        // Predicated region
        $region21: #{tpu_custom_call.1} parent=11 // pred_check
          %p268 = pneg %p200
        $region22: #{tpu_custom_call.1} parent=11 // pred_check_branch
          %270 = sbr.rel (%p268) target = $region24
        $region23: #{tpu_custom_call.1} parent=11 // pred_region
          _
        $region24: #{tpu_custom_call.1} parent=11 // pred_fallthru
          _
        // Predicated region
        $region25: #{tpu_custom_call.1} parent=11 // pred_check
          %p271 = pneg %p221
        $region26: #{tpu_custom_call.1} parent=11 // pred_check_branch
          %273 = sbr.rel (%p271) target = $region28
        $region27: #{tpu_custom_call.1} parent=11 // pred_region
          _
        $region28: #{tpu_custom_call.1} parent=11 // pred_fallthru
          _
      $region12: #{tpu_custom_call.1} parent=5 // pred_fallthru
        _
      %p274 = scmp.lt.s32.totalorder %s17, 2
      // Predicated region
      $region29: #{tpu_custom_call.1} parent=5 // pred_check
        %p275 = pneg %p274
      $region30: #{tpu_custom_call.1} parent=5 // pred_check_branch
        %277 = sbr.rel (%p275) target = $region32
      $region31: #{tpu_custom_call.1} parent=5 // pred_region
        // Predicated region
        $region33: #{tpu_custom_call.1} parent=31 // pred_check
          %p278 = pneg %p49
        $region34: #{tpu_custom_call.1} parent=31 // pred_check_branch
          %280 = sbr.rel (%p278) target = $region36
        $region35: #{tpu_custom_call.1} parent=31 // pred_region
          %p281 = scmp.lt.s32.totalorder %s24, 1
          %s282 = scalar_select %p281, %s24, 1
          %s283 = smul.addr %s282, 8
          %s284 = scalar_lea.vmem %s0, %s283
        $region36: #{tpu_custom_call.1} parent=31 // pred_fallthru
          _
        // Predicated region
        $region37: #{tpu_custom_call.1} parent=31 // pred_check
          %p285 = pneg %p75
        $region38: #{tpu_custom_call.1} parent=31 // pred_check_branch
          %287 = sbr.rel (%p285) target = $region40
        $region39: #{tpu_custom_call.1} parent=31 // pred_region
          %p288 = scmp.lt.s32.totalorder %s24, 1
          %s289 = scalar_select %p288, %s24, 1
          %s290 = smul.addr %s289, 8
          %s291 = scalar_lea.vmem %s1, %s290
        $region40: #{tpu_custom_call.1} parent=31 // pred_fallthru
          _
        // Predicated region
        $region41: #{tpu_custom_call.1} parent=31 // pred_check
          %p292 = pneg %p103
        $region42: #{tpu_custom_call.1} parent=31 // pred_check_branch
          %294 = sbr.rel (%p292) target = $region44
        $region43: #{tpu_custom_call.1} parent=31 // pred_region
          %p295 = scmp.lt.s32.totalorder %s24, 1
          %s296 = scalar_select %p295, %s24, 1
          %p297 = scmp.lt.s32.totalorder %s25, 0
          %s298 = scalar_select %p297, %s25, 0
          %s299 = sadd.s32 %s298, %s296
          %s300 = smul.addr %s299, 8
          %s301 = scalar_lea.vmem %s2, %s300
        $region44: #{tpu_custom_call.1} parent=31 // pred_fallthru
          _
        // Predicated region
        $region45: #{tpu_custom_call.1} parent=31 // pred_check
          %p302 = pneg %p131
        $region46: #{tpu_custom_call.1} parent=31 // pred_check_branch
          %304 = sbr.rel (%p302) target = $region48
        $region47: #{tpu_custom_call.1} parent=31 // pred_region
          %p305 = scmp.lt.s32.totalorder %s24, 1
          %s306 = scalar_select %p305, %s24, 1
          %p307 = scmp.lt.s32.totalorder %s25, 0
          %s308 = scalar_select %p307, %s25, 0
          %s309 = sadd.s32 %s308, %s306
          %s310 = smul.addr %s309, 8
          %s311 = scalar_lea.vmem %s3, %s310
        $region48: #{tpu_custom_call.1} parent=31 // pred_fallthru
          _
      $region32: #{tpu_custom_call.1} parent=5 // pred_fallthru
        _
      %p312 = scmp.le.s32.totalorder 1, %s17
      %p313 = scmp.lt.s32.totalorder %s17, 3
      %p314 = pnand %p312, %p313
      %p315 = pneg %p314
      // Predicated region
      $region49: #{tpu_custom_call.1} parent=5 // pred_check
        _
      $region50: #{tpu_custom_call.1} parent=5 // pred_check_branch
        %317 = sbr.rel (%p314) target = $region52
      $region51: #{tpu_custom_call.1} parent=5 // pred_region
        %s318 = ssub.s32 %s17, 1
        %p319 = scmp.lt.s32.totalorder %s26, 1
        %s320 = scalar_select %p319, %s26, 1
        %s321 = smul.addr %s320, 8
        %s322 = scalar_lea.vmem %s0, %s321
        %p323 = pneg %p55
        %p324 = pneg %p52
        %p325 = scmp.lt.s32.totalorder %s26, 1
        %s326 = scalar_select %p325, %s26, 1
        %s327 = smul.addr %s326, 8
        %s328 = scalar_lea.vmem %s1, %s327
        %p329 = pneg %p81
        %p330 = pneg %p78
        %p331 = scmp.lt.s32.totalorder %s26, 1
        %s332 = scalar_select %p331, %s26, 1
        %p333 = scmp.lt.s32.totalorder %s27, 0
        %s334 = scalar_select %p333, %s27, 0
        %s335 = sadd.s32 %s334, %s332
        %s336 = smul.addr %s335, 8
        %s337 = scalar_lea.vmem %s2, %s336
        %p338 = pneg %p109
        %p339 = pneg %p106
        %p340 = scmp.lt.s32.totalorder %s26, 1
        %s341 = scalar_select %p340, %s26, 1
        %p342 = scmp.lt.s32.totalorder %s27, 0
        %s343 = scalar_select %p342, %s27, 0
        %s344 = sadd.s32 %s343, %s341
        %s345 = smul.addr %s344, 8
        %s346 = scalar_lea.vmem %s3, %s345
        %p347 = pneg %p137
        %p348 = pneg %p134
        %p349 = pneg %p158
        %p350 = pneg %p155
        %p351 = pneg %p179
        %p352 = pneg %p176
        %p353 = pneg %p200
        %p354 = pneg %p197
        %p355 = pneg %p221
        %p356 = pneg %p218
        %p357 = pneg %p247
        %p358 = pneg %p244
        %s359 = sand.u32 %s234, 1
        %s360 = scalar_lea.sflag [#allocation4], %s359
        %s361 = sand.u32 %s234, 1
        %s362 = smul.addr %s361, 8
        %s363 = scalar_lea.vmem [#allocation3], %s362
        %p364 = scmp.lt.s32.totalorder %s26, 1
        %s365 = scalar_select %p364, %s26, 1
        %s366 = smul.addr %s365, 8
        %s367 = scalar_lea.vmem %s0, %s366
        %p368 = scmp.lt.s32.totalorder %s26, 1
        %s369 = scalar_select %p368, %s26, 1
        %s370 = smul.addr %s369, 8
        %s371 = scalar_lea.vmem %s1, %s370
        %p372 = scmp.lt.s32.totalorder %s26, 1
        %s373 = scalar_select %p372, %s26, 1
        %p374 = scmp.lt.s32.totalorder %s27, 0
        %s375 = scalar_select %p374, %s27, 0
        %s376 = sadd.s32 %s375, %s373
        %s377 = smul.addr %s376, 8
        %s378 = scalar_lea.vmem %s2, %s377
        %p379 = scmp.lt.s32.totalorder %s26, 1
        %s380 = scalar_select %p379, %s26, 1
        %p381 = scmp.lt.s32.totalorder %s27, 0
        %s382 = scalar_select %p381, %s27, 0
        %s383 = sadd.s32 %s382, %s380
        %s384 = smul.addr %s383, 8
        %s385 = scalar_lea.vmem %s3, %s384
        %p386 = scmp.eq.s32.totalorder %s27, 0
        %p387 = scmp.ne.s32.totalorder %s27, 0
        %v388 = vld [vmem:[%s378] sm:$0xff]
        %v389 = vld [vmem:[%s385] sm:$0xff]
        %v390 = vld [vmem:[%s4] sm:$0xff]
        %v391 = vld [vmem:[%s4 + $0x8] sm:$0xff]
        %v392 = vld [vmem:[%s4 + $0x10] sm:$0xff]
        %v393 = vld [vmem:[%s4 + $0x18] sm:$0xff]
        %vm394 = vcmask 261120
        %v396 = vsel %vm394, %v388, 0
        %398 = vmatpush.msra.mxu0 0.0
        %399 = vmatpush.msra.mxu0 0.0
        %400 = vmatpush.msra.mxu0 0.0
        %401 = vmatpush.msra.mxu0 0.0
        %402 = vmatpush.msra.mxu0 0.0
        %403 = vmatpush.msra.mxu0 0.0
        %404 = vmatpush.msra.mxu0 0.0
        %405 = vmatpush.msra.mxu0 0.0
        %406 = vmatpush.msra.mxu0 0.0
        %407 = vmatpush.msra.mxu0 0.0
        %408 = vmatpush.msra.mxu0 0.0
        %409 = vmatpush.msra.mxu0 0.0
        %410 = vmatpush.msra.mxu0 %v393
        %411 = vmatpush.msra.mxu0 %v392
        %412 = vmatpush.msra.mxu0 %v391
        %413 = vmatpush.msra.mxu0 %v390
        %414 = vmatmul.f32.gmra.mxu0 %v396
        %v415 = vpop.f32.mrf.mxu0
        %v416 = vadd.f32 0.0, %v415
        %417 = vdwg.mxu0
        %v418 = vld [vmem:[%s5] sm:$0xff]
        %v419 = vld [vmem:[%s5 + $0x8] sm:$0xff]
        %v420 = vld [vmem:[%s5 + $0x10] sm:$0xff]
        %v421 = vld [vmem:[%s5 + $0x18] sm:$0xff]
        %v423 = vsel %vm394, %v389, 0
        %425 = vmatpush.msra.mxu0 0.0
        %426 = vmatpush.msra.mxu0 0.0
        %427 = vmatpush.msra.mxu0 0.0
        %428 = vmatpush.msra.mxu0 0.0
        %429 = vmatpush.msra.mxu0 0.0
        %430 = vmatpush.msra.mxu0 0.0
        %431 = vmatpush.msra.mxu0 0.0
        %432 = vmatpush.msra.mxu0 0.0
        %433 = vmatpush.msra.mxu0 0.0
        %434 = vmatpush.msra.mxu0 0.0
        %435 = vmatpush.msra.mxu0 0.0
        %436 = vmatpush.msra.mxu0 0.0
        %437 = vmatpush.msra.mxu0 %v421
        %438 = vmatpush.msra.mxu0 %v420
        %439 = vmatpush.msra.mxu0 %v419
        %440 = vmatpush.msra.mxu0 %v418
        %441 = vmatmul.f32.gmra.mxu0 %v423
        %v442 = vpop.f32.mrf.mxu0
        %v443 = vadd.f32 0.0, %v442
        %444 = vdwg.mxu0
        %v445 = vld [vmem:[%s371] sm:$0xff]
        %vm446 = vcmask 130048
        %v448 = vsel %vm446, %v445, 0
        %v451 = vsel %vm446, %v416, 0
        %453 = vmatpush.xpose.msra.mxu0 0.0
        %454 = vmatpush.xpose.msra.mxu0 0.0
        %455 = vmatpush.xpose.msra.mxu0 0.0
        %456 = vmatpush.xpose.msra.mxu0 0.0
        %457 = vmatpush.xpose.msra.mxu0 0.0
        %458 = vmatpush.xpose.msra.mxu0 0.0
        %459 = vmatpush.xpose.msra.mxu0 0.0
        %460 = vmatpush.xpose.msra.mxu0 0.0
        %461 = vmatpush.xpose.msra.mxu0 0.0
        %462 = vmatpush.xpose.msra.mxu0 0.0
        %463 = vmatpush.xpose.msra.mxu0 0.0
        %464 = vmatpush.xpose.msra.mxu0 0.0
        %465 = vmatpush.xpose.msra.mxu0 0.0
        %466 = vmatpush.xpose.msra.mxu0 0.0
        %467 = vmatpush.xpose.msra.mxu0 0.0
        %468 = vmatpush.xpose.msra.mxu0 %v451
        %469 = vmatmul.f32.gmra.mxu0 %v448
        %v470 = vpop.f32.mrf.mxu0
        %v471 = vadd.f32 0.0, %v470
        %472 = vdwg.mxu0
        %v473 = vmul.f32 %v471, 0.17677669
        %vm474 = vcmask 64512
        %v475 = vsel %vm474, %v473, -inf
        %v476 = vrot.slane %v475, 4
        %v477 = vmax.f32 %v475, %v476
        %v478 = vrot.slane %v477, 2
        %v479 = vmax.f32 %v477, %v478
        %v480 = vrot.slane %v479, 1
        %v481 = vmax.f32 %v479, %v480
        %v482 = vsub.f32 %v473, %v481
        %v483 = vmul.f32 %v482, 1.442695
        %v484 = vpow.pop %v483
        %v485 = vsel %vm474, %v484, 0.0
        %v486 = vrot.slane %v485, 4
        %v487 = vadd.f32 %v485, %v486
        %v488 = vrot.slane %v487, 2
        %v489 = vadd.f32 %v487, %v488
        %v490 = vrot.slane %v489, 1
        %v491 = vadd.f32 %v489, %v490
        %v492 = vrcp.pop %v491
        %v493 = vmul.f32 %v491, %v492
        %v494 = vsub.f32 1.0, %v493
        %v495 = vmul.f32 %v492, %v494
        %v496 = vadd.f32 %v492, %v495
        %vm497 = vweird.f32 %v491
        %vm498 = vweird.f32 %v492
        %vm499 = vmor %vm497, %vm498
        %v500 = vsel %vm499, %v492, %v496
        %v501 = vand.u32 2147483647, %v491
        %vm502 = vcmp.eq.f32.partialorder %v501, 8.507059e+37
        %v503 = vand.u32 %v491, 2147483648
        %v504 = vor.u32 1.1754944e-38, %v503
        %v505 = vsel %vm502, %v504, %v500
        %v506 = vmul.f32 %v484, %v505
        %v508 = vsel %vm474, %v506, 0
        %510 = vmatpush.msra.mxu0 0.0
        %511 = vmatpush.msra.mxu0 0.0
        %512 = vmatpush.msra.mxu0 0.0
        %513 = vmatpush.msra.mxu0 0.0
        %514 = vmatpush.msra.mxu0 0.0
        %515 = vmatpush.msra.mxu0 0.0
        %516 = vmatpush.msra.mxu0 0.0
        %517 = vmatpush.msra.mxu0 0.0
        %518 = vmatpush.msra.mxu0 0.0
        %519 = vmatpush.msra.mxu0 0.0
        %520 = vmatpush.msra.mxu0 0.0
        %521 = vmatpush.msra.mxu0 0.0
        %522 = vmatpush.msra.mxu0 0.0
        %523 = vmatpush.msra.mxu0 0.0
        %524 = vmatpush.msra.mxu0 0.0
        %525 = vmatpush.msra.mxu0 %v443
        %526 = vmatmul.f32.gmra.mxu0 %v508
        %v527 = vpop.f32.mrf.mxu0
        %v528 = vadd.f32 0.0, %v527
        %529 = vdwg.mxu0
        // Predicated region
        $region53: #{tpu_custom_call.1} parent=51 // pred_check
          %p530 = pneg %p386
        $region54: #{tpu_custom_call.1} parent=51 // pred_check_branch
          %532 = sbr.rel (%p530) target = $region56
        $region55: #{tpu_custom_call.1} parent=51 // pred_region
          %533 = vst.msk [vmem:[#allocation2] sm:$0xff] %vm446, %v528
        $region56: #{tpu_custom_call.1} parent=51 // pred_fallthru
          _
        // Predicated region
        $region57: #{tpu_custom_call.1} parent=51 // pred_check
          %p534 = pneg %p387
        $region58: #{tpu_custom_call.1} parent=51 // pred_check_branch
          %536 = sbr.rel (%p534) target = $region60
        $region59: #{tpu_custom_call.1} parent=51 // pred_region
          %v537 = vld [vmem:[#allocation2] sm:$0xff]
          %v538 = vadd.f32 %v537, %v528
          %539 = vst.msk [vmem:[#allocation2] sm:$0xff] %vm446, %v538
        $region60: #{tpu_custom_call.1} parent=51 // pred_fallthru
          _
        %540 = vrot.lane.b32.xlu0 %v445, 112
        %v541 = vpop.permute.xlu0 %540
        %542 = vrot.lane.b32.xlu0 %v416, 112
        %v543 = vpop.permute.xlu0 %542
        %v544 = vsel %vm446, %v541, 0
        %v546 = vsel %vm446, %v543, 0
        %548 = vmatpush.xpose.msra.mxu0 0.0
        %549 = vmatpush.xpose.msra.mxu0 0.0
        %550 = vmatpush.xpose.msra.mxu0 0.0
        %551 = vmatpush.xpose.msra.mxu0 0.0
        %552 = vmatpush.xpose.msra.mxu0 0.0
        %553 = vmatpush.xpose.msra.mxu0 0.0
        %554 = vmatpush.xpose.msra.mxu0 0.0
        %555 = vmatpush.xpose.msra.mxu0 0.0
        %556 = vmatpush.xpose.msra.mxu0 0.0
        %557 = vmatpush.xpose.msra.mxu0 0.0
        %558 = vmatpush.xpose.msra.mxu0 0.0
        %559 = vmatpush.xpose.msra.mxu0 0.0
        %560 = vmatpush.xpose.msra.mxu0 0.0
        %561 = vmatpush.xpose.msra.mxu0 0.0
        %562 = vmatpush.xpose.msra.mxu0 0.0
        %563 = vmatpush.xpose.msra.mxu0 %v546
        %564 = vmatmul.f32.gmra.mxu0 %v544
        %v565 = vpop.f32.mrf.mxu0
        %v566 = vadd.f32 0.0, %v565
        %567 = vdwg.mxu0
        %v568 = vmul.f32 %v566, 0.17677669
        %v569 = vsel %vm474, %v568, -inf
        %v570 = vrot.slane %v569, 4
        %v571 = vmax.f32 %v569, %v570
        %v572 = vrot.slane %v571, 2
        %v573 = vmax.f32 %v571, %v572
        %v574 = vrot.slane %v573, 1
        %v575 = vmax.f32 %v573, %v574
        %v576 = vsub.f32 %v568, %v575
        %v577 = vmul.f32 %v576, 1.442695
        %v578 = vpow.pop %v577
        %v579 = vsel %vm474, %v578, 0.0
        %v580 = vrot.slane %v579, 4
        %v581 = vadd.f32 %v579, %v580
        %v582 = vrot.slane %v581, 2
        %v583 = vadd.f32 %v581, %v582
        %v584 = vrot.slane %v583, 1
        %v585 = vadd.f32 %v583, %v584
        %v586 = vrcp.pop %v585
        %v587 = vmul.f32 %v585, %v586
        %v588 = vsub.f32 1.0, %v587
        %v589 = vmul.f32 %v586, %v588
        %v590 = vadd.f32 %v586, %v589
        %vm591 = vweird.f32 %v585
        %vm592 = vweird.f32 %v586
        %vm593 = vmor %vm591, %vm592
        %v594 = vsel %vm593, %v586, %v590
        %v595 = vand.u32 2147483647, %v585
        %vm596 = vcmp.eq.f32.partialorder %v595, 8.507059e+37
        %v597 = vand.u32 %v585, 2147483648
        %v598 = vor.u32 1.1754944e-38, %v597
        %v599 = vsel %vm596, %v598, %v594
        %v600 = vmul.f32 %v578, %v599
        %602 = vrot.lane.b32.xlu0 %v443, 112
        %v603 = vpop.permute.xlu0 %602
        %v606 = vsel %vm474, %v600, 0
        %608 = vmatpush.msra.mxu0 0.0
        %609 = vmatpush.msra.mxu0 0.0
        %610 = vmatpush.msra.mxu0 0.0
        %611 = vmatpush.msra.mxu0 0.0
        %612 = vmatpush.msra.mxu0 0.0
        %613 = vmatpush.msra.mxu0 0.0
        %614 = vmatpush.msra.mxu0 0.0
        %615 = vmatpush.msra.mxu0 0.0
        %616 = vmatpush.msra.mxu0 0.0
        %617 = vmatpush.msra.mxu0 0.0
        %618 = vmatpush.msra.mxu0 0.0
        %619 = vmatpush.msra.mxu0 0.0
        %620 = vmatpush.msra.mxu0 0.0
        %621 = vmatpush.msra.mxu0 0.0
        %622 = vmatpush.msra.mxu0 0.0
        %623 = vmatpush.msra.mxu0 %v603
        %624 = vmatmul.f32.gmra.mxu0 %v606
        %v625 = vpop.f32.mrf.mxu0
        %v626 = vadd.f32 0.0, %v625
        %627 = vdwg.mxu0
        // Predicated region
        $region61: #{tpu_custom_call.1} parent=51 // pred_check
          %p628 = pneg %p386
        $region62: #{tpu_custom_call.1} parent=51 // pred_check_branch
          %630 = sbr.rel (%p628) target = $region64
        $region63: #{tpu_custom_call.1} parent=51 // pred_region
          %632 = vrot.lane.b32.xlu0 %v626, 16
          %v633 = vpop.permute.xlu0 %632
          %vm635 = vcmask 261248
          %636 = vst.msk [vmem:[#allocation2] sm:$0xff] %vm635, %v633
        $region64: #{tpu_custom_call.1} parent=51 // pred_fallthru
          _
        // Predicated region
        $region65: #{tpu_custom_call.1} parent=51 // pred_check
          %p637 = pneg %p387
        $region66: #{tpu_custom_call.1} parent=51 // pred_check_branch
          %639 = sbr.rel (%p637) target = $region68
        $region67: #{tpu_custom_call.1} parent=51 // pred_region
          %v640 = vld [vmem:[#allocation2] sm:$0xff]
          %642 = vrot.lane.b32.xlu0 %v626, 16
          %v643 = vpop.permute.xlu0 %642
          %v645 = vadd.f32 %v640, %v643
          %vm646 = vcmask 261248
          %647 = vst.msk [vmem:[#allocation2] sm:$0xff] %vm646, %v645
        $region68: #{tpu_custom_call.1} parent=51 // pred_fallthru
          _
        %648 = vrot.lane.b32.xlu0 %v445, 96
        %v649 = vpop.permute.xlu0 %648
        %650 = vrot.lane.b32.xlu0 %v416, 96
        %v651 = vpop.permute.xlu0 %650
        %v652 = vsel %vm446, %v649, 0
        %v654 = vsel %vm446, %v651, 0
        %656 = vmatpush.xpose.msra.mxu0 0.0
        %657 = vmatpush.xpose.msra.mxu0 0.0
        %658 = vmatpush.xpose.msra.mxu0 0.0
        %659 = vmatpush.xpose.msra.mxu0 0.0
        %660 = vmatpush.xpose.msra.mxu0 0.0
        %661 = vmatpush.xpose.msra.mxu0 0.0
        %662 = vmatpush.xpose.msra.mxu0 0.0
        %663 = vmatpush.xpose.msra.mxu0 0.0
        %664 = vmatpush.xpose.msra.mxu0 0.0
        %665 = vmatpush.xpose.msra.mxu0 0.0
        %666 = vmatpush.xpose.msra.mxu0 0.0
        %667 = vmatpush.xpose.msra.mxu0 0.0
        %668 = vmatpush.xpose.msra.mxu0 0.0
        %669 = vmatpush.xpose.msra.mxu0 0.0
        %670 = vmatpush.xpose.msra.mxu0 0.0
        %671 = vmatpush.xpose.msra.mxu0 %v654
        %672 = vmatmul.f32.gmra.mxu0 %v652
        %v673 = vpop.f32.mrf.mxu0
        %v674 = vadd.f32 0.0, %v673
        %675 = vdwg.mxu0
        %v676 = vmul.f32 %v674, 0.17677669
        %v677 = vsel %vm474, %v676, -inf
        %v678 = vrot.slane %v677, 4
        %v679 = vmax.f32 %v677, %v678
        %v680 = vrot.slane %v679, 2
        %v681 = vmax.f32 %v679, %v680
        %v682 = vrot.slane %v681, 1
        %v683 = vmax.f32 %v681, %v682
        %v684 = vsub.f32 %v676, %v683
        %v685 = vmul.f32 %v684, 1.442695
        %v686 = vpow.pop %v685
        %v687 = vsel %vm474, %v686, 0.0
        %v688 = vrot.slane %v687, 4
        %v689 = vadd.f32 %v687, %v688
        %v690 = vrot.slane %v689, 2
        %v691 = vadd.f32 %v689, %v690
        %v692 = vrot.slane %v691, 1
        %v693 = vadd.f32 %v691, %v692
        %v694 = vrcp.pop %v693
        %v695 = vmul.f32 %v693, %v694
        %v696 = vsub.f32 1.0, %v695
        %v697 = vmul.f32 %v694, %v696
        %v698 = vadd.f32 %v694, %v697
        %vm699 = vweird.f32 %v693
        %vm700 = vweird.f32 %v694
        %vm701 = vmor %vm699, %vm700
        %v702 = vsel %vm701, %v694, %v698
        %v703 = vand.u32 2147483647, %v693
        %vm704 = vcmp.eq.f32.partialorder %v703, 8.507059e+37
        %v705 = vand.u32 %v693, 2147483648
        %v706 = vor.u32 1.1754944e-38, %v705
        %v707 = vsel %vm704, %v706, %v702
        %v708 = vmul.f32 %v686, %v707
        %709 = vrot.lane.b32.xlu0 %v443, 96
        %v710 = vpop.permute.xlu0 %709
        %v713 = vsel %vm474, %v708, 0
        %715 = vmatpush.msra.mxu0 0.0
        %716 = vmatpush.msra.mxu0 0.0
        %717 = vmatpush.msra.mxu0 0.0
        %718 = vmatpush.msra.mxu0 0.0
        %719 = vmatpush.msra.mxu0 0.0
        %720 = vmatpush.msra.mxu0 0.0
        %721 = vmatpush.msra.mxu0 0.0
        %722 = vmatpush.msra.mxu0 0.0
        %723 = vmatpush.msra.mxu0 0.0
        %724 = vmatpush.msra.mxu0 0.0
        %725 = vmatpush.msra.mxu0 0.0
        %726 = vmatpush.msra.mxu0 0.0
        %727 = vmatpush.msra.mxu0 0.0
        %728 = vmatpush.msra.mxu0 0.0
        %729 = vmatpush.msra.mxu0 0.0
        %730 = vmatpush.msra.mxu0 %v710
        %731 = vmatmul.f32.gmra.mxu0 %v713
        %v732 = vpop.f32.mrf.mxu0
        %v733 = vadd.f32 0.0, %v732
        %734 = vdwg.mxu0
        // Predicated region
        $region69: #{tpu_custom_call.1} parent=51 // pred_check
          %p735 = pneg %p386
        $region70: #{tpu_custom_call.1} parent=51 // pred_check_branch
          %737 = sbr.rel (%p735) target = $region72
        $region71: #{tpu_custom_call.1} parent=51 // pred_region
          %739 = vrot.lane.b32.xlu0 %v733, 32
          %v740 = vpop.permute.xlu0 %739
          %vm742 = vcmask 392448
          %743 = vst.msk [vmem:[#allocation2] sm:$0xff] %vm742, %v740
        $region72: #{tpu_custom_call.1} parent=51 // pred_fallthru
          _
        // Predicated region
        $region73: #{tpu_custom_call.1} parent=51 // pred_check
          %p744 = pneg %p387
        $region74: #{tpu_custom_call.1} parent=51 // pred_check_branch
          %746 = sbr.rel (%p744) target = $region76
        $region75: #{tpu_custom_call.1} parent=51 // pred_region
          %v747 = vld [vmem:[#allocation2] sm:$0xff]
          %749 = vrot.lane.b32.xlu0 %v733, 32
          %v750 = vpop.permute.xlu0 %749
          %v752 = vadd.f32 %v747, %v750
          %vm753 = vcmask 392448
          %754 = vst.msk [vmem:[#allocation2] sm:$0xff] %vm753, %v752
        $region76: #{tpu_custom_call.1} parent=51 // pred_fallthru
          _
        %755 = vrot.lane.b32.xlu0 %v445, 80
        %v756 = vpop.permute.xlu0 %755
        %757 = vrot.lane.b32.xlu0 %v416, 80
        %v758 = vpop.permute.xlu0 %757
        %v759 = vsel %vm446, %v756, 0
        %v761 = vsel %vm446, %v758, 0
        %763 = vmatpush.xpose.msra.mxu0 0.0
        %764 = vmatpush.xpose.msra.mxu0 0.0
        %765 = vmatpush.xpose.msra.mxu0 0.0
        %766 = vmatpush.xpose.msra.mxu0 0.0
        %767 = vmatpush.xpose.msra.mxu0 0.0
        %768 = vmatpush.xpose.msra.mxu0 0.0
        %769 = vmatpush.xpose.msra.mxu0 0.0
        %770 = vmatpush.xpose.msra.mxu0 0.0
        %771 = vmatpush.xpose.msra.mxu0 0.0
        %772 = vmatpush.xpose.msra.mxu0 0.0
        %773 = vmatpush.xpose.msra.mxu0 0.0
        %774 = vmatpush.xpose.msra.mxu0 0.0
        %775 = vmatpush.xpose.msra.mxu0 0.0
        %776 = vmatpush.xpose.msra.mxu0 0.0
        %777 = vmatpush.xpose.msra.mxu0 0.0
        %778 = vmatpush.xpose.msra.mxu0 %v761
        %779 = vmatmul.f32.gmra.mxu0 %v759
        %v780 = vpop.f32.mrf.mxu0
        %v781 = vadd.f32 0.0, %v780
        %782 = vdwg.mxu0
        %v783 = vmul.f32 %v781, 0.17677669
        %v784 = vsel %vm474, %v783, -inf
        %v785 = vrot.slane %v784, 4
        %v786 = vmax.f32 %v784, %v785
        %v787 = vrot.slane %v786, 2
        %v788 = vmax.f32 %v786, %v787
        %v789 = vrot.slane %v788, 1
        %v790 = vmax.f32 %v788, %v789
        %v791 = vsub.f32 %v783, %v790
        %v792 = vmul.f32 %v791, 1.442695
        %v793 = vpow.pop %v792
        %v794 = vsel %vm474, %v793, 0.0
        %v795 = vrot.slane %v794, 4
        %v796 = vadd.f32 %v794, %v795
        %v797 = vrot.slane %v796, 2
        %v798 = vadd.f32 %v796, %v797
        %v799 = vrot.slane %v798, 1
        %v800 = vadd.f32 %v798, %v799
        %v801 = vrcp.pop %v800
        %v802 = vmul.f32 %v800, %v801
        %v803 = vsub.f32 1.0, %v802
        %v804 = vmul.f32 %v801, %v803
        %v805 = vadd.f32 %v801, %v804
        %vm806 = vweird.f32 %v800
        %vm807 = vweird.f32 %v801
        %vm808 = vmor %vm806, %vm807
        %v809 = vsel %vm808, %v801, %v805
        %v810 = vand.u32 2147483647, %v800
        %vm811 = vcmp.eq.f32.partialorder %v810, 8.507059e+37
        %v812 = vand.u32 %v800, 2147483648
        %v813 = vor.u32 1.1754944e-38, %v812
        %v814 = vsel %vm811, %v813, %v809
        %v815 = vmul.f32 %v793, %v814
        %816 = vrot.lane.b32.xlu0 %v443, 80
        %v817 = vpop.permute.xlu0 %816
        %v820 = vsel %vm474, %v815, 0
        %822 = vmatpush.msra.mxu0 0.0
        %823 = vmatpush.msra.mxu0 0.0
        %824 = vmatpush.msra.mxu0 0.0
        %825 = vmatpush.msra.mxu0 0.0
        %826 = vmatpush.msra.mxu0 0.0
        %827 = vmatpush.msra.mxu0 0.0
        %828 = vmatpush.msra.mxu0 0.0
        %829 = vmatpush.msra.mxu0 0.0
        %830 = vmatpush.msra.mxu0 0.0
        %831 = vmatpush.msra.mxu0 0.0
        %832 = vmatpush.msra.mxu0 0.0
        %833 = vmatpush.msra.mxu0 0.0
        %834 = vmatpush.msra.mxu0 0.0
        %835 = vmatpush.msra.mxu0 0.0
        %836 = vmatpush.msra.mxu0 0.0
        %837 = vmatpush.msra.mxu0 %v817
        %838 = vmatmul.f32.gmra.mxu0 %v820
        %v839 = vpop.f32.mrf.mxu0
        %v840 = vadd.f32 0.0, %v839
        %841 = vdwg.mxu0
        // Predicated region
        $region77: #{tpu_custom_call.1} parent=51 // pred_check
          %p842 = pneg %p386
        $region78: #{tpu_custom_call.1} parent=51 // pred_check_branch
          %844 = sbr.rel (%p842) target = $region80
        $region79: #{tpu_custom_call.1} parent=51 // pred_region
          %846 = vrot.lane.b32.xlu0 %v840, 48
          %v847 = vpop.permute.xlu0 %846
          %vm849 = vcmask 523648
          %850 = vst.msk [vmem:[#allocation2] sm:$0xff] %vm849, %v847
        $region80: #{tpu_custom_call.1} parent=51 // pred_fallthru
          _
        // Predicated region
        $region81: #{tpu_custom_call.1} parent=51 // pred_check
          %p851 = pneg %p387
        $region82: #{tpu_custom_call.1} parent=51 // pred_check_branch
          %853 = sbr.rel (%p851) target = $region84
        $region83: #{tpu_custom_call.1} parent=51 // pred_region
          %v854 = vld [vmem:[#allocation2] sm:$0xff]
          %856 = vrot.lane.b32.xlu0 %v840, 48
          %v857 = vpop.permute.xlu0 %856
          %v859 = vadd.f32 %v854, %v857
          %vm860 = vcmask 523648
          %861 = vst.msk [vmem:[#allocation2] sm:$0xff] %vm860, %v859
        $region84: #{tpu_custom_call.1} parent=51 // pred_fallthru
          _
        %862 = vrot.lane.b32.xlu0 %v445, 64
        %v863 = vpop.permute.xlu0 %862
        %864 = vrot.lane.b32.xlu0 %v416, 64
        %v865 = vpop.permute.xlu0 %864
        %v866 = vsel %vm446, %v863, 0
        %v868 = vsel %vm446, %v865, 0
        %870 = vmatpush.xpose.msra.mxu0 0.0
        %871 = vmatpush.xpose.msra.mxu0 0.0
        %872 = vmatpush.xpose.msra.mxu0 0.0
        %873 = vmatpush.xpose.msra.mxu0 0.0
        %874 = vmatpush.xpose.msra.mxu0 0.0
        %875 = vmatpush.xpose.msra.mxu0 0.0
        %876 = vmatpush.xpose.msra.mxu0 0.0
        %877 = vmatpush.xpose.msra.mxu0 0.0
        %878 = vmatpush.xpose.msra.mxu0 0.0
        %879 = vmatpush.xpose.msra.mxu0 0.0
        %880 = vmatpush.xpose.msra.mxu0 0.0
        %881 = vmatpush.xpose.msra.mxu0 0.0
        %882 = vmatpush.xpose.msra.mxu0 0.0
        %883 = vmatpush.xpose.msra.mxu0 0.0
        %884 = vmatpush.xpose.msra.mxu0 0.0
        %885 = vmatpush.xpose.msra.mxu0 %v868
        %886 = vmatmul.f32.gmra.mxu0 %v866
        %v887 = vpop.f32.mrf.mxu0
        %v888 = vadd.f32 0.0, %v887
        %889 = vdwg.mxu0
        %v890 = vmul.f32 %v888, 0.17677669
        %v891 = vsel %vm474, %v890, -inf
        %v892 = vrot.slane %v891, 4
        %v893 = vmax.f32 %v891, %v892
        %v894 = vrot.slane %v893, 2
        %v895 = vmax.f32 %v893, %v894
        %v896 = vrot.slane %v895, 1
        %v897 = vmax.f32 %v895, %v896
        %v898 = vsub.f32 %v890, %v897
        %v899 = vmul.f32 %v898, 1.442695
        %v900 = vpow.pop %v899
        %v901 = vsel %vm474, %v900, 0.0
        %v902 = vrot.slane %v901, 4
        %v903 = vadd.f32 %v901, %v902
        %v904 = vrot.slane %v903, 2
        %v905 = vadd.f32 %v903, %v904
        %v906 = vrot.slane %v905, 1
        %v907 = vadd.f32 %v905, %v906
        %v908 = vrcp.pop %v907
        %v909 = vmul.f32 %v907, %v908
        %v910 = vsub.f32 1.0, %v909
        %v911 = vmul.f32 %v908, %v910
        %v912 = vadd.f32 %v908, %v911
        %vm913 = vweird.f32 %v907
        %vm914 = vweird.f32 %v908
        %vm915 = vmor %vm913, %vm914
        %v916 = vsel %vm915, %v908, %v912
        %v917 = vand.u32 2147483647, %v907
        %vm918 = vcmp.eq.f32.partialorder %v917, 8.507059e+37
        %v919 = vand.u32 %v907, 2147483648
        %v920 = vor.u32 1.1754944e-38, %v919
        %v921 = vsel %vm918, %v920, %v916
        %v922 = vmul.f32 %v900, %v921
        %923 = vrot.lane.b32.xlu0 %v443, 64
        %v924 = vpop.permute.xlu0 %923
        %v927 = vsel %vm474, %v922, 0
        %929 = vmatpush.msra.mxu0 0.0
        %930 = vmatpush.msra.mxu0 0.0
        %931 = vmatpush.msra.mxu0 0.0
        %932 = vmatpush.msra.mxu0 0.0
        %933 = vmatpush.msra.mxu0 0.0
        %934 = vmatpush.msra.mxu0 0.0
        %935 = vmatpush.msra.mxu0 0.0
        %936 = vmatpush.msra.mxu0 0.0
        %937 = vmatpush.msra.mxu0 0.0
        %938 = vmatpush.msra.mxu0 0.0
        %939 = vmatpush.msra.mxu0 0.0
        %940 = vmatpush.msra.mxu0 0.0
        %941 = vmatpush.msra.mxu0 0.0
        %942 = vmatpush.msra.mxu0 0.0
        %943 = vmatpush.msra.mxu0 0.0
        %944 = vmatpush.msra.mxu0 %v924
        %945 = vmatmul.f32.gmra.mxu0 %v927
        %v946 = vpop.f32.mrf.mxu0
        %v947 = vadd.f32 0.0, %v946
        %948 = vdwg.mxu0
        // Predicated region
        $region85: #{tpu_custom_call.1} parent=51 // pred_check
          %p949 = pneg %p386
        $region86: #{tpu_custom_call.1} parent=51 // pred_check_branch
          %951 = sbr.rel (%p949) target = $region88
        $region87: #{tpu_custom_call.1} parent=51 // pred_region
          %953 = vrot.lane.b32.xlu0 %v947, 64
          %v954 = vpop.permute.xlu0 %953
          %vm956 = vcmask 654848
          %957 = vst.msk [vmem:[#allocation2] sm:$0xff] %vm956, %v954
        $region88: #{tpu_custom_call.1} parent=51 // pred_fallthru
          _
        // Predicated region
        $region89: #{tpu_custom_call.1} parent=51 // pred_check
          %p958 = pneg %p387
        $region90: #{tpu_custom_call.1} parent=51 // pred_check_branch
          %960 = sbr.rel (%p958) target = $region92
        $region91: #{tpu_custom_call.1} parent=51 // pred_region
          %v961 = vld [vmem:[#allocation2] sm:$0xff]
          %963 = vrot.lane.b32.xlu0 %v947, 64
          %v964 = vpop.permute.xlu0 %963
          %v966 = vadd.f32 %v961, %v964
          %vm967 = vcmask 654848
          %968 = vst.msk [vmem:[#allocation2] sm:$0xff] %vm967, %v966
        $region92: #{tpu_custom_call.1} parent=51 // pred_fallthru
          _
        %969 = vrot.lane.b32.xlu0 %v445, 48
        %v970 = vpop.permute.xlu0 %969
        %971 = vrot.lane.b32.xlu0 %v416, 48
        %v972 = vpop.permute.xlu0 %971
        %v973 = vsel %vm446, %v970, 0
        %v975 = vsel %vm446, %v972, 0
        %977 = vmatpush.xpose.msra.mxu0 0.0
        %978 = vmatpush.xpose.msra.mxu0 0.0
        %979 = vmatpush.xpose.msra.mxu0 0.0
        %980 = vmatpush.xpose.msra.mxu0 0.0
        %981 = vmatpush.xpose.msra.mxu0 0.0
        %982 = vmatpush.xpose.msra.mxu0 0.0
        %983 = vmatpush.xpose.msra.mxu0 0.0
        %984 = vmatpush.xpose.msra.mxu0 0.0
        %985 = vmatpush.xpose.msra.mxu0 0.0
        %986 = vmatpush.xpose.msra.mxu0 0.0
        %987 = vmatpush.xpose.msra.mxu0 0.0
        %988 = vmatpush.xpose.msra.mxu0 0.0
        %989 = vmatpush.xpose.msra.mxu0 0.0
        %990 = vmatpush.xpose.msra.mxu0 0.0
        %991 = vmatpush.xpose.msra.mxu0 0.0
        %992 = vmatpush.xpose.msra.mxu0 %v975
        %993 = vmatmul.f32.gmra.mxu0 %v973
        %v994 = vpop.f32.mrf.mxu0
        %v995 = vadd.f32 0.0, %v994
        %996 = vdwg.mxu0
        %v997 = vmul.f32 %v995, 0.17677669
        %v998 = vsel %vm474, %v997, -inf
        %v999 = vrot.slane %v998, 4
        %v1000 = vmax.f32 %v998, %v999
        %v1001 = vrot.slane %v1000, 2
        %v1002 = vmax.f32 %v1000, %v1001
        %v1003 = vrot.slane %v1002, 1
        %v1004 = vmax.f32 %v1002, %v1003
        %v1005 = vsub.f32 %v997, %v1004
        %v1006 = vmul.f32 %v1005, 1.442695
        %v1007 = vpow.pop %v1006
        %v1008 = vsel %vm474, %v1007, 0.0
        %v1009 = vrot.slane %v1008, 4
        %v1010 = vadd.f32 %v1008, %v1009
        %v1011 = vrot.slane %v1010, 2
        %v1012 = vadd.f32 %v1010, %v1011
        %v1013 = vrot.slane %v1012, 1
        %v1014 = vadd.f32 %v1012, %v1013
        %v1015 = vrcp.pop %v1014
        %v1016 = vmul.f32 %v1014, %v1015
        %v1017 = vsub.f32 1.0, %v1016
        %v1018 = vmul.f32 %v1015, %v1017
        %v1019 = vadd.f32 %v1015, %v1018
        %vm1020 = vweird.f32 %v1014
        %vm1021 = vweird.f32 %v1015
        %vm1022 = vmor %vm1020, %vm1021
        %v1023 = vsel %vm1022, %v1015, %v1019
        %v1024 = vand.u32 2147483647, %v1014
        %vm1025 = vcmp.eq.f32.partialorder %v1024, 8.507059e+37
        %v1026 = vand.u32 %v1014, 2147483648
        %v1027 = vor.u32 1.1754944e-38, %v1026
        %v1028 = vsel %vm1025, %v1027, %v1023
        %v1029 = vmul.f32 %v1007, %v1028
        %1030 = vrot.lane.b32.xlu0 %v443, 48
        %v1031 = vpop.permute.xlu0 %1030
        %v1034 = vsel %vm474, %v1029, 0
        %1036 = vmatpush.msra.mxu0 0.0
        %1037 = vmatpush.msra.mxu0 0.0
        %1038 = vmatpush.msra.mxu0 0.0
        %1039 = vmatpush.msra.mxu0 0.0
        %1040 = vmatpush.msra.mxu0 0.0
        %1041 = vmatpush.msra.mxu0 0.0
        %1042 = vmatpush.msra.mxu0 0.0
        %1043 = vmatpush.msra.mxu0 0.0
        %1044 = vmatpush.msra.mxu0 0.0
        %1045 = vmatpush.msra.mxu0 0.0
        %1046 = vmatpush.msra.mxu0 0.0
        %1047 = vmatpush.msra.mxu0 0.0
        %1048 = vmatpush.msra.mxu0 0.0
        %1049 = vmatpush.msra.mxu0 0.0
        %1050 = vmatpush.msra.mxu0 0.0
        %1051 = vmatpush.msra.mxu0 %v1031
        %1052 = vmatmul.f32.gmra.mxu0 %v1034
        %v1053 = vpop.f32.mrf.mxu0
        %v1054 = vadd.f32 0.0, %v1053
        %1055 = vdwg.mxu0
        // Predicated region
        $region93: #{tpu_custom_call.1} parent=51 // pred_check
          %p1056 = pneg %p386
        $region94: #{tpu_custom_call.1} parent=51 // pred_check_branch
          %1058 = sbr.rel (%p1056) target = $region96
        $region95: #{tpu_custom_call.1} parent=51 // pred_region
          %1060 = vrot.lane.b32.xlu0 %v1054, 80
          %v1061 = vpop.permute.xlu0 %1060
          %vm1063 = vcmask 786048
          %1064 = vst.msk [vmem:[#allocation2] sm:$0xff] %vm1063, %v1061
        $region96: #{tpu_custom_call.1} parent=51 // pred_fallthru
          _
        // Predicated region
        $region97: #{tpu_custom_call.1} parent=51 // pred_check
          %p1065 = pneg %p387
        $region98: #{tpu_custom_call.1} parent=51 // pred_check_branch
          %1067 = sbr.rel (%p1065) target = $region100
        $region99: #{tpu_custom_call.1} parent=51 // pred_region
          %v1068 = vld [vmem:[#allocation2] sm:$0xff]
          %1070 = vrot.lane.b32.xlu0 %v1054, 80
          %v1071 = vpop.permute.xlu0 %1070
          %v1073 = vadd.f32 %v1068, %v1071
          %vm1074 = vcmask 786048
          %1075 = vst.msk [vmem:[#allocation2] sm:$0xff] %vm1074, %v1073
        $region100: #{tpu_custom_call.1} parent=51 // pred_fallthru
          _
        %1076 = vrot.lane.b32.xlu0 %v445, 32
        %v1077 = vpop.permute.xlu0 %1076
        %1078 = vrot.lane.b32.xlu0 %v416, 32
        %v1079 = vpop.permute.xlu0 %1078
        %v1080 = vsel %vm446, %v1077, 0
        %v1082 = vsel %vm446, %v1079, 0
        %1084 = vmatpush.xpose.msra.mxu0 0.0
        %1085 = vmatpush.xpose.msra.mxu0 0.0
        %1086 = vmatpush.xpose.msra.mxu0 0.0
        %1087 = vmatpush.xpose.msra.mxu0 0.0
        %1088 = vmatpush.xpose.msra.mxu0 0.0
        %1089 = vmatpush.xpose.msra.mxu0 0.0
        %1090 = vmatpush.xpose.msra.mxu0 0.0
        %1091 = vmatpush.xpose.msra.mxu0 0.0
        %1092 = vmatpush.xpose.msra.mxu0 0.0
        %1093 = vmatpush.xpose.msra.mxu0 0.0
        %1094 = vmatpush.xpose.msra.mxu0 0.0
        %1095 = vmatpush.xpose.msra.mxu0 0.0
        %1096 = vmatpush.xpose.msra.mxu0 0.0
        %1097 = vmatpush.xpose.msra.mxu0 0.0
        %1098 = vmatpush.xpose.msra.mxu0 0.0
        %1099 = vmatpush.xpose.msra.mxu0 %v1082
        %1100 = vmatmul.f32.gmra.mxu0 %v1080
        %v1101 = vpop.f32.mrf.mxu0
        %v1102 = vadd.f32 0.0, %v1101
        %1103 = vdwg.mxu0
        %v1104 = vmul.f32 %v1102, 0.17677669
        %v1105 = vsel %vm474, %v1104, -inf
        %v1106 = vrot.slane %v1105, 4
        %v1107 = vmax.f32 %v1105, %v1106
        %v1108 = vrot.slane %v1107, 2
        %v1109 = vmax.f32 %v1107, %v1108
        %v1110 = vrot.slane %v1109, 1
        %v1111 = vmax.f32 %v1109, %v1110
        %v1112 = vsub.f32 %v1104, %v1111
        %v1113 = vmul.f32 %v1112, 1.442695
        %v1114 = vpow.pop %v1113
        %v1115 = vsel %vm474, %v1114, 0.0
        %v1116 = vrot.slane %v1115, 4
        %v1117 = vadd.f32 %v1115, %v1116
        %v1118 = vrot.slane %v1117, 2
        %v1119 = vadd.f32 %v1117, %v1118
        %v1120 = vrot.slane %v1119, 1
        %v1121 = vadd.f32 %v1119, %v1120
        %v1122 = vrcp.pop %v1121
        %v1123 = vmul.f32 %v1121, %v1122
        %v1124 = vsub.f32 1.0, %v1123
        %v1125 = vmul.f32 %v1122, %v1124
        %v1126 = vadd.f32 %v1122, %v1125
        %vm1127 = vweird.f32 %v1121
        %vm1128 = vweird.f32 %v1122
        %vm1129 = vmor %vm1127, %vm1128
        %v1130 = vsel %vm1129, %v1122, %v1126
        %v1131 = vand.u32 2147483647, %v1121
        %vm1132 = vcmp.eq.f32.partialorder %v1131, 8.507059e+37
        %v1133 = vand.u32 %v1121, 2147483648
        %v1134 = vor.u32 1.1754944e-38, %v1133
        %v1135 = vsel %vm1132, %v1134, %v1130
        %v1136 = vmul.f32 %v1114, %v1135
        %1137 = vrot.lane.b32.xlu0 %v443, 32
        %v1138 = vpop.permute.xlu0 %1137
        %v1141 = vsel %vm474, %v1136, 0
        %1143 = vmatpush.msra.mxu0 0.0
        %1144 = vmatpush.msra.mxu0 0.0
        %1145 = vmatpush.msra.mxu0 0.0
        %1146 = vmatpush.msra.mxu0 0.0
        %1147 = vmatpush.msra.mxu0 0.0
        %1148 = vmatpush.msra.mxu0 0.0
        %1149 = vmatpush.msra.mxu0 0.0
        %1150 = vmatpush.msra.mxu0 0.0
        %1151 = vmatpush.msra.mxu0 0.0
        %1152 = vmatpush.msra.mxu0 0.0
        %1153 = vmatpush.msra.mxu0 0.0
        %1154 = vmatpush.msra.mxu0 0.0
        %1155 = vmatpush.msra.mxu0 0.0
        %1156 = vmatpush.msra.mxu0 0.0
        %1157 = vmatpush.msra.mxu0 0.0
        %1158 = vmatpush.msra.mxu0 %v1138
        %1159 = vmatmul.f32.gmra.mxu0 %v1141
        %v1160 = vpop.f32.mrf.mxu0
        %v1161 = vadd.f32 0.0, %v1160
        %1162 = vdwg.mxu0
        // Predicated region
        $region101: #{tpu_custom_call.1} parent=51 // pred_check
          %p1163 = pneg %p386
        $region102: #{tpu_custom_call.1} parent=51 // pred_check_branch
          %1165 = sbr.rel (%p1163) target = $region104
        $region103: #{tpu_custom_call.1} parent=51 // pred_region
          %1167 = vrot.lane.b32.xlu0 %v1161, 96
          %v1168 = vpop.permute.xlu0 %1167
          %vm1170 = vcmask 917248
          %1171 = vst.msk [vmem:[#allocation2] sm:$0xff] %vm1170, %v1168
        $region104: #{tpu_custom_call.1} parent=51 // pred_fallthru
          _
        // Predicated region
        $region105: #{tpu_custom_call.1} parent=51 // pred_check
          %p1172 = pneg %p387
        $region106: #{tpu_custom_call.1} parent=51 // pred_check_branch
          %1174 = sbr.rel (%p1172) target = $region108
        $region107: #{tpu_custom_call.1} parent=51 // pred_region
          %v1175 = vld [vmem:[#allocation2] sm:$0xff]
          %1177 = vrot.lane.b32.xlu0 %v1161, 96
          %v1178 = vpop.permute.xlu0 %1177
          %v1180 = vadd.f32 %v1175, %v1178
          %vm1181 = vcmask 917248
          %1182 = vst.msk [vmem:[#allocation2] sm:$0xff] %vm1181, %v1180
        $region108: #{tpu_custom_call.1} parent=51 // pred_fallthru
          _
        %1183 = vrot.lane.b32.xlu0 %v445, 16
        %v1184 = vpop.permute.xlu0 %1183
        %1185 = vrot.lane.b32.xlu0 %v416, 16
        %v1186 = vpop.permute.xlu0 %1185
        %v1187 = vsel %vm446, %v1184, 0
        %v1189 = vsel %vm446, %v1186, 0
        %1191 = vmatpush.xpose.msra.mxu0 0.0
        %1192 = vmatpush.xpose.msra.mxu0 0.0
        %1193 = vmatpush.xpose.msra.mxu0 0.0
        %1194 = vmatpush.xpose.msra.mxu0 0.0
        %1195 = vmatpush.xpose.msra.mxu0 0.0
        %1196 = vmatpush.xpose.msra.mxu0 0.0
        %1197 = vmatpush.xpose.msra.mxu0 0.0
        %1198 = vmatpush.xpose.msra.mxu0 0.0
        %1199 = vmatpush.xpose.msra.mxu0 0.0
        %1200 = vmatpush.xpose.msra.mxu0 0.0
        %1201 = vmatpush.xpose.msra.mxu0 0.0
        %1202 = vmatpush.xpose.msra.mxu0 0.0
        %1203 = vmatpush.xpose.msra.mxu0 0.0
        %1204 = vmatpush.xpose.msra.mxu0 0.0
        %1205 = vmatpush.xpose.msra.mxu0 0.0
        %1206 = vmatpush.xpose.msra.mxu0 %v1189
        %1207 = vmatmul.f32.gmra.mxu0 %v1187
        %v1208 = vpop.f32.mrf.mxu0
        %v1209 = vadd.f32 0.0, %v1208
        %1210 = vdwg.mxu0
        %v1211 = vmul.f32 %v1209, 0.17677669
        %v1212 = vsel %vm474, %v1211, -inf
        %v1213 = vrot.slane %v1212, 4
        %v1214 = vmax.f32 %v1212, %v1213
        %v1215 = vrot.slane %v1214, 2
        %v1216 = vmax.f32 %v1214, %v1215
        %v1217 = vrot.slane %v1216, 1
        %v1218 = vmax.f32 %v1216, %v1217
        %v1219 = vsub.f32 %v1211, %v1218
        %v1220 = vmul.f32 %v1219, 1.442695
        %v1221 = vpow.pop %v1220
        %v1222 = vsel %vm474, %v1221, 0.0
        %v1223 = vrot.slane %v1222, 4
        %v1224 = vadd.f32 %v1222, %v1223
        %v1225 = vrot.slane %v1224, 2
        %v1226 = vadd.f32 %v1224, %v1225
        %v1227 = vrot.slane %v1226, 1
        %v1228 = vadd.f32 %v1226, %v1227
        %v1229 = vrcp.pop %v1228
        %v1230 = vmul.f32 %v1228, %v1229
        %v1231 = vsub.f32 1.0, %v1230
        %v1232 = vmul.f32 %v1229, %v1231
        %v1233 = vadd.f32 %v1229, %v1232
        %vm1234 = vweird.f32 %v1228
        %vm1235 = vweird.f32 %v1229
        %vm1236 = vmor %vm1234, %vm1235
        %v1237 = vsel %vm1236, %v1229, %v1233
        %v1238 = vand.u32 2147483647, %v1228
        %vm1239 = vcmp.eq.f32.partialorder %v1238, 8.507059e+37
        %v1240 = vand.u32 %v1228, 2147483648
        %v1241 = vor.u32 1.1754944e-38, %v1240
        %v1242 = vsel %vm1239, %v1241, %v1237
        %v1243 = vmul.f32 %v1221, %v1242
        %1244 = vrot.lane.b32.xlu0 %v443, 16
        %v1245 = vpop.permute.xlu0 %1244
        %v1248 = vsel %vm474, %v1243, 0
        %1250 = vmatpush.msra.mxu0 0.0
        %1251 = vmatpush.msra.mxu0 0.0
        %1252 = vmatpush.msra.mxu0 0.0
        %1253 = vmatpush.msra.mxu0 0.0
        %1254 = vmatpush.msra.mxu0 0.0
        %1255 = vmatpush.msra.mxu0 0.0
        %1256 = vmatpush.msra.mxu0 0.0
        %1257 = vmatpush.msra.mxu0 0.0
        %1258 = vmatpush.msra.mxu0 0.0
        %1259 = vmatpush.msra.mxu0 0.0
        %1260 = vmatpush.msra.mxu0 0.0
        %1261 = vmatpush.msra.mxu0 0.0
        %1262 = vmatpush.msra.mxu0 0.0
        %1263 = vmatpush.msra.mxu0 0.0
        %1264 = vmatpush.msra.mxu0 0.0
        %1265 = vmatpush.msra.mxu0 %v1245
        %1266 = vmatmul.f32.gmra.mxu0 %v1248
        %v1267 = vpop.f32.mrf.mxu0
        %v1268 = vadd.f32 0.0, %v1267
        %1269 = vdwg.mxu0
        // Predicated region
        $region109: #{tpu_custom_call.1} parent=51 // pred_check
          %p1270 = pneg %p386
        $region110: #{tpu_custom_call.1} parent=51 // pred_check_branch
          %1272 = sbr.rel (%p1270) target = $region112
        $region111: #{tpu_custom_call.1} parent=51 // pred_region
          %1274 = vrot.lane.b32.xlu0 %v1268, 112
          %v1275 = vpop.permute.xlu0 %1274
          %vm1277 = vcmask 1048448
          %1278 = vst.msk [vmem:[#allocation2] sm:$0xff] %vm1277, %v1275
        $region112: #{tpu_custom_call.1} parent=51 // pred_fallthru
          _
        // Predicated region
        $region113: #{tpu_custom_call.1} parent=51 // pred_check
          %p1279 = pneg %p387
        $region114: #{tpu_custom_call.1} parent=51 // pred_check_branch
          %1281 = sbr.rel (%p1279) target = $region116
        $region115: #{tpu_custom_call.1} parent=51 // pred_region
          %v1282 = vld [vmem:[#allocation2] sm:$0xff]
          %1284 = vrot.lane.b32.xlu0 %v1268, 112
          %v1285 = vpop.permute.xlu0 %1284
          %v1287 = vadd.f32 %v1282, %v1285
          %vm1288 = vcmask 1048448
          %1289 = vst.msk [vmem:[#allocation2] sm:$0xff] %vm1288, %v1287
        $region116: #{tpu_custom_call.1} parent=51 // pred_fallthru
          _
        // Predicated region
        $region117: #{tpu_custom_call.1} parent=51 // pred_check
          %p1290 = pneg %p386
        $region118: #{tpu_custom_call.1} parent=51 // pred_check_branch
          %1292 = sbr.rel (%p1290) target = $region120
        $region119: #{tpu_custom_call.1} parent=51 // pred_region
          %v1293 = vld [vmem:[#allocation2] sm:$0xff]
          %v1294 = vld [vmem:[%s6] sm:$0xff]
          %v1295 = vld [vmem:[%s6 + $0x8] sm:$0xff]
          %v1296 = vld [vmem:[%s6 + $0x10] sm:$0xff]
          %v1297 = vld [vmem:[%s6 + $0x18] sm:$0xff]
          %v1298 = vld [vmem:[%s6 + $0x20] sm:$0xff]
          %v1299 = vld [vmem:[%s6 + $0x28] sm:$0xff]
          %v1300 = vld [vmem:[%s6 + $0x30] sm:$0xff]
          %v1301 = vld [vmem:[%s6 + $0x38] sm:$0xff]
          %v1302 = vld [vmem:[%s6 + $0x40] sm:$0xff]
          %v1303 = vld [vmem:[%s6 + $0x48] sm:$0xff]
          %v1304 = vld [vmem:[%s6 + $0x50] sm:$0xff]
          %v1305 = vld [vmem:[%s6 + $0x58] sm:$0xff]
          %v1306 = vld [vmem:[%s6 + $0x60] sm:$0xff]
          %v1307 = vld [vmem:[%s6 + $0x68] sm:$0xff]
          %v1308 = vld [vmem:[%s6 + $0x70] sm:$0xff]
          %v1309 = vld [vmem:[%s6 + $0x78] sm:$0xff]
          %v1310 = vld [vmem:[%s7] sm:$0x1]
          %v1312 = vperm.slane %v1310, 0
          %1314 = vmatpush.msra.mxu0 %v1309
          %1315 = vmatpush.msra.mxu0 %v1308
          %1316 = vmatpush.msra.mxu0 %v1307
          %1317 = vmatpush.msra.mxu0 %v1306
          %1318 = vmatpush.msra.mxu0 %v1305
          %1319 = vmatpush.msra.mxu0 %v1304
          %1320 = vmatpush.msra.mxu0 %v1303
          %1321 = vmatpush.msra.mxu0 %v1302
          %1322 = vmatpush.msra.mxu0 %v1301
          %1323 = vmatpush.msra.mxu0 %v1300
          %1324 = vmatpush.msra.mxu0 %v1299
          %1325 = vmatpush.msra.mxu0 %v1298
          %1326 = vmatpush.msra.mxu0 %v1297
          %1327 = vmatpush.msra.mxu0 %v1296
          %1328 = vmatpush.msra.mxu0 %v1295
          %1329 = vmatpush.msra.mxu0 %v1294
          %1330 = vmatmul.f32.gmra.mxu0 %v1293
          %v1331 = vpop.f32.mrf.mxu0
          %v1332 = vadd.f32 %v1312, %v1331
          %1333 = vdwg.mxu0
          %v1334 = vld [vmem:[%s367] sm:$0xff]
          %v1335 = vadd.f32 %v1332, %v1334
          %1336 = vst.msk [vmem:[%s363] sm:$0xff] %vm394, %v1335
        $region120: #{tpu_custom_call.1} parent=51 // pred_fallthru
          _
        %s1337 = sand.u32 %s234, 1
        %s1338 = scalar_lea.sflag [#allocation4], %s1337
        %s1339 = sand.u32 %s234, 1
        %s1340 = smul.addr %s1339, 8
        %s1341 = scalar_lea.vmem [#allocation3], %s1340
        // Predicated region
        $region121: #{tpu_custom_call.1} parent=51 // pred_check
          %p1342 = pneg %p244
        $region122: #{tpu_custom_call.1} parent=51 // pred_check_branch
          %1344 = sbr.rel (%p1342) target = $region124
        $region123: #{tpu_custom_call.1} parent=51 // pred_region
          %1346 = vsyncadd %s1338, 0
          %s1347 = smul.addr %s26, 8
          %s1348 = scalar_lea.hbm %s8, %s1347
          %s1350 = sshll.u32 %s1341, 4
          %s1351 = int_to_ptr.vmem [resolvable:$true] %s1350
          %s1352 = sshll.u32 %s1348, 4
          %s1353 = int_to_ptr.hbm [resolvable:$true] %s1352
          %1355 = dma.vmem_to_hbm [thread:$0]  %s1351, 128, %s1353, %s1338
        $region124: #{tpu_custom_call.1} parent=51 // pred_fallthru
          _
      $region52: #{tpu_custom_call.1} parent=5 // pred_fallthru
        _
      %p1356 = scmp.le.s32.totalorder 2, %s17
      // Predicated region
      $region125: #{tpu_custom_call.1} parent=5 // pred_check
        %p1357 = pneg %p1356
      $region126: #{tpu_custom_call.1} parent=5 // pred_check_branch
        %1359 = sbr.rel (%p1357) target = $region128
      $region127: #{tpu_custom_call.1} parent=5 // pred_region
        %s1360 = ssub.s32 %s17, 2
        // Predicated region
        $region129: #{tpu_custom_call.1} parent=127 // pred_check
          %p1361 = pneg %p250
        $region130: #{tpu_custom_call.1} parent=127 // pred_check_branch
          %1363 = sbr.rel (%p1361) target = $region132
        $region131: #{tpu_custom_call.1} parent=127 // pred_region
          %s1364 = sand.u32 %s235, 1
          %s1365 = scalar_lea.sflag [#allocation4], %s1364
          %s1366 = sand.u32 %s235, 1
          %s1367 = smul.addr %s1366, 8
          %s1368 = scalar_lea.vmem [#allocation3], %s1367
          %1370 = dma.done %s1365, 128
        $region132: #{tpu_custom_call.1} parent=127 // pred_fallthru
          _
      $region128: #{tpu_custom_call.1} parent=5 // pred_fallthru
        _
    $region6: #{tpu_custom_call.1} parent=1 // loop_footer
      %s21 = sadd.s32 1, %s17
    $region7: #{tpu_custom_call.1} parent=1 // loop_footer_branch
      %16 = sbr.rel target = $region3
    $region8: #{tpu_custom_call.1} parent=1 // loop_exit
      _
    %1371 = vsyncpa [#allocation4], 1
    %s1372 = scalar_lea.sflag [#allocation4], 1
    %1373 = vsyncpa %s1372, 1

// kernel: tpu_custom_call.1
$region0: #{tpu_custom_call.1}
  #allocation0 [shape = 'u32[]', space=smem, size = 0x4, offset = 0x4, fixed_abs, tag = 'smem constant byte address 0x4 - core index']
  #allocation1 [shape = 'u32[72,128]{1,0:T(1,128)}', space=vmem, size = 0x9000, scoped, tag = 'internal scratch']
  #allocation2 [shape = 'f32[8,128]{1,0:T(8,128)}', space=vmem, size = 0x1000, scoped, tag = 'scratch operand']
  %s0 = inlined_call_operand.vmem [shape: f32[2,8,32], index: 0, kind: input, shape index: {}]
  %s1 = inlined_call_operand.vmem [shape: f32[2,8,128], index: 1, kind: input, shape index: {}]
  %s2 = inlined_call_operand.vmem [shape: f32[2,8,32], index: 2, kind: input, shape index: {}]
  %s3 = inlined_call_operand.vmem [shape: f32[2,8,32], index: 3, kind: input, shape index: {}]
  %s4 = inlined_call_operand.vmem [shape: f32[32,128], index: 4, kind: input, shape index: {}]
  %s5 = inlined_call_operand.vmem [shape: f32[32,128], index: 5, kind: input, shape index: {}]
  %s6 = inlined_call_operand.vmem [shape: f32[128,32], index: 6, kind: input, shape index: {}]
  %s7 = inlined_call_operand.vmem [shape: f32[1,32], index: 7, kind: input, shape index: {}]
  %s8 = inlined_call_operand.hbm [shape: f32[2,8,32], index: 8, kind: output, shape index: {}]
  %s9 = sld [smem:[#allocation0]]
  $region133: #{tpu_custom_call.1} parent=0
    _
  %s11 = ssub.s32 1, %s9
  %s12 = scalar_select 0, %s11, %s9
  $region1: #{tpu_custom_call.1} parent=0
    #allocation3 [shape = 'u8[8192]{0}', space=vmem, size = 0x2000, scoped, tag = 'output window, operand 0']
    #allocation4 [shape = 's32[2]{0}', space=sflag, size = 0x8, scoped, tag = 'scoped memory for tpu_custom_call.1']
    %13 = vsyncpa [#allocation4], 0
    %s14 = scalar_lea.sflag [#allocation4], 1
    %15 = vsyncpa %s14, 0
    loop: start=0, step=1, limit=4
    $region2: #{tpu_custom_call.1} parent=1 // loop_pre_header
      _
    $region3: #{tpu_custom_call.1} parent=1 // loop_header
      %s17 = sphi 0, %s21
      %p18 = scmp.ge.s32.totalorder %s17, 4
      %s24 = sphi 0, %s36
      %s25 = sphi 0, %s32
      %s26 = sphi 0, %s24
      %s27 = sphi 0, %s25
      %s28 = sphi 0, %s26
      %s29 = sphi 0, %s27
      %s39 = sphi 0, %s41
      %s42 = sphi 0, %s39
      %s43 = sphi 0, %s42
      %s59 = sphi 0, %s43
      %s65 = sphi 0, %s67
      %s68 = sphi 0, %s65
      %s69 = sphi 0, %s68
      %s85 = sphi 0, %s69
      %s93 = sphi 0, %s95
      %s96 = sphi 0, %s93
      %s97 = sphi 0, %s96
      %s113 = sphi 0, %s97
      %s121 = sphi 0, %s123
      %s124 = sphi 0, %s121
      %s125 = sphi 0, %s124
      %s141 = sphi 0, %s125
      %s145 = sphi 0, %s145
      %s147 = sphi 0, %s145
      %s148 = sphi 0, %s147
      %s162 = sphi 0, %s148
      %s166 = sphi 0, %s166
      %s168 = sphi 0, %s166
      %s169 = sphi 0, %s168
      %s183 = sphi 0, %s169
      %s187 = sphi 0, %s187
      %s189 = sphi 0, %s187
      %s190 = sphi 0, %s189
      %s204 = sphi 0, %s190
      %s208 = sphi 0, %s208
      %s210 = sphi 0, %s208
      %s211 = sphi 0, %s210
      %s225 = sphi 0, %s211
      %s231 = sphi 0, %s233
      %s234 = sphi 0, %s231
      %s235 = sphi 0, %s234
      %s251 = sphi 0, %s235
    $region4: #{tpu_custom_call.1} parent=1 // loop_header_branch
      %20 = sbr.rel (%p18) target = $region8
    $region5: #{tpu_custom_call.1} parent=1 // loop_body
      %s22 = ssub.s32 %s17, 1
      %s23 = ssub.s32 %s17, 2
      %s30 = sadd.s32 1, %s25
      %p31 = scmp.ge.s32.totalorder %s30, 1
      %s32 = scalar_select %p31, 0, %s30
      %s33 = sadd.s32 1, %s24
      %s34 = scalar_select %p31, %s33, %s24
      %p35 = scmp.ge.s32.totalorder %s34, 2
      %s36 = scalar_select %p35, 0, %s34
      %s37 = ssub.s32 %s24, %s36
      %p38 = scmp.eq.s32.totalorder %s37, 0
      %s40 = sadd.s32 %s39, 1
      %s41 = scalar_select %p38, %s39, %s40
      %p44 = pneg %p38
      %p45 = scmp.eq.s32.totalorder %s17, 1
      %p46 = por %p44, %p45
      %p47 = scmp.ne.s32.totalorder %s39, %s42
      %p48 = scmp.eq.s32.totalorder %s17, 0
      %p49 = por %p47, %p48
      %p50 = scmp.ne.s32.totalorder %s39, %s42
      %p51 = scmp.eq.s32.totalorder %s22, 1
      %p52 = por %p50, %p51
      %p53 = scmp.ne.s32.totalorder %s42, %s43
      %p54 = scmp.eq.s32.totalorder %s22, 0
      %p55 = por %p53, %p54
      %p56 = scmp.ne.s32.totalorder %s42, %s43
      %p57 = scmp.eq.s32.totalorder %s23, 1
      %p58 = por %p56, %p57
      %p60 = scmp.ne.s32.totalorder %s43, %s59
      %p61 = scmp.eq.s32.totalorder %s23, 0
      %p62 = por %p60, %p61
      %s63 = ssub.s32 %s24, %s36
      %p64 = scmp.eq.s32.totalorder %s63, 0
      %s66 = sadd.s32 %s65, 1
      %s67 = scalar_select %p64, %s65, %s66
      %p70 = pneg %p64
      %p71 = scmp.eq.s32.totalorder %s17, 1
      %p72 = por %p70, %p71
      %p73 = scmp.ne.s32.totalorder %s65, %s68
      %p74 = scmp.eq.s32.totalorder %s17, 0
      %p75 = por %p73, %p74
      %p76 = scmp.ne.s32.totalorder %s65, %s68
      %p77 = scmp.eq.s32.totalorder %s22, 1
      %p78 = por %p76, %p77
      %p79 = scmp.ne.s32.totalorder %s68, %s69
      %p80 = scmp.eq.s32.totalorder %s22, 0
      %p81 = por %p79, %p80
      %p82 = scmp.ne.s32.totalorder %s68, %s69
      %p83 = scmp.eq.s32.totalorder %s23, 1
      %p84 = por %p82, %p83
      %p86 = scmp.ne.s32.totalorder %s69, %s85
      %p87 = scmp.eq.s32.totalorder %s23, 0
      %p88 = por %p86, %p87
      %s89 = ssub.s32 %s24, %s36
      %s90 = ssub.s32 %s25, %s32
      %s91 = sor.u32 %s89, %s90
      %p92 = scmp.eq.s32.totalorder %s91, 0
      %s94 = sadd.s32 %s93, 1
      %s95 = scalar_select %p92, %s93, %s94
      %p98 = pneg %p92
      %p99 = scmp.eq.s32.totalorder %s17, 1
      %p100 = por %p98, %p99
      %p101 = scmp.ne.s32.totalorder %s93, %s96
      %p102 = scmp.eq.s32.totalorder %s17, 0
      %p103 = por %p101, %p102
      %p104 = scmp.ne.s32.totalorder %s93, %s96
      %p105 = scmp.eq.s32.totalorder %s22, 1
      %p106 = por %p104, %p105
      %p107 = scmp.ne.s32.totalorder %s96, %s97
      %p108 = scmp.eq.s32.totalorder %s22, 0
      %p109 = por %p107, %p108
      %p110 = scmp.ne.s32.totalorder %s96, %s97
      %p111 = scmp.eq.s32.totalorder %s23, 1
      %p112 = por %p110, %p111
      %p114 = scmp.ne.s32.totalorder %s97, %s113
      %p115 = scmp.eq.s32.totalorder %s23, 0
      %p116 = por %p114, %p115
      %s117 = ssub.s32 %s24, %s36
      %s118 = ssub.s32 %s25, %s32
      %s119 = sor.u32 %s117, %s118
      %p120 = scmp.eq.s32.totalorder %s119, 0
      %s122 = sadd.s32 %s121, 1
      %s123 = scalar_select %p120, %s121, %s122
      %p126 = pneg %p120
      %p127 = scmp.eq.s32.totalorder %s17, 1
      %p128 = por %p126, %p127
      %p129 = scmp.ne.s32.totalorder %s121, %s124
      %p130 = scmp.eq.s32.totalorder %s17, 0
      %p131 = por %p129, %p130
      %p132 = scmp.ne.s32.totalorder %s121, %s124
      %p133 = scmp.eq.s32.totalorder %s22, 1
      %p134 = por %p132, %p133
      %p135 = scmp.ne.s32.totalorder %s124, %s125
      %p136 = scmp.eq.s32.totalorder %s22, 0
      %p137 = por %p135, %p136
      %p138 = scmp.ne.s32.totalorder %s124, %s125
      %p139 = scmp.eq.s32.totalorder %s23, 1
      %p140 = por %p138, %p139
      %p142 = scmp.ne.s32.totalorder %s125, %s141
      %p143 = scmp.eq.s32.totalorder %s23, 0
      %p144 = por %p142, %p143
      %s146 = sadd.s32 %s145, 1
      %p149 = scmp.eq.s32.totalorder %s17, 1
      %p150 = scmp.ne.s32.totalorder %s145, %s147
      %p151 = scmp.eq.s32.totalorder %s17, 0
      %p152 = por %p150, %p151
      %p153 = scmp.ne.s32.totalorder %s145, %s147
      %p154 = scmp.eq.s32.totalorder %s22, 1
      %p155 = por %p153, %p154
      %p156 = scmp.ne.s32.totalorder %s147, %s148
      %p157 = scmp.eq.s32.totalorder %s22, 0
      %p158 = por %p156, %p157
      %p159 = scmp.ne.s32.totalorder %s147, %s148
      %p160 = scmp.eq.s32.totalorder %s23, 1
      %p161 = por %p159, %p160
      %p163 = scmp.ne.s32.totalorder %s148, %s162
      %p164 = scmp.eq.s32.totalorder %s23, 0
      %p165 = por %p163, %p164
      %s167 = sadd.s32 %s166, 1
      %p170 = scmp.eq.s32.totalorder %s17, 1
      %p171 = scmp.ne.s32.totalorder %s166, %s168
      %p172 = scmp.eq.s32.totalorder %s17, 0
      %p173 = por %p171, %p172
      %p174 = scmp.ne.s32.totalorder %s166, %s168
      %p175 = scmp.eq.s32.totalorder %s22, 1
      %p176 = por %p174, %p175
      %p177 = scmp.ne.s32.totalorder %s168, %s169
      %p178 = scmp.eq.s32.totalorder %s22, 0
      %p179 = por %p177, %p178
      %p180 = scmp.ne.s32.totalorder %s168, %s169
      %p181 = scmp.eq.s32.totalorder %s23, 1
      %p182 = por %p180, %p181
      %p184 = scmp.ne.s32.totalorder %s169, %s183
      %p185 = scmp.eq.s32.totalorder %s23, 0
      %p186 = por %p184, %p185
      %s188 = sadd.s32 %s187, 1
      %p191 = scmp.eq.s32.totalorder %s17, 1
      %p192 = scmp.ne.s32.totalorder %s187, %s189
      %p193 = scmp.eq.s32.totalorder %s17, 0
      %p194 = por %p192, %p193
      %p195 = scmp.ne.s32.totalorder %s187, %s189
      %p196 = scmp.eq.s32.totalorder %s22, 1
      %p197 = por %p195, %p196
      %p198 = scmp.ne.s32.totalorder %s189, %s190
      %p199 = scmp.eq.s32.totalorder %s22, 0
      %p200 = por %p198, %p199
      %p201 = scmp.ne.s32.totalorder %s189, %s190
      %p202 = scmp.eq.s32.totalorder %s23, 1
      %p203 = por %p201, %p202
      %p205 = scmp.ne.s32.totalorder %s190, %s204
      %p206 = scmp.eq.s32.totalorder %s23, 0
      %p207 = por %p205, %p206
      %s209 = sadd.s32 %s208, 1
      %p212 = scmp.eq.s32.totalorder %s17, 1
      %p213 = scmp.ne.s32.totalorder %s208, %s210
      %p214 = scmp.eq.s32.totalorder %s17, 0
      %p215 = por %p213, %p214
      %p216 = scmp.ne.s32.totalorder %s208, %s210
      %p217 = scmp.eq.s32.totalorder %s22, 1
      %p218 = por %p216, %p217
      %p219 = scmp.ne.s32.totalorder %s210, %s211
      %p220 = scmp.eq.s32.totalorder %s22, 0
      %p221 = por %p219, %p220
      %p222 = scmp.ne.s32.totalorder %s210, %s211
      %p223 = scmp.eq.s32.totalorder %s23, 1
      %p224 = por %p222, %p223
      %p226 = scmp.ne.s32.totalorder %s211, %s225
      %p227 = scmp.eq.s32.totalorder %s23, 0
      %p228 = por %p226, %p227
      %s229 = ssub.s32 %s24, %s36
      %p230 = scmp.eq.s32.totalorder %s229, 0
      %s232 = sadd.s32 %s231, 1
      %s233 = scalar_select %p230, %s231, %s232
      %p236 = pneg %p230
      %p237 = scmp.eq.s32.totalorder %s17, 1
      %p238 = por %p236, %p237
      %p239 = scmp.ne.s32.totalorder %s231, %s234
      %p240 = scmp.eq.s32.totalorder %s17, 0
      %p241 = por %p239, %p240
      %p242 = scmp.ne.s32.totalorder %s231, %s234
      %p243 = scmp.eq.s32.totalorder %s22, 1
      %p244 = por %p242, %p243
      %p245 = scmp.ne.s32.totalorder %s234, %s235
      %p246 = scmp.eq.s32.totalorder %s22, 0
      %p247 = por %p245, %p246
      %p248 = scmp.ne.s32.totalorder %s234, %s235
      %p249 = scmp.eq.s32.totalorder %s23, 1
      %p250 = por %p248, %p249
      %p252 = scmp.ne.s32.totalorder %s235, %s251
      %p253 = scmp.eq.s32.totalorder %s23, 0
      %p254 = por %p252, %p253
      %p255 = scmp.le.s32.totalorder 1, %s17
      %p256 = scmp.lt.s32.totalorder %s17, 3
      %p257 = pnand %p255, %p256
      %p258 = pneg %p257
      // Predicated region
      $region9: #{tpu_custom_call.1} parent=5 // pred_check
        _
      $region10: #{tpu_custom_call.1} parent=5 // pred_check_branch
        %260 = sbr.rel (%p257) target = $region12
      $region11: #{tpu_custom_call.1} parent=5 // pred_region
        %s261 = ssub.s32 %s17, 1
        // Predicated region
        $region13: #{tpu_custom_call.1} parent=11 // pred_check
          %p262 = pneg %p158
        $region14: #{tpu_custom_call.1} parent=11 // pred_check_branch
          %264 = sbr.rel (%p262) target = $region16
        $region15: #{tpu_custom_call.1} parent=11 // pred_region
          _
        $region16: #{tpu_custom_call.1} parent=11 // pred_fallthru
          _
        // Predicated region
        $region17: #{tpu_custom_call.1} parent=11 // pred_check
          %p265 = pneg %p179
        $region18: #{tpu_custom_call.1} parent=11 // pred_check_branch
          %267 = sbr.rel (%p265) target = $region20
        $region19: #{tpu_custom_call.1} parent=11 // pred_region
          _
        $region20: #{tpu_custom_call.1} parent=11 // pred_fallthru
          _
        // Predicated region
        $region21: #{tpu_custom_call.1} parent=11 // pred_check
          %p268 = pneg %p200
        $region22: #{tpu_custom_call.1} parent=11 // pred_check_branch
          %270 = sbr.rel (%p268) target = $region24
        $region23: #{tpu_custom_call.1} parent=11 // pred_region
          _
        $region24: #{tpu_custom_call.1} parent=11 // pred_fallthru
          _
        // Predicated region
        $region25: #{tpu_custom_call.1} parent=11 // pred_check
          %p271 = pneg %p221
        $region26: #{tpu_custom_call.1} parent=11 // pred_check_branch
          %273 = sbr.rel (%p271) target = $region28
        $region27: #{tpu_custom_call.1} parent=11 // pred_region
          _
        $region28: #{tpu_custom_call.1} parent=11 // pred_fallthru
          _
      $region12: #{tpu_custom_call.1} parent=5 // pred_fallthru
        _
      %p274 = scmp.lt.s32.totalorder %s17, 2
      // Predicated region
      $region29: #{tpu_custom_call.1} parent=5 // pred_check
        %p275 = pneg %p274
      $region30: #{tpu_custom_call.1} parent=5 // pred_check_branch
        %277 = sbr.rel (%p275) target = $region32
      $region31: #{tpu_custom_call.1} parent=5 // pred_region
        // Predicated region
        $region33: #{tpu_custom_call.1} parent=31 // pred_check
          %p278 = pneg %p49
        $region34: #{tpu_custom_call.1} parent=31 // pred_check_branch
          %280 = sbr.rel (%p278) target = $region36
        $region35: #{tpu_custom_call.1} parent=31 // pred_region
          %p281 = scmp.lt.s32.totalorder %s24, 1
          %s282 = scalar_select %p281, %s24, 1
          %s283 = smul.addr %s282, 8
          %s284 = scalar_lea.vmem %s0, %s283
        $region36: #{tpu_custom_call.1} parent=31 // pred_fallthru
          _
        // Predicated region
        $region37: #{tpu_custom_call.1} parent=31 // pred_check
          %p285 = pneg %p75
        $region38: #{tpu_custom_call.1} parent=31 // pred_check_branch
          %287 = sbr.rel (%p285) target = $region40
        $region39: #{tpu_custom_call.1} parent=31 // pred_region
          %p288 = scmp.lt.s32.totalorder %s24, 1
          %s289 = scalar_select %p288, %s24, 1
          %s290 = smul.addr %s289, 8
          %s291 = scalar_lea.vmem %s1, %s290
        $region40: #{tpu_custom_call.1} parent=31 // pred_fallthru
          _
        // Predicated region
        $region41: #{tpu_custom_call.1} parent=31 // pred_check
          %p292 = pneg %p103
        $region42: #{tpu_custom_call.1} parent=31 // pred_check_branch
          %294 = sbr.rel (%p292) target = $region44
        $region43: #{tpu_custom_call.1} parent=31 // pred_region
          %p295 = scmp.lt.s32.totalorder %s24, 1
          %s296 = scalar_select %p295, %s24, 1
          %p297 = scmp.lt.s32.totalorder %s25, 0
          %s298 = scalar_select %p297, %s25, 0
          %s299 = sadd.s32 %s298, %s296
          %s300 = smul.addr %s299, 8
          %s301 = scalar_lea.vmem %s2, %s300
        $region44: #{tpu_custom_call.1} parent=31 // pred_fallthru
          _
        // Predicated region
        $region45: #{tpu_custom_call.1} parent=31 // pred_check
          %p302 = pneg %p131
        $region46: #{tpu_custom_call.1} parent=31 // pred_check_branch
          %304 = sbr.rel (%p302) target = $region48
        $region47: #{tpu_custom_call.1} parent=31 // pred_region
          %p305 = scmp.lt.s32.totalorder %s24, 1
          %s306 = scalar_select %p305, %s24, 1
          %p307 = scmp.lt.s32.totalorder %s25, 0
          %s308 = scalar_select %p307, %s25, 0
          %s309 = sadd.s32 %s308, %s306
          %s310 = smul.addr %s309, 8
          %s311 = scalar_lea.vmem %s3, %s310
        $region48: #{tpu_custom_call.1} parent=31 // pred_fallthru
          _
      $region32: #{tpu_custom_call.1} parent=5 // pred_fallthru
        _
      %p312 = scmp.le.s32.totalorder 1, %s17
      %p313 = scmp.lt.s32.totalorder %s17, 3
      %p314 = pnand %p312, %p313
      %p315 = pneg %p314
      // Predicated region
      $region49: #{tpu_custom_call.1} parent=5 // pred_check
        _
      $region50: #{tpu_custom_call.1} parent=5 // pred_check_branch
        %317 = sbr.rel (%p314) target = $region52
      $region51: #{tpu_custom_call.1} parent=5 // pred_region
        %s318 = ssub.s32 %s17, 1
        %p319 = scmp.lt.s32.totalorder %s26, 1
        %s320 = scalar_select %p319, %s26, 1
        %s321 = smul.addr %s320, 8
        %s322 = scalar_lea.vmem %s0, %s321
        %p323 = pneg %p55
        %p324 = pneg %p52
        %p325 = scmp.lt.s32.totalorder %s26, 1
        %s326 = scalar_select %p325, %s26, 1
        %s327 = smul.addr %s326, 8
        %s328 = scalar_lea.vmem %s1, %s327
        %p329 = pneg %p81
        %p330 = pneg %p78
        %p331 = scmp.lt.s32.totalorder %s26, 1
        %s332 = scalar_select %p331, %s26, 1
        %p333 = scmp.lt.s32.totalorder %s27, 0
        %s334 = scalar_select %p333, %s27, 0
        %s335 = sadd.s32 %s334, %s332
        %s336 = smul.addr %s335, 8
        %s337 = scalar_lea.vmem %s2, %s336
        %p338 = pneg %p109
        %p339 = pneg %p106
        %p340 = scmp.lt.s32.totalorder %s26, 1
        %s341 = scalar_select %p340, %s26, 1
        %p342 = scmp.lt.s32.totalorder %s27, 0
        %s343 = scalar_select %p342, %s27, 0
        %s344 = sadd.s32 %s343, %s341
        %s345 = smul.addr %s344, 8
        %s346 = scalar_lea.vmem %s3, %s345
        %p347 = pneg %p137
        %p348 = pneg %p134
        %p349 = pneg %p158
        %p350 = pneg %p155
        %p351 = pneg %p179
        %p352 = pneg %p176
        %p353 = pneg %p200
        %p354 = pneg %p197
        %p355 = pneg %p221
        %p356 = pneg %p218
        %p357 = pneg %p247
        %p358 = pneg %p244
        %s359 = sand.u32 %s234, 1
        %s360 = scalar_lea.sflag [#allocation4], %s359
        %s361 = sand.u32 %s234, 1
        %s362 = smul.addr %s361, 8
        %s363 = scalar_lea.vmem [#allocation3], %s362
        %p364 = scmp.lt.s32.totalorder %s26, 1
        %s365 = scalar_select %p364, %s26, 1
        %s366 = smul.addr %s365, 8
        %s367 = scalar_lea.vmem %s0, %s366
        %p368 = scmp.lt.s32.totalorder %s26, 1
        %s369 = scalar_select %p368, %s26, 1
        %s370 = smul.addr %s369, 8
        %s371 = scalar_lea.vmem %s1, %s370
        %p372 = scmp.lt.s32.totalorder %s26, 1
        %s373 = scalar_select %p372, %s26, 1
        %p374 = scmp.lt.s32.totalorder %s27, 0
        %s375 = scalar_select %p374, %s27, 0
        %s376 = sadd.s32 %s375, %s373
        %s377 = smul.addr %s376, 8
        %s378 = scalar_lea.vmem %s2, %s377
        %p379 = scmp.lt.s32.totalorder %s26, 1
        %s380 = scalar_select %p379, %s26, 1
        %p381 = scmp.lt.s32.totalorder %s27, 0
        %s382 = scalar_select %p381, %s27, 0
        %s383 = sadd.s32 %s382, %s380
        %s384 = smul.addr %s383, 8
        %s385 = scalar_lea.vmem %s3, %s384
        %p386 = scmp.eq.s32.totalorder %s27, 0
        %p387 = scmp.ne.s32.totalorder %s27, 0
        %v388 = vld [vmem:[%s378] sm:$0xff]
        %v389 = vld [vmem:[%s385] sm:$0xff]
        %v390 = vld [vmem:[%s4] sm:$0xff]
        %v391 = vld [vmem:[%s4 + $0x8] sm:$0xff]
        %v392 = vld [vmem:[%s4 + $0x10] sm:$0xff]
        %v393 = vld [vmem:[%s4 + $0x18] sm:$0xff]
        %vm394 = vcmask 261120
        %v396 = vsel %vm394, %v388, 0
        %398 = vmatpush.msra.mxu0 0.0
        %399 = vmatpush.msra.mxu0 0.0
        %400 = vmatpush.msra.mxu0 0.0
        %401 = vmatpush.msra.mxu0 0.0
        %402 = vmatpush.msra.mxu0 0.0
        %403 = vmatpush.msra.mxu0 0.0
        %404 = vmatpush.msra.mxu0 0.0
        %405 = vmatpush.msra.mxu0 0.0
        %406 = vmatpush.msra.mxu0 0.0
        %407 = vmatpush.msra.mxu0 0.0
        %408 = vmatpush.msra.mxu0 0.0
        %409 = vmatpush.msra.mxu0 0.0
        %410 = vmatpush.msra.mxu0 %v393
        %411 = vmatpush.msra.mxu0 %v392
        %412 = vmatpush.msra.mxu0 %v391
        %413 = vmatpush.msra.mxu0 %v390
        %414 = vmatmul.f32.gmra.mxu0 %v396
        %v415 = vpop.f32.mrf.mxu0
        %v416 = vadd.f32 0.0, %v415
        %417 = vdwg.mxu0
        %v418 = vld [vmem:[%s5] sm:$0xff]
        %v419 = vld [vmem:[%s5 + $0x8] sm:$0xff]
        %v420 = vld [vmem:[%s5 + $0x10] sm:$0xff]
        %v421 = vld [vmem:[%s5 + $0x18] sm:$0xff]
        %v423 = vsel %vm394, %v389, 0
        %425 = vmatpush.msra.mxu0 0.0
        %426 = vmatpush.msra.mxu0 0.0
        %427 = vmatpush.msra.mxu0 0.0
        %428 = vmatpush.msra.mxu0 0.0
        %429 = vmatpush.msra.mxu0 0.0
        %430 = vmatpush.msra.mxu0 0.0
        %431 = vmatpush.msra.mxu0 0.0
        %432 = vmatpush.msra.mxu0 0.0
        %433 = vmatpush.msra.mxu0 0.0
        %434 = vmatpush.msra.mxu0 0.0
        %435 = vmatpush.msra.mxu0 0.0
        %436 = vmatpush.msra.mxu0 0.0
        %437 = vmatpush.msra.mxu0 %v421
        %438 = vmatpush.msra.mxu0 %v420
        %439 = vmatpush.msra.mxu0 %v419
        %440 = vmatpush.msra.mxu0 %v418
        %441 = vmatmul.f32.gmra.mxu0 %v423
        %v442 = vpop.f32.mrf.mxu0
        %v443 = vadd.f32 0.0, %v442
        %444 = vdwg.mxu0
        %v445 = vld [vmem:[%s371] sm:$0xff]
        %vm446 = vcmask 130048
        %v448 = vsel %vm446, %v445, 0
        %v451 = vsel %vm446, %v416, 0
        %453 = vmatpush.xpose.msra.mxu0 0.0
        %454 = vmatpush.xpose.msra.mxu0 0.0
        %455 = vmatpush.xpose.msra.mxu0 0.0
        %456 = vmatpush.xpose.msra.mxu0 0.0
        %457 = vmatpush.xpose.msra.mxu0 0.0
        %458 = vmatpush.xpose.msra.mxu0 0.0
        %459 = vmatpush.xpose.msra.mxu0 0.0
        %460 = vmatpush.xpose.msra.mxu0 0.0
        %461 = vmatpush.xpose.msra.mxu0 0.0
        %462 = vmatpush.xpose.msra.mxu0 0.0
        %463 = vmatpush.xpose.msra.mxu0 0.0
        %464 = vmatpush.xpose.msra.mxu0 0.0
        %465 = vmatpush.xpose.msra.mxu0 0.0
        %466 = vmatpush.xpose.msra.mxu0 0.0
        %467 = vmatpush.xpose.msra.mxu0 0.0
        %468 = vmatpush.xpose.msra.mxu0 %v451
        %469 = vmatmul.f32.gmra.mxu0 %v448
        %v470 = vpop.f32.mrf.mxu0
        %v471 = vadd.f32 0.0, %v470
        %472 = vdwg.mxu0
        %v473 = vmul.f32 %v471, 0.17677669
        %vm474 = vcmask 64512
        %v475 = vsel %vm474, %v473, -inf
        %v476 = vrot.slane %v475, 4
        %v477 = vmax.f32 %v475, %v476
        %v478 = vrot.slane %v477, 2
        %v479 = vmax.f32 %v477, %v478
        %v480 = vrot.slane %v479, 1
        %v481 = vmax.f32 %v479, %v480
        %v482 = vsub.f32 %v473, %v481
        %v483 = vmul.f32 %v482, 1.442695
        %v484 = vpow.pop %v483
        %v485 = vsel %vm474, %v484, 0.0
        %v486 = vrot.slane %v485, 4
        %v487 = vadd.f32 %v485, %v486
        %v488 = vrot.slane %v487, 2
        %v489 = vadd.f32 %v487, %v488
        %v490 = vrot.slane %v489, 1
        %v491 = vadd.f32 %v489, %v490
        %v492 = vrcp.pop %v491
        %v493 = vmul.f32 %v491, %v492
        %v494 = vsub.f32 1.0, %v493
        %v495 = vmul.f32 %v492, %v494
        %v496 = vadd.f32 %v492, %v495
        %vm497 = vweird.f32 %v491
        %vm498 = vweird.f32 %v492
        %vm499 = vmor %vm497, %vm498
        %v500 = vsel %vm499, %v492, %v496
        %v501 = vand.u32 2147483647, %v491
        %vm502 = vcmp.eq.f32.partialorder %v501, 8.507059e+37
        %v503 = vand.u32 %v491, 2147483648
        %v504 = vor.u32 1.1754944e-38, %v503
        %v505 = vsel %vm502, %v504, %v500
        %v506 = vmul.f32 %v484, %v505
        %v508 = vsel %vm474, %v506, 0
        %510 = vmatpush.msra.mxu0 0.0
        %511 = vmatpush.msra.mxu0 0.0
        %512 = vmatpush.msra.mxu0 0.0
        %513 = vmatpush.msra.mxu0 0.0
        %514 = vmatpush.msra.mxu0 0.0
        %515 = vmatpush.msra.mxu0 0.0
        %516 = vmatpush.msra.mxu0 0.0
        %517 = vmatpush.msra.mxu0 0.0
        %518 = vmatpush.msra.mxu0 0.0
        %519 = vmatpush.msra.mxu0 0.0
        %520 = vmatpush.msra.mxu0 0.0
        %521 = vmatpush.msra.mxu0 0.0
        %522 = vmatpush.msra.mxu0 0.0
        %523 = vmatpush.msra.mxu0 0.0
        %524 = vmatpush.msra.mxu0 0.0
        %525 = vmatpush.msra.mxu0 %v443
        %526 = vmatmul.f32.gmra.mxu0 %v508
        %v527 = vpop.f32.mrf.mxu0
        %v528 = vadd.f32 0.0, %v527
        %529 = vdwg.mxu0
        // Predicated region
        $region53: #{tpu_custom_call.1} parent=51 // pred_check
          %p530 = pneg %p386
        $region54: #{tpu_custom_call.1} parent=51 // pred_check_branch
          %532 = sbr.rel (%p530) target = $region56
        $region55: #{tpu_custom_call.1} parent=51 // pred_region
          %533 = vst.msk [vmem:[#allocation2] sm:$0xff] %vm446, %v528
        $region56: #{tpu_custom_call.1} parent=51 // pred_fallthru
          _
        // Predicated region
        $region57: #{tpu_custom_call.1} parent=51 // pred_check
          %p534 = pneg %p387
        $region58: #{tpu_custom_call.1} parent=51 // pred_check_branch
          %536 = sbr.rel (%p534) target = $region60
        $region59: #{tpu_custom_call.1} parent=51 // pred_region
          %v537 = vld [vmem:[#allocation2] sm:$0xff]
          %v538 = vadd.f32 %v537, %v528
          %539 = vst.msk [vmem:[#allocation2] sm:$0xff] %vm446, %v538
        $region60: #{tpu_custom_call.1} parent=51 // pred_fallthru
          _
        %540 = vrot.lane.b32.xlu0 %v445, 112
        %v541 = vpop.permute.xlu0 %540
        %542 = vrot.lane.b32.xlu0 %v416, 112
        %v543 = vpop.permute.xlu0 %542
        %v544 = vsel %vm446, %v541, 0
        %v546 = vsel %vm446, %v543, 0
        %548 = vmatpush.xpose.msra.mxu0 0.0
        %549 = vmatpush.xpose.msra.mxu0 0.0
        %550 = vmatpush.xpose.msra.mxu0 0.0
        %551 = vmatpush.xpose.msra.mxu0 0.0
        %552 = vmatpush.xpose.msra.mxu0 0.0
        %553 = vmatpush.xpose.msra.mxu0 0.0
        %554 = vmatpush.xpose.msra.mxu0 0.0
        %555 = vmatpush.xpose.msra.mxu0 0.0
        %556 = vmatpush.xpose.msra.mxu0 0.0
        %557 = vmatpush.xpose.msra.mxu0 0.0
        %558 = vmatpush.xpose.msra.mxu0 0.0
        %559 = vmatpush.xpose.msra.mxu0 0.0
        %560 = vmatpush.xpose.msra.mxu0 0.0
        %561 = vmatpush.xpose.msra.mxu0 0.0
        %562 = vmatpush.xpose.msra.mxu0 0.0
        %563 = vmatpush.xpose.msra.mxu0 %v546
        %564 = vmatmul.f32.gmra.mxu0 %v544
        %v565 = vpop.f32.mrf.mxu0
        %v566 = vadd.f32 0.0, %v565
        %567 = vdwg.mxu0
        %v568 = vmul.f32 %v566, 0.17677669
        %v569 = vsel %vm474, %v568, -inf
        %v570 = vrot.slane %v569, 4
        %v571 = vmax.f32 %v569, %v570
        %v572 = vrot.slane %v571, 2
        %v573 = vmax.f32 %v571, %v572
        %v574 = vrot.slane %v573, 1
        %v575 = vmax.f32 %v573, %v574
        %v576 = vsub.f32 %v568, %v575
        %v577 = vmul.f32 %v576, 1.442695
        %v578 = vpow.pop %v577
        %v579 = vsel %vm474, %v578, 0.0
        %v580 = vrot.slane %v579, 4
        %v581 = vadd.f32 %v579, %v580
        %v582 = vrot.slane %v581, 2
        %v583 = vadd.f32 %v581, %v582
        %v584 = vrot.slane %v583, 1
        %v585 = vadd.f32 %v583, %v584
        %v586 = vrcp.pop %v585
        %v587 = vmul.f32 %v585, %v586
        %v588 = vsub.f32 1.0, %v587
        %v589 = vmul.f32 %v586, %v588
        %v590 = vadd.f32 %v586, %v589
        %vm591 = vweird.f32 %v585
        %vm592 = vweird.f32 %v586
        %vm593 = vmor %vm591, %vm592
        %v594 = vsel %vm593, %v586, %v590
        %v595 = vand.u32 2147483647, %v585
        %vm596 = vcmp.eq.f32.partialorder %v595, 8.507059e+37
        %v597 = vand.u32 %v585, 2147483648
        %v598 = vor.u32 1.1754944e-38, %v597
        %v599 = vsel %vm596, %v598, %v594
        %v600 = vmul.f32 %v578, %v599
        %602 = vrot.lane.b32.xlu0 %v443, 112
        %v603 = vpop.permute.xlu0 %602
        %v606 = vsel %vm474, %v600, 0
        %608 = vmatpush.msra.mxu0 0.0
        %609 = vmatpush.msra.mxu0 0.0
        %610 = vmatpush.msra.mxu0 0.0
        %611 = vmatpush.msra.mxu0 0.0
        %612 = vmatpush.msra.mxu0 0.0
        %613 = vmatpush.msra.mxu0 0.0
        %614 = vmatpush.msra.mxu0 0.0
        %615 = vmatpush.msra.mxu0 0.0
        %616 = vmatpush.msra.mxu0 0.0
        %617 = vmatpush.msra.mxu0 0.0
        %618 = vmatpush.msra.mxu0 0.0
        %619 = vmatpush.msra.mxu0 0.0
        %620 = vmatpush.msra.mxu0 0.0
        %621 = vmatpush.msra.mxu0 0.0
        %622 = vmatpush.msra.mxu0 0.0
        %623 = vmatpush.msra.mxu0 %v603
        %624 = vmatmul.f32.gmra.mxu0 %v606
        %v625 = vpop.f32.mrf.mxu0
        %v626 = vadd.f32 0.0, %v625
        %627 = vdwg.mxu0
        // Predicated region
        $region61: #{tpu_custom_call.1} parent=51 // pred_check
          %p628 = pneg %p386
        $region62: #{tpu_custom_call.1} parent=51 // pred_check_branch
          %630 = sbr.rel (%p628) target = $region64
        $region63: #{tpu_custom_call.1} parent=51 // pred_region
          %632 = vrot.lane.b32.xlu0 %v626, 16
          %v633 = vpop.permute.xlu0 %632
          %vm635 = vcmask 261248
          %636 = vst.msk [vmem:[#allocation2] sm:$0xff] %vm635, %v633
        $region64: #{tpu_custom_call.1} parent=51 // pred_fallthru
          _
        // Predicated region
        $region65: #{tpu_custom_call.1} parent=51 // pred_check
          %p637 = pneg %p387
        $region66: #{tpu_custom_call.1} parent=51 // pred_check_branch
          %639 = sbr.rel (%p637) target = $region68
        $region67: #{tpu_custom_call.1} parent=51 // pred_region
          %v640 = vld [vmem:[#allocation2] sm:$0xff]
          %642 = vrot.lane.b32.xlu0 %v626, 16
          %v643 = vpop.permute.xlu0 %642
          %v645 = vadd.f32 %v640, %v643
          %vm646 = vcmask 261248
          %647 = vst.msk [vmem:[#allocation2] sm:$0xff] %vm646, %v645
        $region68: #{tpu_custom_call.1} parent=51 // pred_fallthru
          _
        %648 = vrot.lane.b32.xlu0 %v445, 96
        %v649 = vpop.permute.xlu0 %648
        %650 = vrot.lane.b32.xlu0 %v416, 96
        %v651 = vpop.permute.xlu0 %650
        %v652 = vsel %vm446, %v649, 0
        %v654 = vsel %vm446, %v651, 0
        %656 = vmatpush.xpose.msra.mxu0 0.0
        %657 = vmatpush.xpose.msra.mxu0 0.0
        %658 = vmatpush.xpose.msra.mxu0 0.0
        %659 = vmatpush.xpose.msra.mxu0 0.0
        %660 = vmatpush.xpose.msra.mxu0 0.0
        %661 = vmatpush.xpose.msra.mxu0 0.0
        %662 = vmatpush.xpose.msra.mxu0 0.0
        %663 = vmatpush.xpose.msra.mxu0 0.0
        %664 = vmatpush.xpose.msra.mxu0 0.0
        %665 = vmatpush.xpose.msra.mxu0 0.0
        %666 = vmatpush.xpose.msra.mxu0 0.0
        %667 = vmatpush.xpose.msra.mxu0 0.0
        %668 = vmatpush.xpose.msra.mxu0 0.0
        %669 = vmatpush.xpose.msra.mxu0 0.0
        %670 = vmatpush.xpose.msra.mxu0 0.0
        %671 = vmatpush.xpose.msra.mxu0 %v654
        %672 = vmatmul.f32.gmra.mxu0 %v652
        %v673 = vpop.f32.mrf.mxu0
        %v674 = vadd.f32 0.0, %v673
        %675 = vdwg.mxu0
        %v676 = vmul.f32 %v674, 0.17677669
        %v677 = vsel %vm474, %v676, -inf
        %v678 = vrot.slane %v677, 4
        %v679 = vmax.f32 %v677, %v678
        %v680 = vrot.slane %v679, 2
        %v681 = vmax.f32 %v679, %v680
        %v682 = vrot.slane %v681, 1
        %v683 = vmax.f32 %v681, %v682
        %v684 = vsub.f32 %v676, %v683
        %v685 = vmul.f32 %v684, 1.442695
        %v686 = vpow.pop %v685
        %v687 = vsel %vm474, %v686, 0.0
        %v688 = vrot.slane %v687, 4
        %v689 = vadd.f32 %v687, %v688
        %v690 = vrot.slane %v689, 2
        %v691 = vadd.f32 %v689, %v690
        %v692 = vrot.slane %v691, 1
        %v693 = vadd.f32 %v691, %v692
        %v694 = vrcp.pop %v693
        %v695 = vmul.f32 %v693, %v694
        %v696 = vsub.f32 1.0, %v695
        %v697 = vmul.f32 %v694, %v696
        %v698 = vadd.f32 %v694, %v697
        %vm699 = vweird.f32 %v693
        %vm700 = vweird.f32 %v694
        %vm701 = vmor %vm699, %vm700
        %v702 = vsel %vm701, %v694, %v698
        %v703 = vand.u32 2147483647, %v693
        %vm704 = vcmp.eq.f32.partialorder %v703, 8.507059e+37
        %v705 = vand.u32 %v693, 2147483648
        %v706 = vor.u32 1.1754944e-38, %v705
        %v707 = vsel %vm704, %v706, %v702
        %v708 = vmul.f32 %v686, %v707
        %709 = vrot.lane.b32.xlu0 %v443, 96
        %v710 = vpop.permute.xlu0 %709
        %v713 = vsel %vm474, %v708, 0
        %715 = vmatpush.msra.mxu0 0.0
        %716 = vmatpush.msra.mxu0 0.0
        %717 = vmatpush.msra.mxu0 0.0
        %718 = vmatpush.msra.mxu0 0.0
        %719 = vmatpush.msra.mxu0 0.0
        %720 = vmatpush.msra.mxu0 0.0
        %721 = vmatpush.msra.mxu0 0.0
        %722 = vmatpush.msra.mxu0 0.0
        %723 = vmatpush.msra.mxu0 0.0
        %724 = vmatpush.msra.mxu0 0.0
        %725 = vmatpush.msra.mxu0 0.0
        %726 = vmatpush.msra.mxu0 0.0
        %727 = vmatpush.msra.mxu0 0.0
        %728 = vmatpush.msra.mxu0 0.0
        %729 = vmatpush.msra.mxu0 0.0
        %730 = vmatpush.msra.mxu0 %v710
        %731 = vmatmul.f32.gmra.mxu0 %v713
        %v732 = vpop.f32.mrf.mxu0
        %v733 = vadd.f32 0.0, %v732
        %734 = vdwg.mxu0
        // Predicated region
        $region69: #{tpu_custom_call.1} parent=51 // pred_check
          %p735 = pneg %p386
        $region70: #{tpu_custom_call.1} parent=51 // pred_check_branch
          %737 = sbr.rel (%p735) target = $region72
        $region71: #{tpu_custom_call.1} parent=51 // pred_region
          %739 = vrot.lane.b32.xlu0 %v733, 32
          %v740 = vpop.permute.xlu0 %739
          %vm742 = vcmask 392448
          %743 = vst.msk [vmem:[#allocation2] sm:$0xff] %vm742, %v740
        $region72: #{tpu_custom_call.1} parent=51 // pred_fallthru
          _
        // Predicated region
        $region73: #{tpu_custom_call.1} parent=51 // pred_check
          %p744 = pneg %p387
        $region74: #{tpu_custom_call.1} parent=51 // pred_check_branch
          %746 = sbr.rel (%p744) target = $region76
        $region75: #{tpu_custom_call.1} parent=51 // pred_region
          %v747 = vld [vmem:[#allocation2] sm:$0xff]
          %749 = vrot.lane.b32.xlu0 %v733, 32
          %v750 = vpop.permute.xlu0 %749
          %v752 = vadd.f32 %v747, %v750
          %vm753 = vcmask 392448
          %754 = vst.msk [vmem:[#allocation2] sm:$0xff] %vm753, %v752
        $region76: #{tpu_custom_call.1} parent=51 // pred_fallthru
          _
        %755 = vrot.lane.b32.xlu0 %v445, 80
        %v756 = vpop.permute.xlu0 %755
        %757 = vrot.lane.b32.xlu0 %v416, 80
        %v758 = vpop.permute.xlu0 %757
        %v759 = vsel %vm446, %v756, 0
        %v761 = vsel %vm446, %v758, 0
        %763 = vmatpush.xpose.msra.mxu0 0.0
        %764 = vmatpush.xpose.msra.mxu0 0.0
        %765 = vmatpush.xpose.msra.mxu0 0.0
        %766 = vmatpush.xpose.msra.mxu0 0.0
        %767 = vmatpush.xpose.msra.mxu0 0.0
        %768 = vmatpush.xpose.msra.mxu0 0.0
        %769 = vmatpush.xpose.msra.mxu0 0.0
        %770 = vmatpush.xpose.msra.mxu0 0.0
        %771 = vmatpush.xpose.msra.mxu0 0.0
        %772 = vmatpush.xpose.msra.mxu0 0.0
        %773 = vmatpush.xpose.msra.mxu0 0.0
        %774 = vmatpush.xpose.msra.mxu0 0.0
        %775 = vmatpush.xpose.msra.mxu0 0.0
        %776 = vmatpush.xpose.msra.mxu0 0.0
        %777 = vmatpush.xpose.msra.mxu0 0.0
        %778 = vmatpush.xpose.msra.mxu0 %v761
        %779 = vmatmul.f32.gmra.mxu0 %v759
        %v780 = vpop.f32.mrf.mxu0
        %v781 = vadd.f32 0.0, %v780
        %782 = vdwg.mxu0
        %v783 = vmul.f32 %v781, 0.17677669
        %v784 = vsel %vm474, %v783, -inf
        %v785 = vrot.slane %v784, 4
        %v786 = vmax.f32 %v784, %v785
        %v787 = vrot.slane %v786, 2
        %v788 = vmax.f32 %v786, %v787
        %v789 = vrot.slane %v788, 1
        %v790 = vmax.f32 %v788, %v789
        %v791 = vsub.f32 %v783, %v790
        %v792 = vmul.f32 %v791, 1.442695
        %v793 = vpow.pop %v792
        %v794 = vsel %vm474, %v793, 0.0
        %v795 = vrot.slane %v794, 4
        %v796 = vadd.f32 %v794, %v795
        %v797 = vrot.slane %v796, 2
        %v798 = vadd.f32 %v796, %v797
        %v799 = vrot.slane %v798, 1
        %v800 = vadd.f32 %v798, %v799
        %v801 = vrcp.pop %v800
        %v802 = vmul.f32 %v800, %v801
        %v803 = vsub.f32 1.0, %v802
        %v804 = vmul.f32 %v801, %v803
        %v805 = vadd.f32 %v801, %v804
        %vm806 = vweird.f32 %v800
        %vm807 = vweird.f32 %v801
        %vm808 = vmor %vm806, %vm807
        %v809 = vsel %vm808, %v801, %v805
        %v810 = vand.u32 2147483647, %v800
        %vm811 = vcmp.eq.f32.partialorder %v810, 8.507059e+37
        %v812 = vand.u32 %v800, 2147483648
        %v813 = vor.u32 1.1754944e-38, %v812
        %v814 = vsel %vm811, %v813, %v809
        %v815 = vmul.f32 %v793, %v814
        %816 = vrot.lane.b32.xlu0 %v443, 80
        %v817 = vpop.permute.xlu0 %816
        %v820 = vsel %vm474, %v815, 0
        %822 = vmatpush.msra.mxu0 0.0
        %823 = vmatpush.msra.mxu0 0.0
        %824 = vmatpush.msra.mxu0 0.0
        %825 = vmatpush.msra.mxu0 0.0
        %826 = vmatpush.msra.mxu0 0.0
        %827 = vmatpush.msra.mxu0 0.0
        %828 = vmatpush.msra.mxu0 0.0
        %829 = vmatpush.msra.mxu0 0.0
        %830 = vmatpush.msra.mxu0 0.0
        %831 = vmatpush.msra.mxu0 0.0
        %832 = vmatpush.msra.mxu0 0.0
        %833 = vmatpush.msra.mxu0 0.0
        %834 = vmatpush.msra.mxu0 0.0
        %835 = vmatpush.msra.mxu0 0.0
        %836 = vmatpush.msra.mxu0 0.0
        %837 = vmatpush.msra.mxu0 %v817
        %838 = vmatmul.f32.gmra.mxu0 %v820
        %v839 = vpop.f32.mrf.mxu0
        %v840 = vadd.f32 0.0, %v839
        %841 = vdwg.mxu0
        // Predicated region
        $region77: #{tpu_custom_call.1} parent=51 // pred_check
          %p842 = pneg %p386
        $region78: #{tpu_custom_call.1} parent=51 // pred_check_branch
          %844 = sbr.rel (%p842) target = $region80
        $region79: #{tpu_custom_call.1} parent=51 // pred_region
          %846 = vrot.lane.b32.xlu0 %v840, 48
          %v847 = vpop.permute.xlu0 %846
          %vm849 = vcmask 523648
          %850 = vst.msk [vmem:[#allocation2] sm:$0xff] %vm849, %v847
        $region80: #{tpu_custom_call.1} parent=51 // pred_fallthru
          _
        // Predicated region
        $region81: #{tpu_custom_call.1} parent=51 // pred_check
          %p851 = pneg %p387
        $region82: #{tpu_custom_call.1} parent=51 // pred_check_branch
          %853 = sbr.rel (%p851) target = $region84
        $region83: #{tpu_custom_call.1} parent=51 // pred_region
          %v854 = vld [vmem:[#allocation2] sm:$0xff]
          %856 = vrot.lane.b32.xlu0 %v840, 48
          %v857 = vpop.permute.xlu0 %856
          %v859 = vadd.f32 %v854, %v857
          %vm860 = vcmask 523648
          %861 = vst.msk [vmem:[#allocation2] sm:$0xff] %vm860, %v859
        $region84: #{tpu_custom_call.1} parent=51 // pred_fallthru
          _
        %862 = vrot.lane.b32.xlu0 %v445, 64
        %v863 = vpop.permute.xlu0 %862
        %864 = vrot.lane.b32.xlu0 %v416, 64
        %v865 = vpop.permute.xlu0 %864
        %v866 = vsel %vm446, %v863, 0
        %v868 = vsel %vm446, %v865, 0
        %870 = vmatpush.xpose.msra.mxu0 0.0
        %871 = vmatpush.xpose.msra.mxu0 0.0
        %872 = vmatpush.xpose.msra.mxu0 0.0
        %873 = vmatpush.xpose.msra.mxu0 0.0
        %874 = vmatpush.xpose.msra.mxu0 0.0
        %875 = vmatpush.xpose.msra.mxu0 0.0
        %876 = vmatpush.xpose.msra.mxu0 0.0
        %877 = vmatpush.xpose.msra.mxu0 0.0
        %878 = vmatpush.xpose.msra.mxu0 0.0
        %879 = vmatpush.xpose.msra.mxu0 0.0
        %880 = vmatpush.xpose.msra.mxu0 0.0
        %881 = vmatpush.xpose.msra.mxu0 0.0
        %882 = vmatpush.xpose.msra.mxu0 0.0
        %883 = vmatpush.xpose.msra.mxu0 0.0
        %884 = vmatpush.xpose.msra.mxu0 0.0
        %885 = vmatpush.xpose.msra.mxu0 %v868
        %886 = vmatmul.f32.gmra.mxu0 %v866
        %v887 = vpop.f32.mrf.mxu0
        %v888 = vadd.f32 0.0, %v887
        %889 = vdwg.mxu0
        %v890 = vmul.f32 %v888, 0.17677669
        %v891 = vsel %vm474, %v890, -inf
        %v892 = vrot.slane %v891, 4
        %v893 = vmax.f32 %v891, %v892
        %v894 = vrot.slane %v893, 2
        %v895 = vmax.f32 %v893, %v894
        %v896 = vrot.slane %v895, 1
        %v897 = vmax.f32 %v895, %v896
        %v898 = vsub.f32 %v890, %v897
        %v899 = vmul.f32 %v898, 1.442695
        %v900 = vpow.pop %v899
        %v901 = vsel %vm474, %v900, 0.0
        %v902 = vrot.slane %v901, 4
        %v903 = vadd.f32 %v901, %v902
        %v904 = vrot.slane %v903, 2
        %v905 = vadd.f32 %v903, %v904
        %v906 = vrot.slane %v905, 1
        %v907 = vadd.f32 %v905, %v906
        %v908 = vrcp.pop %v907
        %v909 = vmul.f32 %v907, %v908
        %v910 = vsub.f32 1.0, %v909
        %v911 = vmul.f32 %v908, %v910
        %v912 = vadd.f32 %v908, %v911
        %vm913 = vweird.f32 %v907
        %vm914 = vweird.f32 %v908
        %vm915 = vmor %vm913, %vm914
        %v916 = vsel %vm915, %v908, %v912
        %v917 = vand.u32 2147483647, %v907
        %vm918 = vcmp.eq.f32.partialorder %v917, 8.507059e+37
        %v919 = vand.u32 %v907, 2147483648
        %v920 = vor.u32 1.1754944e-38, %v919
        %v921 = vsel %vm918, %v920, %v916
        %v922 = vmul.f32 %v900, %v921
        %923 = vrot.lane.b32.xlu0 %v443, 64
        %v924 = vpop.permute.xlu0 %923
        %v927 = vsel %vm474, %v922, 0
        %929 = vmatpush.msra.mxu0 0.0
        %930 = vmatpush.msra.mxu0 0.0
        %931 = vmatpush.msra.mxu0 0.0
        %932 = vmatpush.msra.mxu0 0.0
        %933 = vmatpush.msra.mxu0 0.0
        %934 = vmatpush.msra.mxu0 0.0
        %935 = vmatpush.msra.mxu0 0.0
        %936 = vmatpush.msra.mxu0 0.0
        %937 = vmatpush.msra.mxu0 0.0
        %938 = vmatpush.msra.mxu0 0.0
        %939 = vmatpush.msra.mxu0 0.0
        %940 = vmatpush.msra.mxu0 0.0
        %941 = vmatpush.msra.mxu0 0.0
        %942 = vmatpush.msra.mxu0 0.0
        %943 = vmatpush.msra.mxu0 0.0
        %944 = vmatpush.msra.mxu0 %v924
        %945 = vmatmul.f32.gmra.mxu0 %v927
        %v946 = vpop.f32.mrf.mxu0
        %v947 = vadd.f32 0.0, %v946
        %948 = vdwg.mxu0
        // Predicated region
        $region85: #{tpu_custom_call.1} parent=51 // pred_check
          %p949 = pneg %p386
        $region86: #{tpu_custom_call.1} parent=51 // pred_check_branch
          %951 = sbr.rel (%p949) target = $region88
        $region87: #{tpu_custom_call.1} parent=51 // pred_region
          %953 = vrot.lane.b32.xlu0 %v947, 64
          %v954 = vpop.permute.xlu0 %953
          %vm956 = vcmask 654848
          %957 = vst.msk [vmem:[#allocation2] sm:$0xff] %vm956, %v954
        $region88: #{tpu_custom_call.1} parent=51 // pred_fallthru
          _
        // Predicated region
        $region89: #{tpu_custom_call.1} parent=51 // pred_check
          %p958 = pneg %p387
        $region90: #{tpu_custom_call.1} parent=51 // pred_check_branch
          %960 = sbr.rel (%p958) target = $region92
        $region91: #{tpu_custom_call.1} parent=51 // pred_region
          %v961 = vld [vmem:[#allocation2] sm:$0xff]
          %963 = vrot.lane.b32.xlu0 %v947, 64
          %v964 = vpop.permute.xlu0 %963
          %v966 = vadd.f32 %v961, %v964
          %vm967 = vcmask 654848
          %968 = vst.msk [vmem:[#allocation2] sm:$0xff] %vm967, %v966
        $region92: #{tpu_custom_call.1} parent=51 // pred_fallthru
          _
        %969 = vrot.lane.b32.xlu0 %v445, 48
        %v970 = vpop.permute.xlu0 %969
        %971 = vrot.lane.b32.xlu0 %v416, 48
        %v972 = vpop.permute.xlu0 %971
        %v973 = vsel %vm446, %v970, 0
        %v975 = vsel %vm446, %v972, 0
        %977 = vmatpush.xpose.msra.mxu0 0.0
        %978 = vmatpush.xpose.msra.mxu0 0.0
        %979 = vmatpush.xpose.msra.mxu0 0.0
        %980 = vmatpush.xpose.msra.mxu0 0.0
        %981 = vmatpush.xpose.msra.mxu0 0.0
        %982 = vmatpush.xpose.msra.mxu0 0.0
        %983 = vmatpush.xpose.msra.mxu0 0.0
        %984 = vmatpush.xpose.msra.mxu0 0.0
        %985 = vmatpush.xpose.msra.mxu0 0.0
        %986 = vmatpush.xpose.msra.mxu0 0.0
        %987 = vmatpush.xpose.msra.mxu0 0.0
        %988 = vmatpush.xpose.msra.mxu0 0.0
        %989 = vmatpush.xpose.msra.mxu0 0.0
        %990 = vmatpush.xpose.msra.mxu0 0.0
        %991 = vmatpush.xpose.msra.mxu0 0.0
        %992 = vmatpush.xpose.msra.mxu0 %v975
        %993 = vmatmul.f32.gmra.mxu0 %v973
        %v994 = vpop.f32.mrf.mxu0
        %v995 = vadd.f32 0.0, %v994
        %996 = vdwg.mxu0
        %v997 = vmul.f32 %v995, 0.17677669
        %v998 = vsel %vm474, %v997, -inf
        %v999 = vrot.slane %v998, 4
        %v1000 = vmax.f32 %v998, %v999
        %v1001 = vrot.slane %v1000, 2
        %v1002 = vmax.f32 %v1000, %v1001
        %v1003 = vrot.slane %v1002, 1
        %v1004 = vmax.f32 %v1002, %v1003
        %v1005 = vsub.f32 %v997, %v1004
        %v1006 = vmul.f32 %v1005, 1.442695
        %v1007 = vpow.pop %v1006
        %v1008 = vsel %vm474, %v1007, 0.0
        %v1009 = vrot.slane %v1008, 4
        %v1010 = vadd.f32 %v1008, %v1009
        %v1011 = vrot.slane %v1010, 2
        %v1012 = vadd.f32 %v1010, %v1011
        %v1013 = vrot.slane %v1012, 1
        %v1014 = vadd.f32 %v1012, %v1013
        %v1015 = vrcp.pop %v1014
        %v1016 = vmul.f32 %v1014, %v1015
        %v1017 = vsub.f32 1.0, %v1016
        %v1018 = vmul.f32 %v1015, %v1017
        %v1019 = vadd.f32 %v1015, %v1018
        %vm1020 = vweird.f32 %v1014
        %vm1021 = vweird.f32 %v1015
        %vm1022 = vmor %vm1020, %vm1021
        %v1023 = vsel %vm1022, %v1015, %v1019
        %v1024 = vand.u32 2147483647, %v1014
        %vm1025 = vcmp.eq.f32.partialorder %v1024, 8.507059e+37
        %v1026 = vand.u32 %v1014, 2147483648
        %v1027 = vor.u32 1.1754944e-38, %v1026
        %v1028 = vsel %vm1025, %v1027, %v1023
        %v1029 = vmul.f32 %v1007, %v1028
        %1030 = vrot.lane.b32.xlu0 %v443, 48
        %v1031 = vpop.permute.xlu0 %1030
        %v1034 = vsel %vm474, %v1029, 0
        %1036 = vmatpush.msra.mxu0 0.0
        %1037 = vmatpush.msra.mxu0 0.0
        %1038 = vmatpush.msra.mxu0 0.0
        %1039 = vmatpush.msra.mxu0 0.0
        %1040 = vmatpush.msra.mxu0 0.0
        %1041 = vmatpush.msra.mxu0 0.0
        %1042 = vmatpush.msra.mxu0 0.0
        %1043 = vmatpush.msra.mxu0 0.0
        %1044 = vmatpush.msra.mxu0 0.0
        %1045 = vmatpush.msra.mxu0 0.0
        %1046 = vmatpush.msra.mxu0 0.0
        %1047 = vmatpush.msra.mxu0 0.0
        %1048 = vmatpush.msra.mxu0 0.0
        %1049 = vmatpush.msra.mxu0 0.0
        %1050 = vmatpush.msra.mxu0 0.0
        %1051 = vmatpush.msra.mxu0 %v1031
        %1052 = vmatmul.f32.gmra.mxu0 %v1034
        %v1053 = vpop.f32.mrf.mxu0
        %v1054 = vadd.f32 0.0, %v1053
        %1055 = vdwg.mxu0
        // Predicated region
        $region93: #{tpu_custom_call.1} parent=51 // pred_check
          %p1056 = pneg %p386
        $region94: #{tpu_custom_call.1} parent=51 // pred_check_branch
          %1058 = sbr.rel (%p1056) target = $region96
        $region95: #{tpu_custom_call.1} parent=51 // pred_region
          %1060 = vrot.lane.b32.xlu0 %v1054, 80
          %v1061 = vpop.permute.xlu0 %1060
          %vm1063 = vcmask 786048
          %1064 = vst.msk [vmem:[#allocation2] sm:$0xff] %vm1063, %v1061
        $region96: #{tpu_custom_call.1} parent=51 // pred_fallthru
          _
        // Predicated region
        $region97: #{tpu_custom_call.1} parent=51 // pred_check
          %p1065 = pneg %p387
        $region98: #{tpu_custom_call.1} parent=51 // pred_check_branch
          %1067 = sbr.rel (%p1065) target = $region100
        $region99: #{tpu_custom_call.1} parent=51 // pred_region
          %v1068 = vld [vmem:[#allocation2] sm:$0xff]
          %1070 = vrot.lane.b32.xlu0 %v1054, 80
          %v1071 = vpop.permute.xlu0 %1070
          %v1073 = vadd.f32 %v1068, %v1071
          %vm1074 = vcmask 786048
          %1075 = vst.msk [vmem:[#allocation2] sm:$0xff] %vm1074, %v1073
        $region100: #{tpu_custom_call.1} parent=51 // pred_fallthru
          _
        %1076 = vrot.lane.b32.xlu0 %v445, 32
        %v1077 = vpop.permute.xlu0 %1076
        %1078 = vrot.lane.b32.xlu0 %v416, 32
        %v1079 = vpop.permute.xlu0 %1078
        %v1080 = vsel %vm446, %v1077, 0
        %v1082 = vsel %vm446, %v1079, 0
        %1084 = vmatpush.xpose.msra.mxu0 0.0
        %1085 = vmatpush.xpose.msra.mxu0 0.0
        %1086 = vmatpush.xpose.msra.mxu0 0.0
        %1087 = vmatpush.xpose.msra.mxu0 0.0
        %1088 = vmatpush.xpose.msra.mxu0 0.0
        %1089 = vmatpush.xpose.msra.mxu0 0.0
        %1090 = vmatpush.xpose.msra.mxu0 0.0
        %1091 = vmatpush.xpose.msra.mxu0 0.0
        %1092 = vmatpush.xpose.msra.mxu0 0.0
        %1093 = vmatpush.xpose.msra.mxu0 0.0
        %1094 = vmatpush.xpose.msra.mxu0 0.0
        %1095 = vmatpush.xpose.msra.mxu0 0.0
        %1096 = vmatpush.xpose.msra.mxu0 0.0
        %1097 = vmatpush.xpose.msra.mxu0 0.0
        %1098 = vmatpush.xpose.msra.mxu0 0.0
        %1099 = vmatpush.xpose.msra.mxu0 %v1082
        %1100 = vmatmul.f32.gmra.mxu0 %v1080
        %v1101 = vpop.f32.mrf.mxu0
        %v1102 = vadd.f32 0.0, %v1101
        %1103 = vdwg.mxu0
        %v1104 = vmul.f32 %v1102, 0.17677669
        %v1105 = vsel %vm474, %v1104, -inf
        %v1106 = vrot.slane %v1105, 4
        %v1107 = vmax.f32 %v1105, %v1106
        %v1108 = vrot.slane %v1107, 2
        %v1109 = vmax.f32 %v1107, %v1108
        %v1110 = vrot.slane %v1109, 1
        %v1111 = vmax.f32 %v1109, %v1110
        %v1112 = vsub.f32 %v1104, %v1111
        %v1113 = vmul.f32 %v1112, 1.442695
        %v1114 = vpow.pop %v1113
        %v1115 = vsel %vm474, %v1114, 0.0
        %v1116 = vrot.slane %v1115, 4
        %v1117 = vadd.f32 %v1115, %v1116
        %v1118 = vrot.slane %v1117, 2
        %v1119 = vadd.f32 %v1117, %v1118
        %v1120 = vrot.slane %v1119, 1
        %v1121 = vadd.f32 %v1119, %v1120
        %v1122 = vrcp.pop %v1121
        %v1123 = vmul.f32 %v1121, %v1122
        %v1124 = vsub.f32 1.0, %v1123
        %v1125 = vmul.f32 %v1122, %v1124
        %v1126 = vadd.f32 %v1122, %v1125
        %vm1127 = vweird.f32 %v1121
        %vm1128 = vweird.f32 %v1122
        %vm1129 = vmor %vm1127, %vm1128
        %v1130 = vsel %vm1129, %v1122, %v1126
        %v1131 = vand.u32 2147483647, %v1121
        %vm1132 = vcmp.eq.f32.partialorder %v1131, 8.507059e+37
        %v1133 = vand.u32 %v1121, 2147483648
        %v1134 = vor.u32 1.1754944e-38, %v1133
        %v1135 = vsel %vm1132, %v1134, %v1130
        %v1136 = vmul.f32 %v1114, %v1135
        %1137 = vrot.lane.b32.xlu0 %v443, 32
        %v1138 = vpop.permute.xlu0 %1137
        %v1141 = vsel %vm474, %v1136, 0
        %1143 = vmatpush.msra.mxu0 0.0
        %1144 = vmatpush.msra.mxu0 0.0
        %1145 = vmatpush.msra.mxu0 0.0
        %1146 = vmatpush.msra.mxu0 0.0
        %1147 = vmatpush.msra.mxu0 0.0
        %1148 = vmatpush.msra.mxu0 0.0
        %1149 = vmatpush.msra.mxu0 0.0
        %1150 = vmatpush.msra.mxu0 0.0
        %1151 = vmatpush.msra.mxu0 0.0
        %1152 = vmatpush.msra.mxu0 0.0
        %1153 = vmatpush.msra.mxu0 0.0
        %1154 = vmatpush.msra.mxu0 0.0
        %1155 = vmatpush.msra.mxu0 0.0
        %1156 = vmatpush.msra.mxu0 0.0
        %1157 = vmatpush.msra.mxu0 0.0
        %1158 = vmatpush.msra.mxu0 %v1138
        %1159 = vmatmul.f32.gmra.mxu0 %v1141
        %v1160 = vpop.f32.mrf.mxu0
        %v1161 = vadd.f32 0.0, %v1160
        %1162 = vdwg.mxu0
        // Predicated region
        $region101: #{tpu_custom_call.1} parent=51 // pred_check
          %p1163 = pneg %p386
        $region102: #{tpu_custom_call.1} parent=51 // pred_check_branch
          %1165 = sbr.rel (%p1163) target = $region104
        $region103: #{tpu_custom_call.1} parent=51 // pred_region
          %1167 = vrot.lane.b32.xlu0 %v1161, 96
          %v1168 = vpop.permute.xlu0 %1167
          %vm1170 = vcmask 917248
          %1171 = vst.msk [vmem:[#allocation2] sm:$0xff] %vm1170, %v1168
        $region104: #{tpu_custom_call.1} parent=51 // pred_fallthru
          _
        // Predicated region
        $region105: #{tpu_custom_call.1} parent=51 // pred_check
          %p1172 = pneg %p387
        $region106: #{tpu_custom_call.1} parent=51 // pred_check_branch
          %1174 = sbr.rel (%p1172) target = $region108
        $region107: #{tpu_custom_call.1} parent=51 // pred_region
          %v1175 = vld [vmem:[#allocation2] sm:$0xff]
          %1177 = vrot.lane.b32.xlu0 %v1161, 96
          %v1178 = vpop.permute.xlu0 %1177
          %v1180 = vadd.f32 %v1175, %v1178
          %vm1181 = vcmask 917248
          %1182 = vst.msk [vmem:[#allocation2] sm:$0xff] %vm1181, %v1180
        $region108: #{tpu_custom_call.1} parent=51 // pred_fallthru
          _
        %1183 = vrot.lane.b32.xlu0 %v445, 16
        %v1184 = vpop.permute.xlu0 %1183
        %1185 = vrot.lane.b32.xlu0 %v416, 16
        %v1186 = vpop.permute.xlu0 %1185
        %v1187 = vsel %vm446, %v1184, 0
        %v1189 = vsel %vm446, %v1186, 0
        %1191 = vmatpush.xpose.msra.mxu0 0.0
        %1192 = vmatpush.xpose.msra.mxu0 0.0
        %1193 = vmatpush.xpose.msra.mxu0 0.0
        %1194 = vmatpush.xpose.msra.mxu0 0.0
        %1195 = vmatpush.xpose.msra.mxu0 0.0
        %1196 = vmatpush.xpose.msra.mxu0 0.0
        %1197 = vmatpush.xpose.msra.mxu0 0.0
        %1198 = vmatpush.xpose.msra.mxu0 0.0
        %1199 = vmatpush.xpose.msra.mxu0 0.0
        %1200 = vmatpush.xpose.msra.mxu0 0.0
        %1201 = vmatpush.xpose.msra.mxu0 0.0
        %1202 = vmatpush.xpose.msra.mxu0 0.0
        %1203 = vmatpush.xpose.msra.mxu0 0.0
        %1204 = vmatpush.xpose.msra.mxu0 0.0
        %1205 = vmatpush.xpose.msra.mxu0 0.0
        %1206 = vmatpush.xpose.msra.mxu0 %v1189
        %1207 = vmatmul.f32.gmra.mxu0 %v1187
        %v1208 = vpop.f32.mrf.mxu0
        %v1209 = vadd.f32 0.0, %v1208
        %1210 = vdwg.mxu0
        %v1211 = vmul.f32 %v1209, 0.17677669
        %v1212 = vsel %vm474, %v1211, -inf
        %v1213 = vrot.slane %v1212, 4
        %v1214 = vmax.f32 %v1212, %v1213
        %v1215 = vrot.slane %v1214, 2
        %v1216 = vmax.f32 %v1214, %v1215
        %v1217 = vrot.slane %v1216, 1
        %v1218 = vmax.f32 %v1216, %v1217
        %v1219 = vsub.f32 %v1211, %v1218
        %v1220 = vmul.f32 %v1219, 1.442695
        %v1221 = vpow.pop %v1220
        %v1222 = vsel %vm474, %v1221, 0.0
        %v1223 = vrot.slane %v1222, 4
        %v1224 = vadd.f32 %v1222, %v1223
        %v1225 = vrot.slane %v1224, 2
        %v1226 = vadd.f32 %v1224, %v1225
        %v1227 = vrot.slane %v1226, 1
        %v1228 = vadd.f32 %v1226, %v1227
        %v1229 = vrcp.pop %v1228
        %v1230 = vmul.f32 %v1228, %v1229
        %v1231 = vsub.f32 1.0, %v1230
        %v1232 = vmul.f32 %v1229, %v1231
        %v1233 = vadd.f32 %v1229, %v1232
        %vm1234 = vweird.f32 %v1228
        %vm1235 = vweird.f32 %v1229
        %vm1236 = vmor %vm1234, %vm1235
        %v1237 = vsel %vm1236, %v1229, %v1233
        %v1238 = vand.u32 2147483647, %v1228
        %vm1239 = vcmp.eq.f32.partialorder %v1238, 8.507059e+37
        %v1240 = vand.u32 %v1228, 2147483648
        %v1241 = vor.u32 1.1754944e-38, %v1240
        %v1242 = vsel %vm1239, %v1241, %v1237
        %v1243 = vmul.f32 %v1221, %v1242
        %1244 = vrot.lane.b32.xlu0 %v443, 16
        %v1245 = vpop.permute.xlu0 %1244
        %v1248 = vsel %vm474, %v1243, 0
        %1250 = vmatpush.msra.mxu0 0.0
        %1251 = vmatpush.msra.mxu0 0.0
        %1252 = vmatpush.msra.mxu0 0.0
        %1253 = vmatpush.msra.mxu0 0.0
        %1254 = vmatpush.msra.mxu0 0.0
        %1255 = vmatpush.msra.mxu0 0.0
        %1256 = vmatpush.msra.mxu0 0.0
        %1257 = vmatpush.msra.mxu0 0.0
        %1258 = vmatpush.msra.mxu0 0.0
        %1259 = vmatpush.msra.mxu0 0.0
        %1260 = vmatpush.msra.mxu0 0.0
        %1261 = vmatpush.msra.mxu0 0.0
        %1262 = vmatpush.msra.mxu0 0.0
        %1263 = vmatpush.msra.mxu0 0.0
        %1264 = vmatpush.msra.mxu0 0.0
        %1265 = vmatpush.msra.mxu0 %v1245
        %1266 = vmatmul.f32.gmra.mxu0 %v1248
        %v1267 = vpop.f32.mrf.mxu0
        %v1268 = vadd.f32 0.0, %v1267
        %1269 = vdwg.mxu0
        // Predicated region
        $region109: #{tpu_custom_call.1} parent=51 // pred_check
          %p1270 = pneg %p386
        $region110: #{tpu_custom_call.1} parent=51 // pred_check_branch
          %1272 = sbr.rel (%p1270) target = $region112
        $region111: #{tpu_custom_call.1} parent=51 // pred_region
          %1274 = vrot.lane.b32.xlu0 %v1268, 112
          %v1275 = vpop.permute.xlu0 %1274
          %vm1277 = vcmask 1048448
          %1278 = vst.msk [vmem:[#allocation2] sm:$0xff] %vm1277, %v1275
        $region112: #{tpu_custom_call.1} parent=51 // pred_fallthru
          _
        // Predicated region
        $region113: #{tpu_custom_call.1} parent=51 // pred_check
          %p1279 = pneg %p387
        $region114: #{tpu_custom_call.1} parent=51 // pred_check_branch
          %1281 = sbr.rel (%p1279) target = $region116
        $region115: #{tpu_custom_call.1} parent=51 // pred_region
          %v1282 = vld [vmem:[#allocation2] sm:$0xff]
          %1284 = vrot.lane.b32.xlu0 %v1268, 112
          %v1285 = vpop.permute.xlu0 %1284
          %v1287 = vadd.f32 %v1282, %v1285
          %vm1288 = vcmask 1048448
          %1289 = vst.msk [vmem:[#allocation2] sm:$0xff] %vm1288, %v1287
        $region116: #{tpu_custom_call.1} parent=51 // pred_fallthru
          _
        // Predicated region
        $region117: #{tpu_custom_call.1} parent=51 // pred_check
          %p1290 = pneg %p386
        $region118: #{tpu_custom_call.1} parent=51 // pred_check_branch
          %1292 = sbr.rel (%p1290) target = $region120
        $region119: #{tpu_custom_call.1} parent=51 // pred_region
          %v1293 = vld [vmem:[#allocation2] sm:$0xff]
          %v1294 = vld [vmem:[%s6] sm:$0xff]
          %v1295 = vld [vmem:[%s6 + $0x8] sm:$0xff]
          %v1296 = vld [vmem:[%s6 + $0x10] sm:$0xff]
          %v1297 = vld [vmem:[%s6 + $0x18] sm:$0xff]
          %v1298 = vld [vmem:[%s6 + $0x20] sm:$0xff]
          %v1299 = vld [vmem:[%s6 + $0x28] sm:$0xff]
          %v1300 = vld [vmem:[%s6 + $0x30] sm:$0xff]
          %v1301 = vld [vmem:[%s6 + $0x38] sm:$0xff]
          %v1302 = vld [vmem:[%s6 + $0x40] sm:$0xff]
          %v1303 = vld [vmem:[%s6 + $0x48] sm:$0xff]
          %v1304 = vld [vmem:[%s6 + $0x50] sm:$0xff]
          %v1305 = vld [vmem:[%s6 + $0x58] sm:$0xff]
          %v1306 = vld [vmem:[%s6 + $0x60] sm:$0xff]
          %v1307 = vld [vmem:[%s6 + $0x68] sm:$0xff]
          %v1308 = vld [vmem:[%s6 + $0x70] sm:$0xff]
          %v1309 = vld [vmem:[%s6 + $0x78] sm:$0xff]
          %v1310 = vld [vmem:[%s7] sm:$0x1]
          %v1312 = vperm.slane %v1310, 0
          %1314 = vmatpush.msra.mxu0 %v1309
          %1315 = vmatpush.msra.mxu0 %v1308
          %1316 = vmatpush.msra.mxu0 %v1307
          %1317 = vmatpush.msra.mxu0 %v1306
          %1318 = vmatpush.msra.mxu0 %v1305
          %1319 = vmatpush.msra.mxu0 %v1304
          %1320 = vmatpush.msra.mxu0 %v1303
          %1321 = vmatpush.msra.mxu0 %v1302
          %1322 = vmatpush.msra.mxu0 %v1301
          %1323 = vmatpush.msra.mxu0 %v1300
          %1324 = vmatpush.msra.mxu0 %v1299
          %1325 = vmatpush.msra.mxu0 %v1298
          %1326 = vmatpush.msra.mxu0 %v1297
          %1327 = vmatpush.msra.mxu0 %v1296
          %1328 = vmatpush.msra.mxu0 %v1295
          %1329 = vmatpush.msra.mxu0 %v1294
          %1330 = vmatmul.f32.gmra.mxu0 %v1293
          %v1331 = vpop.f32.mrf.mxu0
          %v1332 = vadd.f32 %v1312, %v1331
          %1333 = vdwg.mxu0
          %v1334 = vld [vmem:[%s367] sm:$0xff]
          %v1335 = vadd.f32 %v1332, %v1334
          %1336 = vst.msk [vmem:[%s363] sm:$0xff] %vm394, %v1335
        $region120: #{tpu_custom_call.1} parent=51 // pred_fallthru
          _
        %s1337 = sand.u32 %s234, 1
        %s1338 = scalar_lea.sflag [#allocation4], %s1337
        %s1339 = sand.u32 %s234, 1
        %s1340 = smul.addr %s1339, 8
        %s1341 = scalar_lea.vmem [#allocation3], %s1340
        // Predicated region
        $region121: #{tpu_custom_call.1} parent=51 // pred_check
          %p1342 = pneg %p244
        $region122: #{tpu_custom_call.1} parent=51 // pred_check_branch
          %1344 = sbr.rel (%p1342) target = $region124
        $region123: #{tpu_custom_call.1} parent=51 // pred_region
          %1346 = vsyncadd %s1338, 0
          %s1347 = smul.addr %s26, 8
          %s1348 = scalar_lea.hbm %s8, %s1347
          %s1350 = sshll.u32 %s1341, 4
          %s1351 = int_to_ptr.vmem [resolvable:$true] %s1350
          %s1352 = sshll.u32 %s1348, 4
          %s1353 = int_to_ptr.hbm [resolvable:$true] %s1352
          %1355 = dma.vmem_to_hbm [thread:$0]  %s1351, 128, %s1353, %s1338
        $region124: #{tpu_custom_call.1} parent=51 // pred_fallthru
          _
      $region52: #{tpu_custom_call.1} parent=5 // pred_fallthru
        _
      %p1356 = scmp.le.s32.totalorder 2, %s17
      // Predicated region
      $region125: #{tpu_custom_call.1} parent=5 // pred_check
        %p1357 = pneg %p1356
      $region126: #{tpu_custom_call.1} parent=5 // pred_check_branch
        %1359 = sbr.rel (%p1357) target = $region128
      $region127: #{tpu_custom_call.1} parent=5 // pred_region
        %s1360 = ssub.s32 %s17, 2
        // Predicated region
        $region129: #{tpu_custom_call.1} parent=127 // pred_check
          %p1361 = pneg %p250
        $region130: #{tpu_custom_call.1} parent=127 // pred_check_branch
          %1363 = sbr.rel (%p1361) target = $region132
        $region131: #{tpu_custom_call.1} parent=127 // pred_region
          %s1364 = sand.u32 %s235, 1
          %s1365 = scalar_lea.sflag [#allocation4], %s1364
          %s1366 = sand.u32 %s235, 1
          %s1367 = smul.addr %s1366, 8
          %s1368 = scalar_lea.vmem [#allocation3], %s1367
          %1370 = dma.done %s1365, 128
        $region132: #{tpu_custom_call.1} parent=127 // pred_fallthru
          _
      $region128: #{tpu_custom_call.1} parent=5 // pred_fallthru
        _
    $region6: #{tpu_custom_call.1} parent=1 // loop_footer
      %s21 = sadd.s32 1, %s17
    $region7: #{tpu_custom_call.1} parent=1 // loop_footer_branch
      %16 = sbr.rel target = $region3
    $region8: #{tpu_custom_call.1} parent=1 // loop_exit
      _
    %1371 = vsyncpa [#allocation4], 1
    %s1372 = scalar_lea.sflag [#allocation4], 1
    %1373 = vsyncpa %s1372, 1

</llo_original>
